<compile_context>
chip_gen: v6e
topology: v6e:2x2x1
jax: 0.10.0
libtpu: 0.0.40
codegen_flags: <defaults>
</compile_context>

<pallas_src>
import functools

import jax
import jax.numpy as jnp
from jax import lax
from jax.experimental import pallas as pl
from jax.experimental.pallas import tpu as pltpu


def _pad_amounts(pool_size):
    pt = (pool_size - 1) // 2
    if pool_size % 2 == 0:
        # torch.nn.ZeroPad2d((left, right, top, bottom)) = (pt, pt+1, pt, pt+1)
        return (pt, pt + 1), (pt, pt + 1)
    return (pt, pt), (pt, pt)


def _maxpool_kernel(*refs, num_mats, pool_size, stride,
                    pad_t, pad_b, pad_l, pad_r, out_h, out_w):
    """refs = (x_0..x_{G-1}, o_0..o_{G-1}, pad_ref, col_ref).

    x_i  : (pb, H,  W )  native-layout plane block of matrix i
    o_i  : (pb, Ho, Wo)  pooled output block of matrix i
    pad  : (pb, Hp, Wp)  VMEM scratch holding the zero-padded tile
    col  : (pb, Hp, Wo)  VMEM scratch holding the W-pooled, W-strided columns
    """
    x_refs = refs[:num_mats]
    o_refs = refs[num_mats:2 * num_mats]
    pad_ref = refs[2 * num_mats]
    col_ref = refs[2 * num_mats + 1]

    pb, h, w = x_refs[0].shape
    _, hp, wp = pad_ref.shape
    wv = wp - pool_size + 1
    dt = pad_ref.dtype

    # ZeroPad2d folded in: rewrite only the 4 thin border strips (the interior
    # is fully overwritten per matrix below).  Much cheaper than zero-filling
    # the whole scratch every step, and safe under megacore grid sharding.
    if pad_t:
        pad_ref[:, 0:pad_t, :] = jnp.zeros((pb, pad_t, wp), dt)
    if pad_b:
        pad_ref[:, pad_t + h:hp, :] = jnp.zeros((pb, pad_b, wp), dt)
    if pad_l:
        pad_ref[:, pad_t:pad_t + h, 0:pad_l] = jnp.zeros((pb, h, pad_l), dt)
    if pad_r:
        pad_ref[:, pad_t:pad_t + h, pad_l + w:wp] = jnp.zeros((pb, h, pad_r), dt)

    for x_ref, o_ref in zip(x_refs, o_refs):
        # Interior copy: the only per-step write to the padded scratch.
        pad_ref[:, pad_t:pad_t + h, pad_l:pad_l + w] = x_ref[...]

        # ---- W (lane axis) pass: pool_size unit-shifted window loads straight
        # from the padded scratch (no monolithic reload), VPU maxima.
        colmax = pad_ref[:, :, 0:wv]
        for kw in range(1, pool_size):
            colmax = jnp.maximum(colmax, pad_ref[:, :, kw:kw + wv])

        # ---- Fold the output stride along W: keep only the Wo strided
        # columns.  Lane compaction is expressed as unit-width column writes
        # (masked stores) rather than a lane-strided slice, which keeps Mosaic
        # on guaranteed lowering paths.  Wo < 128 means the final output store
        # is masked regardless, so this does not change the store regime.
        # TODO(synk): for very large Wo, replace with a single lane-compacting
        # strided slice once that is universally supported.
        for j in range(out_w):
            c0 = j * stride
            col_ref[:, :, j:j + 1] = colmax[:, :, c0:c0 + 1]

        # ---- H (sublane axis) pass on the compacted Wo columns with the
        # stride folded in: each output row is the max of exactly its
        # pool_size padded rows and is written directly to the output block.
        cm = col_ref[...]                                   # (pb, Hp, Wo)
        for i in range(out_h):
            r0 = i * stride
            rmax = cm[:, r0:r0 + 1, :]
            for kh in range(1, pool_size):
                rmax = jnp.maximum(rmax, cm[:, r0 + kh:r0 + kh + 1, :])
            o_ref[:, i:i + 1, :] = rmax


def _maxpool_group_pallas(planes_list, pool_size, stride):
    """planes_list: list of same-shape/dtype (P, H, W) arrays (native layout).
    Returns a list of (P, Ho, Wo) arrays.  One pallas_call for the group."""
    p, h, w = planes_list[0].shape
    dtype = planes_list[0].dtype
    g = len(planes_list)

    (pt_t, pt_b), (pt_l, pt_r) = _pad_amounts(pool_size)
    hp, wp = h + pt_t + pt_b, w + pt_l + pt_r
    ho = (hp - pool_size) // stride + 1      # MaxPool2d, ceil_mode=False
    wo = (wp - pool_size) // stride + 1

    # Plane-block size: largest block that fits a conservative VMEM budget
    # (double-buffered ins/outs per matrix + the two scratches), but also
    # split into >= 2 grid steps when possible so both v7x TensorCores work.
    itemsize = jnp.dtype(dtype).itemsize
    per_plane = itemsize * (g * (2 * h * w + 2 * ho * wo) + hp * wp + hp * wo)
    budget = 20 << 20                         # ~20 MiB -> safe on v5e/v6e/v7x
    pb = max(1, min(p, budget // max(per_plane, 1)))
    if p >= 2:
        pb = min(pb, -(-p // 2))              # ceil(p/2): at least 2 grid steps
    grid = (pl.cdiv(p, pb),)

    kernel = functools.partial(
        _maxpool_kernel, num_mats=g, pool_size=pool_size, stride=stride,
        pad_t=pt_t, pad_b=pt_b, pad_l=pt_l, pad_r=pt_r, out_h=ho, out_w=wo,
    )
    in_specs = [pl.BlockSpec((pb, h, w), lambda i: (i, 0, 0)) for _ in range(g)]
    out_specs = tuple(
        pl.BlockSpec((pb, ho, wo), lambda i: (i, 0, 0)) for _ in range(g))
    out_shape = tuple(jax.ShapeDtypeStruct((p, ho, wo), dtype) for _ in range(g))

    outs = pl.pallas_call(
        kernel,
        out_shape=out_shape,
        grid=grid,
        in_specs=in_specs,
        out_specs=out_specs,
        scratch_shapes=[
            pltpu.VMEM((pb, hp, wp), dtype),   # zero-padded tile
            pltpu.VMEM((pb, hp, wo), dtype),   # W-pooled strided columns
        ],
        compiler_params=pltpu.CompilerParams(
            dimension_semantics=("parallel",),
            vmem_limit_bytes=48 << 20,         # > v5e 16 MiB default, < v7x 64 MiB
        ),
    )(*planes_list)
    return list(outs)


class MaxPoolLayerV1:
    """JAX/Pallas port of the PyTorch MaxPoolLayerV1 (no learnable params)."""

    def __init__(self, stride, pool_size, num_similarity_matrices):
        self.stride = stride
        self.pool_size = pool_size
        self.num_similarity_matrices = num_similarity_matrices

    def __call__(self, similarity_matrices_list):
        mats = list(similarity_matrices_list[: self.num_similarity_matrices])
        results = [None] * len(mats)

        # Group matrices by (shape, dtype); each group is pooled in ONE
        # pallas_call (separate in/out refs -> no stack copy, one launch).
        groups = {}
        for idx, m in enumerate(mats):
            groups.setdefault((tuple(m.shape), jnp.dtype(m.dtype).name), []).append(idx)

        for _, idxs in groups.items():
            # (..., H, W) -> (P, H, W): merging leading dims is a free reshape.
            planes = [mats[i].reshape((-1,) + mats[i].shape[-2:]) for i in idxs]
            outs = _maxpool_group_pallas(planes, self.pool_size, self.stride)
            for i, o in zip(idxs, outs):
                lead = mats[i].shape[:-2]
                results[i] = o.reshape(lead + o.shape[-2:])
        return results


def _ref_maxpool(x, pool_size, stride):
    """Pure-JAX reference: zero-pad then max-pool (matches torch semantics)."""
    (pt_t, pt_b), (pt_l, pt_r) = _pad_amounts(pool_size)
    xp = jnp.pad(x, ((0, 0), (0, 0), (pt_t, pt_b), (pt_l, pt_r)))
    return lax.reduce_window(
        xp,
        jnp.asarray(-jnp.inf, x.dtype),
        lax.max,
        window_dimensions=(1, 1, pool_size, pool_size),
        window_strides=(1, 1, stride, stride),
        padding="VALID",
    )


if __name__ == "__main__":
    key = jax.random.PRNGKey(0)
    num_matrices = 3
    batch, channels, height, width = 2, 4, 16, 16

    keys = jax.random.split(key, num_matrices)
    sims_f32 = [
        jax.random.normal(k, (batch, channels, height, width), dtype=jnp.float32)
        for k in keys
    ]
    sims_bf16 = [s.astype(jnp.bfloat16) for s in sims_f32]
    # Odd plane count (1*7 = 7 planes) -> exercises a partial last plane block.
    keys2 = jax.random.split(jax.random.PRNGKey(1), num_matrices)
    sims_odd = [
        jax.random.normal(k, (1, 7, height, width), dtype=jnp.float32)
        for k in keys2
    ]

    configs = [
        (3, 2, sims_f32),    # odd pool size, symmetric padding
        (4, 2, sims_f32),    # even pool size, asymmetric padding
        (3, 2, sims_bf16),   # bf16 path
        (3, 2, sims_odd),    # plane count not divisible by the plane block
    ]

    ok = True
    for pool, stride, sims in configs:
        layer = MaxPoolLayerV1(stride=stride, pool_size=pool,
                               num_similarity_matrices=num_matrices)
        outs = [jax.block_until_ready(o) for o in layer(sims)]
        refs = [_ref_maxpool(s, pool, stride) for s in sims]
        for o, r in zip(outs, refs):
            if o.shape != r.shape or o.dtype != r.dtype:
                ok = False
            elif not bool(jnp.allclose(o.astype(jnp.float32),
                                       r.astype(jnp.float32), atol=1e-6)):
                ok = False

    print("KERNEL_OK" if ok else "KERNEL_MISMATCH")
</pallas_src>

<mosaic_0001>
module attributes {stable_mosaic.version = 11 : i64} {
  func.func @_maxpool_kernel(%arg0: i32, %arg1: memref<4x16x16xf32, #tpu.memory_space<vmem>>, %arg2: memref<4x16x16xf32, #tpu.memory_space<vmem>>, %arg3: memref<4x16x16xf32, #tpu.memory_space<vmem>>, %arg4: memref<4x8x8xf32, #tpu.memory_space<vmem>>, %arg5: memref<4x8x8xf32, #tpu.memory_space<vmem>>, %arg6: memref<4x8x8xf32, #tpu.memory_space<vmem>>, %arg7: memref<4x18x18xf32, #tpu.memory_space<vmem>>, %arg8: memref<4x18x8xf32, #tpu.memory_space<vmem>>) attributes {dimension_semantics = [#tpu.dimension_semantics<parallel>], iteration_bounds = array<i64: 2>, scalar_prefetch = 0 : i64, scratch_operands = 2 : i64, tpu.core_type = #tpu.core_type<tc>, window_params = [{transform_indices = @transform_0, window_bounds = array<i64: 4, 16, 16>}, {transform_indices = @transform_1, window_bounds = array<i64: 4, 16, 16>}, {transform_indices = @transform_2, window_bounds = array<i64: 4, 16, 16>}, {transform_indices = @transform_3, window_bounds = array<i64: 4, 8, 8>}, {transform_indices = @transform_4, window_bounds = array<i64: 4, 8, 8>}, {transform_indices = @transform_5, window_bounds = array<i64: 4, 8, 8>}]} {
    %cst = arith.constant 0.000000e+00 : f32
    %0 = vector.broadcast %cst : f32 to vector<4x1x18xf32>
    %c0 = arith.constant 0 : index
    %c0_0 = arith.constant 0 : index
    %c0_1 = arith.constant 0 : index
    %1 = vector.load %arg7[%c0, %c0_0, %c0_1] : memref<4x18x18xf32, #tpu.memory_space<vmem>>, vector<4x1x18xf32>
    tpu.vector_store %arg7[%c0, %c0_0, %c0_1], %0 {strides = array<i32>} : memref<4x18x18xf32, #tpu.memory_space<vmem>>, vector<4x1x18xf32>,
    %cst_2 = arith.constant 0.000000e+00 : f32
    %2 = vector.broadcast %cst_2 : f32 to vector<4x1x18xf32>
    %c0_3 = arith.constant 0 : index
    %c17 = arith.constant 17 : index
    %c0_4 = arith.constant 0 : index
    %3 = vector.load %arg7[%c0_3, %c17, %c0_4] : memref<4x18x18xf32, #tpu.memory_space<vmem>>, vector<4x1x18xf32>
    tpu.vector_store %arg7[%c0_3, %c17, %c0_4], %2 {strides = array<i32>} : memref<4x18x18xf32, #tpu.memory_space<vmem>>, vector<4x1x18xf32>,
    %cst_5 = arith.constant 0.000000e+00 : f32
    %4 = vector.broadcast %cst_5 : f32 to vector<4x16x1xf32>
    %c0_6 = arith.constant 0 : index
    %c1 = arith.constant 1 : index
    %c0_7 = arith.constant 0 : index
    %5 = vector.load %arg7[%c0_6, %c1, %c0_7] : memref<4x18x18xf32, #tpu.memory_space<vmem>>, vector<4x16x1xf32>
    tpu.vector_store %arg7[%c0_6, %c1, %c0_7], %4 {strides = array<i32>} : memref<4x18x18xf32, #tpu.memory_space<vmem>>, vector<4x16x1xf32>,
    %cst_8 = arith.constant 0.000000e+00 : f32
    %6 = vector.broadcast %cst_8 : f32 to vector<4x16x1xf32>
    %c0_9 = arith.constant 0 : index
    %c1_10 = arith.constant 1 : index
    %c17_11 = arith.constant 17 : index
    %7 = vector.load %arg7[%c0_9, %c1_10, %c17_11] : memref<4x18x18xf32, #tpu.memory_space<vmem>>, vector<4x16x1xf32>
    tpu.vector_store %arg7[%c0_9, %c1_10, %c17_11], %6 {strides = array<i32>} : memref<4x18x18xf32, #tpu.memory_space<vmem>>, vector<4x16x1xf32>,
    %c0_12 = arith.constant 0 : index
    %c0_13 = arith.constant 0 : index
    %c0_14 = arith.constant 0 : index
    %8 = vector.load %arg1[%c0_12, %c0_13, %c0_14] : memref<4x16x16xf32, #tpu.memory_space<vmem>>, vector<4x16x16xf32>
    %c0_15 = arith.constant 0 : index
    %c1_16 = arith.constant 1 : index
    %c1_17 = arith.constant 1 : index
    %9 = vector.load %arg7[%c0_15, %c1_16, %c1_17] : memref<4x18x18xf32, #tpu.memory_space<vmem>>, vector<4x16x16xf32>
    tpu.vector_store %arg7[%c0_15, %c1_16, %c1_17], %8 {strides = array<i32>} : memref<4x18x18xf32, #tpu.memory_space<vmem>>, vector<4x16x16xf32>,
    %c0_18 = arith.constant 0 : index
    %c0_19 = arith.constant 0 : index
    %c0_20 = arith.constant 0 : index
    %10 = vector.load %arg7[%c0_18, %c0_19, %c0_20] : memref<4x18x18xf32, #tpu.memory_space<vmem>>, vector<4x18x16xf32>
    %c0_21 = arith.constant 0 : index
    %c0_22 = arith.constant 0 : index
    %c1_23 = arith.constant 1 : index
    %11 = vector.load %arg7[%c0_21, %c0_22, %c1_23] : memref<4x18x18xf32, #tpu.memory_space<vmem>>, vector<4x18x16xf32>
    %12 = arith.maximumf %10, %11 : vector<4x18x16xf32>
    %c0_24 = arith.constant 0 : index
    %c0_25 = arith.constant 0 : index
    %c2 = arith.constant 2 : index
    %13 = vector.load %arg7[%c0_24, %c0_25, %c2] : memref<4x18x18xf32, #tpu.memory_space<vmem>>, vector<4x18x16xf32>
    %14 = arith.maximumf %12, %13 : vector<4x18x16xf32>
    %15 = vector.extract_strided_slice %14 {offsets = [0, 0, 0], sizes = [4, 18, 1], strides = [1, 1, 1]} : vector<4x18x16xf32> to vector<4x18x1xf32>
    %c0_26 = arith.constant 0 : index
    %c0_27 = arith.constant 0 : index
    %c0_28 = arith.constant 0 : index
    %16 = vector.load %arg8[%c0_26, %c0_27, %c0_28] : memref<4x18x8xf32, #tpu.memory_space<vmem>>, vector<4x18x1xf32>
    tpu.vector_store %arg8[%c0_26, %c0_27, %c0_28], %15 {strides = array<i32>} : memref<4x18x8xf32, #tpu.memory_space<vmem>>, vector<4x18x1xf32>,
    %17 = vector.extract_strided_slice %14 {offsets = [0, 0, 2], sizes = [4, 18, 1], strides = [1, 1, 1]} : vector<4x18x16xf32> to vector<4x18x1xf32>
    %c0_29 = arith.constant 0 : index
    %c0_30 = arith.constant 0 : index
    %c1_31 = arith.constant 1 : index
    %18 = vector.load %arg8[%c0_29, %c0_30, %c1_31] : memref<4x18x8xf32, #tpu.memory_space<vmem>>, vector<4x18x1xf32>
    tpu.vector_store %arg8[%c0_29, %c0_30, %c1_31], %17 {strides = array<i32>} : memref<4x18x8xf32, #tpu.memory_space<vmem>>, vector<4x18x1xf32>,
    %19 = vector.extract_strided_slice %14 {offsets = [0, 0, 4], sizes = [4, 18, 1], strides = [1, 1, 1]} : vector<4x18x16xf32> to vector<4x18x1xf32>
    %c0_32 = arith.constant 0 : index
    %c0_33 = arith.constant 0 : index
    %c2_34 = arith.constant 2 : index
    %20 = vector.load %arg8[%c0_32, %c0_33, %c2_34] : memref<4x18x8xf32, #tpu.memory_space<vmem>>, vector<4x18x1xf32>
    tpu.vector_store %arg8[%c0_32, %c0_33, %c2_34], %19 {strides = array<i32>} : memref<4x18x8xf32, #tpu.memory_space<vmem>>, vector<4x18x1xf32>,
    %21 = vector.extract_strided_slice %14 {offsets = [0, 0, 6], sizes = [4, 18, 1], strides = [1, 1, 1]} : vector<4x18x16xf32> to vector<4x18x1xf32>
    %c0_35 = arith.constant 0 : index
    %c0_36 = arith.constant 0 : index
    %c3 = arith.constant 3 : index
    %22 = vector.load %arg8[%c0_35, %c0_36, %c3] : memref<4x18x8xf32, #tpu.memory_space<vmem>>, vector<4x18x1xf32>
    tpu.vector_store %arg8[%c0_35, %c0_36, %c3], %21 {strides = array<i32>} : memref<4x18x8xf32, #tpu.memory_space<vmem>>, vector<4x18x1xf32>,
    %23 = vector.extract_strided_slice %14 {offsets = [0, 0, 8], sizes = [4, 18, 1], strides = [1, 1, 1]} : vector<4x18x16xf32> to vector<4x18x1xf32>
    %c0_37 = arith.constant 0 : index
    %c0_38 = arith.constant 0 : index
    %c4 = arith.constant 4 : index
    %24 = vector.load %arg8[%c0_37, %c0_38, %c4] : memref<4x18x8xf32, #tpu.memory_space<vmem>>, vector<4x18x1xf32>
    tpu.vector_store %arg8[%c0_37, %c0_38, %c4], %23 {strides = array<i32>} : memref<4x18x8xf32, #tpu.memory_space<vmem>>, vector<4x18x1xf32>,
    %25 = vector.extract_strided_slice %14 {offsets = [0, 0, 10], sizes = [4, 18, 1], strides = [1, 1, 1]} : vector<4x18x16xf32> to vector<4x18x1xf32>
    %c0_39 = arith.constant 0 : index
    %c0_40 = arith.constant 0 : index
    %c5 = arith.constant 5 : index
    %26 = vector.load %arg8[%c0_39, %c0_40, %c5] : memref<4x18x8xf32, #tpu.memory_space<vmem>>, vector<4x18x1xf32>
    tpu.vector_store %arg8[%c0_39, %c0_40, %c5], %25 {strides = array<i32>} : memref<4x18x8xf32, #tpu.memory_space<vmem>>, vector<4x18x1xf32>,
    %27 = vector.extract_strided_slice %14 {offsets = [0, 0, 12], sizes = [4, 18, 1], strides = [1, 1, 1]} : vector<4x18x16xf32> to vector<4x18x1xf32>
    %c0_41 = arith.constant 0 : index
    %c0_42 = arith.constant 0 : index
    %c6 = arith.constant 6 : index
    %28 = vector.load %arg8[%c0_41, %c0_42, %c6] : memref<4x18x8xf32, #tpu.memory_space<vmem>>, vector<4x18x1xf32>
    tpu.vector_store %arg8[%c0_41, %c0_42, %c6], %27 {strides = array<i32>} : memref<4x18x8xf32, #tpu.memory_space<vmem>>, vector<4x18x1xf32>,
    %29 = vector.extract_strided_slice %14 {offsets = [0, 0, 14], sizes = [4, 18, 1], strides = [1, 1, 1]} : vector<4x18x16xf32> to vector<4x18x1xf32>
    %c0_43 = arith.constant 0 : index
    %c0_44 = arith.constant 0 : index
    %c7 = arith.constant 7 : index
    %30 = vector.load %arg8[%c0_43, %c0_44, %c7] : memref<4x18x8xf32, #tpu.memory_space<vmem>>, vector<4x18x1xf32>
    tpu.vector_store %arg8[%c0_43, %c0_44, %c7], %29 {strides = array<i32>} : memref<4x18x8xf32, #tpu.memory_space<vmem>>, vector<4x18x1xf32>,
    %c0_45 = arith.constant 0 : index
    %c0_46 = arith.constant 0 : index
    %c0_47 = arith.constant 0 : index
    %31 = vector.load %arg8[%c0_45, %c0_46, %c0_47] : memref<4x18x8xf32, #tpu.memory_space<vmem>>, vector<4x18x8xf32>
    %32 = vector.extract_strided_slice %31 {offsets = [0, 0, 0], sizes = [4, 1, 8], strides = [1, 1, 1]} : vector<4x18x8xf32> to vector<4x1x8xf32>
    %33 = vector.extract_strided_slice %31 {offsets = [0, 1, 0], sizes = [4, 1, 8], strides = [1, 1, 1]} : vector<4x18x8xf32> to vector<4x1x8xf32>
    %34 = arith.maximumf %32, %33 : vector<4x1x8xf32>
    %35 = vector.extract_strided_slice %31 {offsets = [0, 2, 0], sizes = [4, 1, 8], strides = [1, 1, 1]} : vector<4x18x8xf32> to vector<4x1x8xf32>
    %36 = arith.maximumf %34, %35 : vector<4x1x8xf32>
    %c0_48 = arith.constant 0 : index
    %c0_49 = arith.constant 0 : index
    %c0_50 = arith.constant 0 : index
    %37 = vector.load %arg4[%c0_48, %c0_49, %c0_50] : memref<4x8x8xf32, #tpu.memory_space<vmem>>, vector<4x1x8xf32>
    tpu.vector_store %arg4[%c0_48, %c0_49, %c0_50], %36 {strides = array<i32>} : memref<4x8x8xf32, #tpu.memory_space<vmem>>, vector<4x1x8xf32>,
    %38 = vector.extract_strided_slice %31 {offsets = [0, 2, 0], sizes = [4, 1, 8], strides = [1, 1, 1]} : vector<4x18x8xf32> to vector<4x1x8xf32>
    %39 = vector.extract_strided_slice %31 {offsets = [0, 3, 0], sizes = [4, 1, 8], strides = [1, 1, 1]} : vector<4x18x8xf32> to vector<4x1x8xf32>
    %40 = arith.maximumf %38, %39 : vector<4x1x8xf32>
    %41 = vector.extract_strided_slice %31 {offsets = [0, 4, 0], sizes = [4, 1, 8], strides = [1, 1, 1]} : vector<4x18x8xf32> to vector<4x1x8xf32>
    %42 = arith.maximumf %40, %41 : vector<4x1x8xf32>
    %c0_51 = arith.constant 0 : index
    %c1_52 = arith.constant 1 : index
    %c0_53 = arith.constant 0 : index
    %43 = vector.load %arg4[%c0_51, %c1_52, %c0_53] : memref<4x8x8xf32, #tpu.memory_space<vmem>>, vector<4x1x8xf32>
    tpu.vector_store %arg4[%c0_51, %c1_52, %c0_53], %42 {strides = array<i32>} : memref<4x8x8xf32, #tpu.memory_space<vmem>>, vector<4x1x8xf32>,
    %44 = vector.extract_strided_slice %31 {offsets = [0, 4, 0], sizes = [4, 1, 8], strides = [1, 1, 1]} : vector<4x18x8xf32> to vector<4x1x8xf32>
    %45 = vector.extract_strided_slice %31 {offsets = [0, 5, 0], sizes = [4, 1, 8], strides = [1, 1, 1]} : vector<4x18x8xf32> to vector<4x1x8xf32>
    %46 = arith.maximumf %44, %45 : vector<4x1x8xf32>
    %47 = vector.extract_strided_slice %31 {offsets = [0, 6, 0], sizes = [4, 1, 8], strides = [1, 1, 1]} : vector<4x18x8xf32> to vector<4x1x8xf32>
    %48 = arith.maximumf %46, %47 : vector<4x1x8xf32>
    %c0_54 = arith.constant 0 : index
    %c2_55 = arith.constant 2 : index
    %c0_56 = arith.constant 0 : index
    %49 = vector.load %arg4[%c0_54, %c2_55, %c0_56] : memref<4x8x8xf32, #tpu.memory_space<vmem>>, vector<4x1x8xf32>
    tpu.vector_store %arg4[%c0_54, %c2_55, %c0_56], %48 {strides = array<i32>} : memref<4x8x8xf32, #tpu.memory_space<vmem>>, vector<4x1x8xf32>,
    %50 = vector.extract_strided_slice %31 {offsets = [0, 6, 0], sizes = [4, 1, 8], strides = [1, 1, 1]} : vector<4x18x8xf32> to vector<4x1x8xf32>
    %51 = vector.extract_strided_slice %31 {offsets = [0, 7, 0], sizes = [4, 1, 8], strides = [1, 1, 1]} : vector<4x18x8xf32> to vector<4x1x8xf32>
    %52 = arith.maximumf %50, %51 : vector<4x1x8xf32>
    %53 = vector.extract_strided_slice %31 {offsets = [0, 8, 0], sizes = [4, 1, 8], strides = [1, 1, 1]} : vector<4x18x8xf32> to vector<4x1x8xf32>
    %54 = arith.maximumf %52, %53 : vector<4x1x8xf32>
    %c0_57 = arith.constant 0 : index
    %c3_58 = arith.constant 3 : index
    %c0_59 = arith.constant 0 : index
    %55 = vector.load %arg4[%c0_57, %c3_58, %c0_59] : memref<4x8x8xf32, #tpu.memory_space<vmem>>, vector<4x1x8xf32>
    tpu.vector_store %arg4[%c0_57, %c3_58, %c0_59], %54 {strides = array<i32>} : memref<4x8x8xf32, #tpu.memory_space<vmem>>, vector<4x1x8xf32>,
    %56 = vector.extract_strided_slice %31 {offsets = [0, 8, 0], sizes = [4, 1, 8], strides = [1, 1, 1]} : vector<4x18x8xf32> to vector<4x1x8xf32>
    %57 = vector.extract_strided_slice %31 {offsets = [0, 9, 0], sizes = [4, 1, 8], strides = [1, 1, 1]} : vector<4x18x8xf32> to vector<4x1x8xf32>
    %58 = arith.maximumf %56, %57 : vector<4x1x8xf32>
    %59 = vector.extract_strided_slice %31 {offsets = [0, 10, 0], sizes = [4, 1, 8], strides = [1, 1, 1]} : vector<4x18x8xf32> to vector<4x1x8xf32>
    %60 = arith.maximumf %58, %59 : vector<4x1x8xf32>
    %c0_60 = arith.constant 0 : index
    %c4_61 = arith.constant 4 : index
    %c0_62 = arith.constant 0 : index
    %61 = vector.load %arg4[%c0_60, %c4_61, %c0_62] : memref<4x8x8xf32, #tpu.memory_space<vmem>>, vector<4x1x8xf32>
    tpu.vector_store %arg4[%c0_60, %c4_61, %c0_62], %60 {strides = array<i32>} : memref<4x8x8xf32, #tpu.memory_space<vmem>>, vector<4x1x8xf32>,
    %62 = vector.extract_strided_slice %31 {offsets = [0, 10, 0], sizes = [4, 1, 8], strides = [1, 1, 1]} : vector<4x18x8xf32> to vector<4x1x8xf32>
    %63 = vector.extract_strided_slice %31 {offsets = [0, 11, 0], sizes = [4, 1, 8], strides = [1, 1, 1]} : vector<4x18x8xf32> to vector<4x1x8xf32>
    %64 = arith.maximumf %62, %63 : vector<4x1x8xf32>
    %65 = vector.extract_strided_slice %31 {offsets = [0, 12, 0], sizes = [4, 1, 8], strides = [1, 1, 1]} : vector<4x18x8xf32> to vector<4x1x8xf32>
    %66 = arith.maximumf %64, %65 : vector<4x1x8xf32>
    %c0_63 = arith.constant 0 : index
    %c5_64 = arith.constant 5 : index
    %c0_65 = arith.constant 0 : index
    %67 = vector.load %arg4[%c0_63, %c5_64, %c0_65] : memref<4x8x8xf32, #tpu.memory_space<vmem>>, vector<4x1x8xf32>
    tpu.vector_store %arg4[%c0_63, %c5_64, %c0_65], %66 {strides = array<i32>} : memref<4x8x8xf32, #tpu.memory_space<vmem>>, vector<4x1x8xf32>,
    %68 = vector.extract_strided_slice %31 {offsets = [0, 12, 0], sizes = [4, 1, 8], strides = [1, 1, 1]} : vector<4x18x8xf32> to vector<4x1x8xf32>
    %69 = vector.extract_strided_slice %31 {offsets = [0, 13, 0], sizes = [4, 1, 8], strides = [1, 1, 1]} : vector<4x18x8xf32> to vector<4x1x8xf32>
    %70 = arith.maximumf %68, %69 : vector<4x1x8xf32>
    %71 = vector.extract_strided_slice %31 {offsets = [0, 14, 0], sizes = [4, 1, 8], strides = [1, 1, 1]} : vector<4x18x8xf32> to vector<4x1x8xf32>
    %72 = arith.maximumf %70, %71 : vector<4x1x8xf32>
    %c0_66 = arith.constant 0 : index
    %c6_67 = arith.constant 6 : index
    %c0_68 = arith.constant 0 : index
    %73 = vector.load %arg4[%c0_66, %c6_67, %c0_68] : memref<4x8x8xf32, #tpu.memory_space<vmem>>, vector<4x1x8xf32>
    tpu.vector_store %arg4[%c0_66, %c6_67, %c0_68], %72 {strides = array<i32>} : memref<4x8x8xf32, #tpu.memory_space<vmem>>, vector<4x1x8xf32>,
    %74 = vector.extract_strided_slice %31 {offsets = [0, 14, 0], sizes = [4, 1, 8], strides = [1, 1, 1]} : vector<4x18x8xf32> to vector<4x1x8xf32>
    %75 = vector.extract_strided_slice %31 {offsets = [0, 15, 0], sizes = [4, 1, 8], strides = [1, 1, 1]} : vector<4x18x8xf32> to vector<4x1x8xf32>
    %76 = arith.maximumf %74, %75 : vector<4x1x8xf32>
    %77 = vector.extract_strided_slice %31 {offsets = [0, 16, 0], sizes = [4, 1, 8], strides = [1, 1, 1]} : vector<4x18x8xf32> to vector<4x1x8xf32>
    %78 = arith.maximumf %76, %77 : vector<4x1x8xf32>
    %c0_69 = arith.constant 0 : index
    %c7_70 = arith.constant 7 : index
    %c0_71 = arith.constant 0 : index
    %79 = vector.load %arg4[%c0_69, %c7_70, %c0_71] : memref<4x8x8xf32, #tpu.memory_space<vmem>>, vector<4x1x8xf32>
    tpu.vector_store %arg4[%c0_69, %c7_70, %c0_71], %78 {strides = array<i32>} : memref<4x8x8xf32, #tpu.memory_space<vmem>>, vector<4x1x8xf32>,
    %c0_72 = arith.constant 0 : index
    %c0_73 = arith.constant 0 : index
    %c0_74 = arith.constant 0 : index
    %80 = vector.load %arg2[%c0_72, %c0_73, %c0_74] : memref<4x16x16xf32, #tpu.memory_space<vmem>>, vector<4x16x16xf32>
    %c0_75 = arith.constant 0 : index
    %c1_76 = arith.constant 1 : index
    %c1_77 = arith.constant 1 : index
    %81 = vector.load %arg7[%c0_75, %c1_76, %c1_77] : memref<4x18x18xf32, #tpu.memory_space<vmem>>, vector<4x16x16xf32>
    tpu.vector_store %arg7[%c0_75, %c1_76, %c1_77], %80 {strides = array<i32>} : memref<4x18x18xf32, #tpu.memory_space<vmem>>, vector<4x16x16xf32>,
    %c0_78 = arith.constant 0 : index
    %c0_79 = arith.constant 0 : index
    %c0_80 = arith.constant 0 : index
    %82 = vector.load %arg7[%c0_78, %c0_79, %c0_80] : memref<4x18x18xf32, #tpu.memory_space<vmem>>, vector<4x18x16xf32>
    %c0_81 = arith.constant 0 : index
    %c0_82 = arith.constant 0 : index
    %c1_83 = arith.constant 1 : index
    %83 = vector.load %arg7[%c0_81, %c0_82, %c1_83] : memref<4x18x18xf32, #tpu.memory_space<vmem>>, vector<4x18x16xf32>
    %84 = arith.maximumf %82, %83 : vector<4x18x16xf32>
    %c0_84 = arith.constant 0 : index
    %c0_85 = arith.constant 0 : index
    %c2_86 = arith.constant 2 : index
    %85 = vector.load %arg7[%c0_84, %c0_85, %c2_86] : memref<4x18x18xf32, #tpu.memory_space<vmem>>, vector<4x18x16xf32>
    %86 = arith.maximumf %84, %85 : vector<4x18x16xf32>
    %87 = vector.extract_strided_slice %86 {offsets = [0, 0, 0], sizes = [4, 18, 1], strides = [1, 1, 1]} : vector<4x18x16xf32> to vector<4x18x1xf32>
    %c0_87 = arith.constant 0 : index
    %c0_88 = arith.constant 0 : index
    %c0_89 = arith.constant 0 : index
    %88 = vector.load %arg8[%c0_87, %c0_88, %c0_89] : memref<4x18x8xf32, #tpu.memory_space<vmem>>, vector<4x18x1xf32>
    tpu.vector_store %arg8[%c0_87, %c0_88, %c0_89], %87 {strides = array<i32>} : memref<4x18x8xf32, #tpu.memory_space<vmem>>, vector<4x18x1xf32>,
    %89 = vector.extract_strided_slice %86 {offsets = [0, 0, 2], sizes = [4, 18, 1], strides = [1, 1, 1]} : vector<4x18x16xf32> to vector<4x18x1xf32>
    %c0_90 = arith.constant 0 : index
    %c0_91 = arith.constant 0 : index
    %c1_92 = arith.constant 1 : index
    %90 = vector.load %arg8[%c0_90, %c0_91, %c1_92] : memref<4x18x8xf32, #tpu.memory_space<vmem>>, vector<4x18x1xf32>
    tpu.vector_store %arg8[%c0_90, %c0_91, %c1_92], %89 {strides = array<i32>} : memref<4x18x8xf32, #tpu.memory_space<vmem>>, vector<4x18x1xf32>,
    %91 = vector.extract_strided_slice %86 {offsets = [0, 0, 4], sizes = [4, 18, 1], strides = [1, 1, 1]} : vector<4x18x16xf32> to vector<4x18x1xf32>
    %c0_93 = arith.constant 0 : index
    %c0_94 = arith.constant 0 : index
    %c2_95 = arith.constant 2 : index
    %92 = vector.load %arg8[%c0_93, %c0_94, %c2_95] : memref<4x18x8xf32, #tpu.memory_space<vmem>>, vector<4x18x1xf32>
    tpu.vector_store %arg8[%c0_93, %c0_94, %c2_95], %91 {strides = array<i32>} : memref<4x18x8xf32, #tpu.memory_space<vmem>>, vector<4x18x1xf32>,
    %93 = vector.extract_strided_slice %86 {offsets = [0, 0, 6], sizes = [4, 18, 1], strides = [1, 1, 1]} : vector<4x18x16xf32> to vector<4x18x1xf32>
    %c0_96 = arith.constant 0 : index
    %c0_97 = arith.constant 0 : index
    %c3_98 = arith.constant 3 : index
    %94 = vector.load %arg8[%c0_96, %c0_97, %c3_98] : memref<4x18x8xf32, #tpu.memory_space<vmem>>, vector<4x18x1xf32>
    tpu.vector_store %arg8[%c0_96, %c0_97, %c3_98], %93 {strides = array<i32>} : memref<4x18x8xf32, #tpu.memory_space<vmem>>, vector<4x18x1xf32>,
    %95 = vector.extract_strided_slice %86 {offsets = [0, 0, 8], sizes = [4, 18, 1], strides = [1, 1, 1]} : vector<4x18x16xf32> to vector<4x18x1xf32>
    %c0_99 = arith.constant 0 : index
    %c0_100 = arith.constant 0 : index
    %c4_101 = arith.constant 4 : index
    %96 = vector.load %arg8[%c0_99, %c0_100, %c4_101] : memref<4x18x8xf32, #tpu.memory_space<vmem>>, vector<4x18x1xf32>
    tpu.vector_store %arg8[%c0_99, %c0_100, %c4_101], %95 {strides = array<i32>} : memref<4x18x8xf32, #tpu.memory_space<vmem>>, vector<4x18x1xf32>,
    %97 = vector.extract_strided_slice %86 {offsets = [0, 0, 10], sizes = [4, 18, 1], strides = [1, 1, 1]} : vector<4x18x16xf32> to vector<4x18x1xf32>
    %c0_102 = arith.constant 0 : index
    %c0_103 = arith.constant 0 : index
    %c5_104 = arith.constant 5 : index
    %98 = vector.load %arg8[%c0_102, %c0_103, %c5_104] : memref<4x18x8xf32, #tpu.memory_space<vmem>>, vector<4x18x1xf32>
    tpu.vector_store %arg8[%c0_102, %c0_103, %c5_104], %97 {strides = array<i32>} : memref<4x18x8xf32, #tpu.memory_space<vmem>>, vector<4x18x1xf32>,
    %99 = vector.extract_strided_slice %86 {offsets = [0, 0, 12], sizes = [4, 18, 1], strides = [1, 1, 1]} : vector<4x18x16xf32> to vector<4x18x1xf32>
    %c0_105 = arith.constant 0 : index
    %c0_106 = arith.constant 0 : index
    %c6_107 = arith.constant 6 : index
    %100 = vector.load %arg8[%c0_105, %c0_106, %c6_107] : memref<4x18x8xf32, #tpu.memory_space<vmem>>, vector<4x18x1xf32>
    tpu.vector_store %arg8[%c0_105, %c0_106, %c6_107], %99 {strides = array<i32>} : memref<4x18x8xf32, #tpu.memory_space<vmem>>, vector<4x18x1xf32>,
    %101 = vector.extract_strided_slice %86 {offsets = [0, 0, 14], sizes = [4, 18, 1], strides = [1, 1, 1]} : vector<4x18x16xf32> to vector<4x18x1xf32>
    %c0_108 = arith.constant 0 : index
    %c0_109 = arith.constant 0 : index
    %c7_110 = arith.constant 7 : index
    %102 = vector.load %arg8[%c0_108, %c0_109, %c7_110] : memref<4x18x8xf32, #tpu.memory_space<vmem>>, vector<4x18x1xf32>
    tpu.vector_store %arg8[%c0_108, %c0_109, %c7_110], %101 {strides = array<i32>} : memref<4x18x8xf32, #tpu.memory_space<vmem>>, vector<4x18x1xf32>,
    %c0_111 = arith.constant 0 : index
    %c0_112 = arith.constant 0 : index
    %c0_113 = arith.constant 0 : index
    %103 = vector.load %arg8[%c0_111, %c0_112, %c0_113] : memref<4x18x8xf32, #tpu.memory_space<vmem>>, vector<4x18x8xf32>
    %104 = vector.extract_strided_slice %103 {offsets = [0, 0, 0], sizes = [4, 1, 8], strides = [1, 1, 1]} : vector<4x18x8xf32> to vector<4x1x8xf32>
    %105 = vector.extract_strided_slice %103 {offsets = [0, 1, 0], sizes = [4, 1, 8], strides = [1, 1, 1]} : vector<4x18x8xf32> to vector<4x1x8xf32>
    %106 = arith.maximumf %104, %105 : vector<4x1x8xf32>
    %107 = vector.extract_strided_slice %103 {offsets = [0, 2, 0], sizes = [4, 1, 8], strides = [1, 1, 1]} : vector<4x18x8xf32> to vector<4x1x8xf32>
    %108 = arith.maximumf %106, %107 : vector<4x1x8xf32>
    %c0_114 = arith.constant 0 : index
    %c0_115 = arith.constant 0 : index
    %c0_116 = arith.constant 0 : index
    %109 = vector.load %arg5[%c0_114, %c0_115, %c0_116] : memref<4x8x8xf32, #tpu.memory_space<vmem>>, vector<4x1x8xf32>
    tpu.vector_store %arg5[%c0_114, %c0_115, %c0_116], %108 {strides = array<i32>} : memref<4x8x8xf32, #tpu.memory_space<vmem>>, vector<4x1x8xf32>,
    %110 = vector.extract_strided_slice %103 {offsets = [0, 2, 0], sizes = [4, 1, 8], strides = [1, 1, 1]} : vector<4x18x8xf32> to vector<4x1x8xf32>
    %111 = vector.extract_strided_slice %103 {offsets = [0, 3, 0], sizes = [4, 1, 8], strides = [1, 1, 1]} : vector<4x18x8xf32> to vector<4x1x8xf32>
    %112 = arith.maximumf %110, %111 : vector<4x1x8xf32>
    %113 = vector.extract_strided_slice %103 {offsets = [0, 4, 0], sizes = [4, 1, 8], strides = [1, 1, 1]} : vector<4x18x8xf32> to vector<4x1x8xf32>
    %114 = arith.maximumf %112, %113 : vector<4x1x8xf32>
    %c0_117 = arith.constant 0 : index
    %c1_118 = arith.constant 1 : index
    %c0_119 = arith.constant 0 : index
    %115 = vector.load %arg5[%c0_117, %c1_118, %c0_119] : memref<4x8x8xf32, #tpu.memory_space<vmem>>, vector<4x1x8xf32>
    tpu.vector_store %arg5[%c0_117, %c1_118, %c0_119], %114 {strides = array<i32>} : memref<4x8x8xf32, #tpu.memory_space<vmem>>, vector<4x1x8xf32>,
    %116 = vector.extract_strided_slice %103 {offsets = [0, 4, 0], sizes = [4, 1, 8], strides = [1, 1, 1]} : vector<4x18x8xf32> to vector<4x1x8xf32>
    %117 = vector.extract_strided_slice %103 {offsets = [0, 5, 0], sizes = [4, 1, 8], strides = [1, 1, 1]} : vector<4x18x8xf32> to vector<4x1x8xf32>
    %118 = arith.maximumf %116, %117 : vector<4x1x8xf32>
    %119 = vector.extract_strided_slice %103 {offsets = [0, 6, 0], sizes = [4, 1, 8], strides = [1, 1, 1]} : vector<4x18x8xf32> to vector<4x1x8xf32>
    %120 = arith.maximumf %118, %119 : vector<4x1x8xf32>
    %c0_120 = arith.constant 0 : index
    %c2_121 = arith.constant 2 : index
    %c0_122 = arith.constant 0 : index
    %121 = vector.load %arg5[%c0_120, %c2_121, %c0_122] : memref<4x8x8xf32, #tpu.memory_space<vmem>>, vector<4x1x8xf32>
    tpu.vector_store %arg5[%c0_120, %c2_121, %c0_122], %120 {strides = array<i32>} : memref<4x8x8xf32, #tpu.memory_space<vmem>>, vector<4x1x8xf32>,
    %122 = vector.extract_strided_slice %103 {offsets = [0, 6, 0], sizes = [4, 1, 8], strides = [1, 1, 1]} : vector<4x18x8xf32> to vector<4x1x8xf32>
    %123 = vector.extract_strided_slice %103 {offsets = [0, 7, 0], sizes = [4, 1, 8], strides = [1, 1, 1]} : vector<4x18x8xf32> to vector<4x1x8xf32>
    %124 = arith.maximumf %122, %123 : vector<4x1x8xf32>
    %125 = vector.extract_strided_slice %103 {offsets = [0, 8, 0], sizes = [4, 1, 8], strides = [1, 1, 1]} : vector<4x18x8xf32> to vector<4x1x8xf32>
    %126 = arith.maximumf %124, %125 : vector<4x1x8xf32>
    %c0_123 = arith.constant 0 : index
    %c3_124 = arith.constant 3 : index
    %c0_125 = arith.constant 0 : index
    %127 = vector.load %arg5[%c0_123, %c3_124, %c0_125] : memref<4x8x8xf32, #tpu.memory_space<vmem>>, vector<4x1x8xf32>
    tpu.vector_store %arg5[%c0_123, %c3_124, %c0_125], %126 {strides = array<i32>} : memref<4x8x8xf32, #tpu.memory_space<vmem>>, vector<4x1x8xf32>,
    %128 = vector.extract_strided_slice %103 {offsets = [0, 8, 0], sizes = [4, 1, 8], strides = [1, 1, 1]} : vector<4x18x8xf32> to vector<4x1x8xf32>
    %129 = vector.extract_strided_slice %103 {offsets = [0, 9, 0], sizes = [4, 1, 8], strides = [1, 1, 1]} : vector<4x18x8xf32> to vector<4x1x8xf32>
    %130 = arith.maximumf %128, %129 : vector<4x1x8xf32>
    %131 = vector.extract_strided_slice %103 {offsets = [0, 10, 0], sizes = [4, 1, 8], strides = [1, 1, 1]} : vector<4x18x8xf32> to vector<4x1x8xf32>
    %132 = arith.maximumf %130, %131 : vector<4x1x8xf32>
    %c0_126 = arith.constant 0 : index
    %c4_127 = arith.constant 4 : index
    %c0_128 = arith.constant 0 : index
    %133 = vector.load %arg5[%c0_126, %c4_127, %c0_128] : memref<4x8x8xf32, #tpu.memory_space<vmem>>, vector<4x1x8xf32>
    tpu.vector_store %arg5[%c0_126, %c4_127, %c0_128], %132 {strides = array<i32>} : memref<4x8x8xf32, #tpu.memory_space<vmem>>, vector<4x1x8xf32>,
    %134 = vector.extract_strided_slice %103 {offsets = [0, 10, 0], sizes = [4, 1, 8], strides = [1, 1, 1]} : vector<4x18x8xf32> to vector<4x1x8xf32>
    %135 = vector.extract_strided_slice %103 {offsets = [0, 11, 0], sizes = [4, 1, 8], strides = [1, 1, 1]} : vector<4x18x8xf32> to vector<4x1x8xf32>
    %136 = arith.maximumf %134, %135 : vector<4x1x8xf32>
    %137 = vector.extract_strided_slice %103 {offsets = [0, 12, 0], sizes = [4, 1, 8], strides = [1, 1, 1]} : vector<4x18x8xf32> to vector<4x1x8xf32>
    %138 = arith.maximumf %136, %137 : vector<4x1x8xf32>
    %c0_129 = arith.constant 0 : index
    %c5_130 = arith.constant 5 : index
    %c0_131 = arith.constant 0 : index
    %139 = vector.load %arg5[%c0_129, %c5_130, %c0_131] : memref<4x8x8xf32, #tpu.memory_space<vmem>>, vector<4x1x8xf32>
    tpu.vector_store %arg5[%c0_129, %c5_130, %c0_131], %138 {strides = array<i32>} : memref<4x8x8xf32, #tpu.memory_space<vmem>>, vector<4x1x8xf32>,
    %140 = vector.extract_strided_slice %103 {offsets = [0, 12, 0], sizes = [4, 1, 8], strides = [1, 1, 1]} : vector<4x18x8xf32> to vector<4x1x8xf32>
    %141 = vector.extract_strided_slice %103 {offsets = [0, 13, 0], sizes = [4, 1, 8], strides = [1, 1, 1]} : vector<4x18x8xf32> to vector<4x1x8xf32>
    %142 = arith.maximumf %140, %141 : vector<4x1x8xf32>
    %143 = vector.extract_strided_slice %103 {offsets = [0, 14, 0], sizes = [4, 1, 8], strides = [1, 1, 1]} : vector<4x18x8xf32> to vector<4x1x8xf32>
    %144 = arith.maximumf %142, %143 : vector<4x1x8xf32>
    %c0_132 = arith.constant 0 : index
    %c6_133 = arith.constant 6 : index
    %c0_134 = arith.constant 0 : index
    %145 = vector.load %arg5[%c0_132, %c6_133, %c0_134] : memref<4x8x8xf32, #tpu.memory_space<vmem>>, vector<4x1x8xf32>
    tpu.vector_store %arg5[%c0_132, %c6_133, %c0_134], %144 {strides = array<i32>} : memref<4x8x8xf32, #tpu.memory_space<vmem>>, vector<4x1x8xf32>,
    %146 = vector.extract_strided_slice %103 {offsets = [0, 14, 0], sizes = [4, 1, 8], strides = [1, 1, 1]} : vector<4x18x8xf32> to vector<4x1x8xf32>
    %147 = vector.extract_strided_slice %103 {offsets = [0, 15, 0], sizes = [4, 1, 8], strides = [1, 1, 1]} : vector<4x18x8xf32> to vector<4x1x8xf32>
    %148 = arith.maximumf %146, %147 : vector<4x1x8xf32>
    %149 = vector.extract_strided_slice %103 {offsets = [0, 16, 0], sizes = [4, 1, 8], strides = [1, 1, 1]} : vector<4x18x8xf32> to vector<4x1x8xf32>
    %150 = arith.maximumf %148, %149 : vector<4x1x8xf32>
    %c0_135 = arith.constant 0 : index
    %c7_136 = arith.constant 7 : index
    %c0_137 = arith.constant 0 : index
    %151 = vector.load %arg5[%c0_135, %c7_136, %c0_137] : memref<4x8x8xf32, #tpu.memory_space<vmem>>, vector<4x1x8xf32>
    tpu.vector_store %arg5[%c0_135, %c7_136, %c0_137], %150 {strides = array<i32>} : memref<4x8x8xf32, #tpu.memory_space<vmem>>, vector<4x1x8xf32>,
    %c0_138 = arith.constant 0 : index
    %c0_139 = arith.constant 0 : index
    %c0_140 = arith.constant 0 : index
    %152 = vector.load %arg3[%c0_138, %c0_139, %c0_140] : memref<4x16x16xf32, #tpu.memory_space<vmem>>, vector<4x16x16xf32>
    %c0_141 = arith.constant 0 : index
    %c1_142 = arith.constant 1 : index
    %c1_143 = arith.constant 1 : index
    %153 = vector.load %arg7[%c0_141, %c1_142, %c1_143] : memref<4x18x18xf32, #tpu.memory_space<vmem>>, vector<4x16x16xf32>
    tpu.vector_store %arg7[%c0_141, %c1_142, %c1_143], %152 {strides = array<i32>} : memref<4x18x18xf32, #tpu.memory_space<vmem>>, vector<4x16x16xf32>,
    %c0_144 = arith.constant 0 : index
    %c0_145 = arith.constant 0 : index
    %c0_146 = arith.constant 0 : index
    %154 = vector.load %arg7[%c0_144, %c0_145, %c0_146] : memref<4x18x18xf32, #tpu.memory_space<vmem>>, vector<4x18x16xf32>
    %c0_147 = arith.constant 0 : index
    %c0_148 = arith.constant 0 : index
    %c1_149 = arith.constant 1 : index
    %155 = vector.load %arg7[%c0_147, %c0_148, %c1_149] : memref<4x18x18xf32, #tpu.memory_space<vmem>>, vector<4x18x16xf32>
    %156 = arith.maximumf %154, %155 : vector<4x18x16xf32>
    %c0_150 = arith.constant 0 : index
    %c0_151 = arith.constant 0 : index
    %c2_152 = arith.constant 2 : index
    %157 = vector.load %arg7[%c0_150, %c0_151, %c2_152] : memref<4x18x18xf32, #tpu.memory_space<vmem>>, vector<4x18x16xf32>
    %158 = arith.maximumf %156, %157 : vector<4x18x16xf32>
    %159 = vector.extract_strided_slice %158 {offsets = [0, 0, 0], sizes = [4, 18, 1], strides = [1, 1, 1]} : vector<4x18x16xf32> to vector<4x18x1xf32>
    %c0_153 = arith.constant 0 : index
    %c0_154 = arith.constant 0 : index
    %c0_155 = arith.constant 0 : index
    %160 = vector.load %arg8[%c0_153, %c0_154, %c0_155] : memref<4x18x8xf32, #tpu.memory_space<vmem>>, vector<4x18x1xf32>
    tpu.vector_store %arg8[%c0_153, %c0_154, %c0_155], %159 {strides = array<i32>} : memref<4x18x8xf32, #tpu.memory_space<vmem>>, vector<4x18x1xf32>,
    %161 = vector.extract_strided_slice %158 {offsets = [0, 0, 2], sizes = [4, 18, 1], strides = [1, 1, 1]} : vector<4x18x16xf32> to vector<4x18x1xf32>
    %c0_156 = arith.constant 0 : index
    %c0_157 = arith.constant 0 : index
    %c1_158 = arith.constant 1 : index
    %162 = vector.load %arg8[%c0_156, %c0_157, %c1_158] : memref<4x18x8xf32, #tpu.memory_space<vmem>>, vector<4x18x1xf32>
    tpu.vector_store %arg8[%c0_156, %c0_157, %c1_158], %161 {strides = array<i32>} : memref<4x18x8xf32, #tpu.memory_space<vmem>>, vector<4x18x1xf32>,
    %163 = vector.extract_strided_slice %158 {offsets = [0, 0, 4], sizes = [4, 18, 1], strides = [1, 1, 1]} : vector<4x18x16xf32> to vector<4x18x1xf32>
    %c0_159 = arith.constant 0 : index
    %c0_160 = arith.constant 0 : index
    %c2_161 = arith.constant 2 : index
    %164 = vector.load %arg8[%c0_159, %c0_160, %c2_161] : memref<4x18x8xf32, #tpu.memory_space<vmem>>, vector<4x18x1xf32>
    tpu.vector_store %arg8[%c0_159, %c0_160, %c2_161], %163 {strides = array<i32>} : memref<4x18x8xf32, #tpu.memory_space<vmem>>, vector<4x18x1xf32>,
    %165 = vector.extract_strided_slice %158 {offsets = [0, 0, 6], sizes = [4, 18, 1], strides = [1, 1, 1]} : vector<4x18x16xf32> to vector<4x18x1xf32>
    %c0_162 = arith.constant 0 : index
    %c0_163 = arith.constant 0 : index
    %c3_164 = arith.constant 3 : index
    %166 = vector.load %arg8[%c0_162, %c0_163, %c3_164] : memref<4x18x8xf32, #tpu.memory_space<vmem>>, vector<4x18x1xf32>
    tpu.vector_store %arg8[%c0_162, %c0_163, %c3_164], %165 {strides = array<i32>} : memref<4x18x8xf32, #tpu.memory_space<vmem>>, vector<4x18x1xf32>,
    %167 = vector.extract_strided_slice %158 {offsets = [0, 0, 8], sizes = [4, 18, 1], strides = [1, 1, 1]} : vector<4x18x16xf32> to vector<4x18x1xf32>
    %c0_165 = arith.constant 0 : index
    %c0_166 = arith.constant 0 : index
    %c4_167 = arith.constant 4 : index
    %168 = vector.load %arg8[%c0_165, %c0_166, %c4_167] : memref<4x18x8xf32, #tpu.memory_space<vmem>>, vector<4x18x1xf32>
    tpu.vector_store %arg8[%c0_165, %c0_166, %c4_167], %167 {strides = array<i32>} : memref<4x18x8xf32, #tpu.memory_space<vmem>>, vector<4x18x1xf32>,
    %169 = vector.extract_strided_slice %158 {offsets = [0, 0, 10], sizes = [4, 18, 1], strides = [1, 1, 1]} : vector<4x18x16xf32> to vector<4x18x1xf32>
    %c0_168 = arith.constant 0 : index
    %c0_169 = arith.constant 0 : index
    %c5_170 = arith.constant 5 : index
    %170 = vector.load %arg8[%c0_168, %c0_169, %c5_170] : memref<4x18x8xf32, #tpu.memory_space<vmem>>, vector<4x18x1xf32>
    tpu.vector_store %arg8[%c0_168, %c0_169, %c5_170], %169 {strides = array<i32>} : memref<4x18x8xf32, #tpu.memory_space<vmem>>, vector<4x18x1xf32>,
    %171 = vector.extract_strided_slice %158 {offsets = [0, 0, 12], sizes = [4, 18, 1], strides = [1, 1, 1]} : vector<4x18x16xf32> to vector<4x18x1xf32>
    %c0_171 = arith.constant 0 : index
    %c0_172 = arith.constant 0 : index
    %c6_173 = arith.constant 6 : index
    %172 = vector.load %arg8[%c0_171, %c0_172, %c6_173] : memref<4x18x8xf32, #tpu.memory_space<vmem>>, vector<4x18x1xf32>
    tpu.vector_store %arg8[%c0_171, %c0_172, %c6_173], %171 {strides = array<i32>} : memref<4x18x8xf32, #tpu.memory_space<vmem>>, vector<4x18x1xf32>,
    %173 = vector.extract_strided_slice %158 {offsets = [0, 0, 14], sizes = [4, 18, 1], strides = [1, 1, 1]} : vector<4x18x16xf32> to vector<4x18x1xf32>
    %c0_174 = arith.constant 0 : index
    %c0_175 = arith.constant 0 : index
    %c7_176 = arith.constant 7 : index
    %174 = vector.load %arg8[%c0_174, %c0_175, %c7_176] : memref<4x18x8xf32, #tpu.memory_space<vmem>>, vector<4x18x1xf32>
    tpu.vector_store %arg8[%c0_174, %c0_175, %c7_176], %173 {strides = array<i32>} : memref<4x18x8xf32, #tpu.memory_space<vmem>>, vector<4x18x1xf32>,
    %c0_177 = arith.constant 0 : index
    %c0_178 = arith.constant 0 : index
    %c0_179 = arith.constant 0 : index
    %175 = vector.load %arg8[%c0_177, %c0_178, %c0_179] : memref<4x18x8xf32, #tpu.memory_space<vmem>>, vector<4x18x8xf32>
    %176 = vector.extract_strided_slice %175 {offsets = [0, 0, 0], sizes = [4, 1, 8], strides = [1, 1, 1]} : vector<4x18x8xf32> to vector<4x1x8xf32>
    %177 = vector.extract_strided_slice %175 {offsets = [0, 1, 0], sizes = [4, 1, 8], strides = [1, 1, 1]} : vector<4x18x8xf32> to vector<4x1x8xf32>
    %178 = arith.maximumf %176, %177 : vector<4x1x8xf32>
    %179 = vector.extract_strided_slice %175 {offsets = [0, 2, 0], sizes = [4, 1, 8], strides = [1, 1, 1]} : vector<4x18x8xf32> to vector<4x1x8xf32>
    %180 = arith.maximumf %178, %179 : vector<4x1x8xf32>
    %c0_180 = arith.constant 0 : index
    %c0_181 = arith.constant 0 : index
    %c0_182 = arith.constant 0 : index
    %181 = vector.load %arg6[%c0_180, %c0_181, %c0_182] : memref<4x8x8xf32, #tpu.memory_space<vmem>>, vector<4x1x8xf32>
    tpu.vector_store %arg6[%c0_180, %c0_181, %c0_182], %180 {strides = array<i32>} : memref<4x8x8xf32, #tpu.memory_space<vmem>>, vector<4x1x8xf32>,
    %182 = vector.extract_strided_slice %175 {offsets = [0, 2, 0], sizes = [4, 1, 8], strides = [1, 1, 1]} : vector<4x18x8xf32> to vector<4x1x8xf32>
    %183 = vector.extract_strided_slice %175 {offsets = [0, 3, 0], sizes = [4, 1, 8], strides = [1, 1, 1]} : vector<4x18x8xf32> to vector<4x1x8xf32>
    %184 = arith.maximumf %182, %183 : vector<4x1x8xf32>
    %185 = vector.extract_strided_slice %175 {offsets = [0, 4, 0], sizes = [4, 1, 8], strides = [1, 1, 1]} : vector<4x18x8xf32> to vector<4x1x8xf32>
    %186 = arith.maximumf %184, %185 : vector<4x1x8xf32>
    %c0_183 = arith.constant 0 : index
    %c1_184 = arith.constant 1 : index
    %c0_185 = arith.constant 0 : index
    %187 = vector.load %arg6[%c0_183, %c1_184, %c0_185] : memref<4x8x8xf32, #tpu.memory_space<vmem>>, vector<4x1x8xf32>
    tpu.vector_store %arg6[%c0_183, %c1_184, %c0_185], %186 {strides = array<i32>} : memref<4x8x8xf32, #tpu.memory_space<vmem>>, vector<4x1x8xf32>,
    %188 = vector.extract_strided_slice %175 {offsets = [0, 4, 0], sizes = [4, 1, 8], strides = [1, 1, 1]} : vector<4x18x8xf32> to vector<4x1x8xf32>
    %189 = vector.extract_strided_slice %175 {offsets = [0, 5, 0], sizes = [4, 1, 8], strides = [1, 1, 1]} : vector<4x18x8xf32> to vector<4x1x8xf32>
    %190 = arith.maximumf %188, %189 : vector<4x1x8xf32>
    %191 = vector.extract_strided_slice %175 {offsets = [0, 6, 0], sizes = [4, 1, 8], strides = [1, 1, 1]} : vector<4x18x8xf32> to vector<4x1x8xf32>
    %192 = arith.maximumf %190, %191 : vector<4x1x8xf32>
    %c0_186 = arith.constant 0 : index
    %c2_187 = arith.constant 2 : index
    %c0_188 = arith.constant 0 : index
    %193 = vector.load %arg6[%c0_186, %c2_187, %c0_188] : memref<4x8x8xf32, #tpu.memory_space<vmem>>, vector<4x1x8xf32>
    tpu.vector_store %arg6[%c0_186, %c2_187, %c0_188], %192 {strides = array<i32>} : memref<4x8x8xf32, #tpu.memory_space<vmem>>, vector<4x1x8xf32>,
    %194 = vector.extract_strided_slice %175 {offsets = [0, 6, 0], sizes = [4, 1, 8], strides = [1, 1, 1]} : vector<4x18x8xf32> to vector<4x1x8xf32>
    %195 = vector.extract_strided_slice %175 {offsets = [0, 7, 0], sizes = [4, 1, 8], strides = [1, 1, 1]} : vector<4x18x8xf32> to vector<4x1x8xf32>
    %196 = arith.maximumf %194, %195 : vector<4x1x8xf32>
    %197 = vector.extract_strided_slice %175 {offsets = [0, 8, 0], sizes = [4, 1, 8], strides = [1, 1, 1]} : vector<4x18x8xf32> to vector<4x1x8xf32>
    %198 = arith.maximumf %196, %197 : vector<4x1x8xf32>
    %c0_189 = arith.constant 0 : index
    %c3_190 = arith.constant 3 : index
    %c0_191 = arith.constant 0 : index
    %199 = vector.load %arg6[%c0_189, %c3_190, %c0_191] : memref<4x8x8xf32, #tpu.memory_space<vmem>>, vector<4x1x8xf32>
    tpu.vector_store %arg6[%c0_189, %c3_190, %c0_191], %198 {strides = array<i32>} : memref<4x8x8xf32, #tpu.memory_space<vmem>>, vector<4x1x8xf32>,
    %200 = vector.extract_strided_slice %175 {offsets = [0, 8, 0], sizes = [4, 1, 8], strides = [1, 1, 1]} : vector<4x18x8xf32> to vector<4x1x8xf32>
    %201 = vector.extract_strided_slice %175 {offsets = [0, 9, 0], sizes = [4, 1, 8], strides = [1, 1, 1]} : vector<4x18x8xf32> to vector<4x1x8xf32>
    %202 = arith.maximumf %200, %201 : vector<4x1x8xf32>
    %203 = vector.extract_strided_slice %175 {offsets = [0, 10, 0], sizes = [4, 1, 8], strides = [1, 1, 1]} : vector<4x18x8xf32> to vector<4x1x8xf32>
    %204 = arith.maximumf %202, %203 : vector<4x1x8xf32>
    %c0_192 = arith.constant 0 : index
    %c4_193 = arith.constant 4 : index
    %c0_194 = arith.constant 0 : index
    %205 = vector.load %arg6[%c0_192, %c4_193, %c0_194] : memref<4x8x8xf32, #tpu.memory_space<vmem>>, vector<4x1x8xf32>
    tpu.vector_store %arg6[%c0_192, %c4_193, %c0_194], %204 {strides = array<i32>} : memref<4x8x8xf32, #tpu.memory_space<vmem>>, vector<4x1x8xf32>,
    %206 = vector.extract_strided_slice %175 {offsets = [0, 10, 0], sizes = [4, 1, 8], strides = [1, 1, 1]} : vector<4x18x8xf32> to vector<4x1x8xf32>
    %207 = vector.extract_strided_slice %175 {offsets = [0, 11, 0], sizes = [4, 1, 8], strides = [1, 1, 1]} : vector<4x18x8xf32> to vector<4x1x8xf32>
    %208 = arith.maximumf %206, %207 : vector<4x1x8xf32>
    %209 = vector.extract_strided_slice %175 {offsets = [0, 12, 0], sizes = [4, 1, 8], strides = [1, 1, 1]} : vector<4x18x8xf32> to vector<4x1x8xf32>
    %210 = arith.maximumf %208, %209 : vector<4x1x8xf32>
    %c0_195 = arith.constant 0 : index
    %c5_196 = arith.constant 5 : index
    %c0_197 = arith.constant 0 : index
    %211 = vector.load %arg6[%c0_195, %c5_196, %c0_197] : memref<4x8x8xf32, #tpu.memory_space<vmem>>, vector<4x1x8xf32>
    tpu.vector_store %arg6[%c0_195, %c5_196, %c0_197], %210 {strides = array<i32>} : memref<4x8x8xf32, #tpu.memory_space<vmem>>, vector<4x1x8xf32>,
    %212 = vector.extract_strided_slice %175 {offsets = [0, 12, 0], sizes = [4, 1, 8], strides = [1, 1, 1]} : vector<4x18x8xf32> to vector<4x1x8xf32>
    %213 = vector.extract_strided_slice %175 {offsets = [0, 13, 0], sizes = [4, 1, 8], strides = [1, 1, 1]} : vector<4x18x8xf32> to vector<4x1x8xf32>
    %214 = arith.maximumf %212, %213 : vector<4x1x8xf32>
    %215 = vector.extract_strided_slice %175 {offsets = [0, 14, 0], sizes = [4, 1, 8], strides = [1, 1, 1]} : vector<4x18x8xf32> to vector<4x1x8xf32>
    %216 = arith.maximumf %214, %215 : vector<4x1x8xf32>
    %c0_198 = arith.constant 0 : index
    %c6_199 = arith.constant 6 : index
    %c0_200 = arith.constant 0 : index
    %217 = vector.load %arg6[%c0_198, %c6_199, %c0_200] : memref<4x8x8xf32, #tpu.memory_space<vmem>>, vector<4x1x8xf32>
    tpu.vector_store %arg6[%c0_198, %c6_199, %c0_200], %216 {strides = array<i32>} : memref<4x8x8xf32, #tpu.memory_space<vmem>>, vector<4x1x8xf32>,
    %218 = vector.extract_strided_slice %175 {offsets = [0, 14, 0], sizes = [4, 1, 8], strides = [1, 1, 1]} : vector<4x18x8xf32> to vector<4x1x8xf32>
    %219 = vector.extract_strided_slice %175 {offsets = [0, 15, 0], sizes = [4, 1, 8], strides = [1, 1, 1]} : vector<4x18x8xf32> to vector<4x1x8xf32>
    %220 = arith.maximumf %218, %219 : vector<4x1x8xf32>
    %221 = vector.extract_strided_slice %175 {offsets = [0, 16, 0], sizes = [4, 1, 8], strides = [1, 1, 1]} : vector<4x18x8xf32> to vector<4x1x8xf32>
    %222 = arith.maximumf %220, %221 : vector<4x1x8xf32>
    %c0_201 = arith.constant 0 : index
    %c7_202 = arith.constant 7 : index
    %c0_203 = arith.constant 0 : index
    %223 = vector.load %arg6[%c0_201, %c7_202, %c0_203] : memref<4x8x8xf32, #tpu.memory_space<vmem>>, vector<4x1x8xf32>
    tpu.vector_store %arg6[%c0_201, %c7_202, %c0_203], %222 {strides = array<i32>} : memref<4x8x8xf32, #tpu.memory_space<vmem>>, vector<4x1x8xf32>,
    return
  }
  func.func @transform_0(%arg0: i32) -> (i32, i32, i32) {
    %c0_i32 = arith.constant 0 : i32
    %c0_i32_0 = arith.constant 0 : i32
    %c0_i32_1 = arith.constant 0 : i32
    return %arg0, %c0_i32, %c0_i32_0 : i32, i32, i32
  }
  func.func @transform_1(%arg0: i32) -> (i32, i32, i32) {
    %c0_i32 = arith.constant 0 : i32
    %c0_i32_0 = arith.constant 0 : i32
    %c0_i32_1 = arith.constant 0 : i32
    return %arg0, %c0_i32, %c0_i32_0 : i32, i32, i32
  }
  func.func @transform_2(%arg0: i32) -> (i32, i32, i32) {
    %c0_i32 = arith.constant 0 : i32
    %c0_i32_0 = arith.constant 0 : i32
    %c0_i32_1 = arith.constant 0 : i32
    return %arg0, %c0_i32, %c0_i32_0 : i32, i32, i32
  }
  func.func @transform_3(%arg0: i32) -> (i32, i32, i32) {
    %c0_i32 = arith.constant 0 : i32
    %c0_i32_0 = arith.constant 0 : i32
    %c0_i32_1 = arith.constant 0 : i32
    return %arg0, %c0_i32, %c0_i32_0 : i32, i32, i32
  }
  func.func @transform_4(%arg0: i32) -> (i32, i32, i32) {
    %c0_i32 = arith.constant 0 : i32
    %c0_i32_0 = arith.constant 0 : i32
    %c0_i32_1 = arith.constant 0 : i32
    return %arg0, %c0_i32, %c0_i32_0 : i32, i32, i32
  }
  func.func @transform_5(%arg0: i32) -> (i32, i32, i32) {
    %c0_i32 = arith.constant 0 : i32
    %c0_i32_0 = arith.constant 0 : i32
    %c0_i32_1 = arith.constant 0 : i32
    return %arg0, %c0_i32, %c0_i32_0 : i32, i32, i32
  }
}

</mosaic_0001>

<llo_original>
// kernel: tpu_custom_call.1
$region0: #{tpu_custom_call.1}
  #allocation0 [shape = 'u32[]', space=smem, size = 0x4, offset = 0x4, fixed_abs, tag = 'smem constant byte address 0x4 - core index']
  #allocation1 [shape = 'u32[144,128]{1,0:T(1,128)}', space=vmem, size = 0x12000, scoped, tag = 'internal scratch']
  #allocation2 [shape = 'f32[4,18,18]{2,1,0:T(8,128)}', space=vmem, size = 0xc000, scoped, tag = 'scratch operand']
  #allocation3 [shape = 'f32[4,18,8]{2,1,0:T(8,128)}', space=vmem, size = 0xc000, scoped, tag = 'scratch operand']
  %s0 = inlined_call_operand.hbm [shape: f32[8,16,16], index: 0, kind: input, shape index: {}]
  %s1 = inlined_call_operand.hbm [shape: f32[8,16,16], index: 1, kind: input, shape index: {}]
  %s2 = inlined_call_operand.hbm [shape: f32[8,16,16], index: 2, kind: input, shape index: {}]
  %s3 = inlined_call_operand.hbm [shape: f32[8,8,8], index: 3, kind: output, shape index: {0}]
  %s4 = inlined_call_operand.hbm [shape: f32[8,8,8], index: 4, kind: output, shape index: {1}]
  %s5 = inlined_call_operand.hbm [shape: f32[8,8,8], index: 5, kind: output, shape index: {2}]
  %6 = xla_tuple %s3, %s4, %s5
  %s7 = sld [smem:[#allocation0]]
  $region73: #{tpu_custom_call.1} parent=0
    _
  %s9 = ssub.s32 1, %s7
  %s10 = scalar_select 0, %s9, %s7
  $region1: #{tpu_custom_call.1} parent=0
    #allocation4 [shape = 'u8[65536]{0}', space=vmem, size = 0x10000, scoped, tag = 'input window, operand 0']
    #allocation5 [shape = 's32[2]{0}', space=sflag, size = 0x8, scoped, tag = 'scoped memory for tpu_custom_call.1']
    #allocation6 [shape = 's32[2]{0}', space=sflag, size = 0x8, scoped, tag = 'scoped memory for tpu_custom_call.1']
    #allocation7 [shape = 'u8[65536]{0}', space=vmem, size = 0x10000, scoped, tag = 'input window, operand 1']
    #allocation8 [shape = 's32[2]{0}', space=sflag, size = 0x8, scoped, tag = 'scoped memory for tpu_custom_call.1']
    #allocation9 [shape = 'u8[65536]{0}', space=vmem, size = 0x10000, scoped, tag = 'input window, operand 2']
    #allocation10 [shape = 'u8[32768]{0}', space=vmem, size = 0x8000, scoped, tag = 'output window, operand 0']
    #allocation11 [shape = 'u8[32768]{0}', space=vmem, size = 0x8000, scoped, tag = 'output window, operand 1']
    #allocation12 [shape = 's32[2]{0}', space=sflag, size = 0x8, scoped, tag = 'scoped memory for tpu_custom_call.1']
    #allocation13 [shape = 'u8[32768]{0}', space=vmem, size = 0x8000, scoped, tag = 'output window, operand 2']
    %11 = vsyncpa [#allocation5], 0
    %s12 = scalar_lea.sflag [#allocation5], 1
    %13 = vsyncpa %s12, 0
    %14 = vsyncpa [#allocation8], 0
    %s15 = scalar_lea.sflag [#allocation8], 1
    %16 = vsyncpa %s15, 0
    %17 = vsyncpa [#allocation6], 0
    %s18 = scalar_lea.sflag [#allocation6], 1
    %19 = vsyncpa %s18, 0
    %20 = vsyncpa [#allocation12], 0
    %s21 = scalar_lea.sflag [#allocation12], 1
    %22 = vsyncpa %s21, 0
    loop: start=0, step=1, limit=4
    $region2: #{tpu_custom_call.1} parent=1 // loop_pre_header
      _
    $region3: #{tpu_custom_call.1} parent=1 // loop_header
      %s24 = sphi 0, %s28
      %p25 = scmp.ge.s32.totalorder %s24, 4
      %s34 = sphi 0, %s36
      %s37 = sphi 0, %s34
      %s38 = sphi 0, %s37
      %s54 = sphi 0, %s38
      %s60 = sphi 0, %s62
      %s63 = sphi 0, %s60
      %s64 = sphi 0, %s63
      %s80 = sphi 0, %s64
      %s86 = sphi 0, %s88
      %s89 = sphi 0, %s86
      %s90 = sphi 0, %s89
      %s106 = sphi 0, %s90
      %s112 = sphi 0, %s114
      %s115 = sphi 0, %s112
      %s116 = sphi 0, %s115
      %s132 = sphi 0, %s116
      %s138 = sphi 0, %s140
      %s141 = sphi 0, %s138
      %s142 = sphi 0, %s141
      %s158 = sphi 0, %s142
      %s164 = sphi 0, %s166
      %s167 = sphi 0, %s164
      %s168 = sphi 0, %s167
      %s184 = sphi 0, %s168
    $region4: #{tpu_custom_call.1} parent=1 // loop_header_branch
      %27 = sbr.rel (%p25) target = $region8
    $region5: #{tpu_custom_call.1} parent=1 // loop_body
      %s29 = ssub.s32 %s24, 1
      %s30 = ssub.s32 %s24, 2
      %s31 = sadd.s32 %s24, 1
      %s32 = ssub.s32 %s24, %s31
      %p33 = scmp.eq.s32.totalorder %s32, 0
      %s35 = sadd.s32 %s34, 1
      %s36 = scalar_select %p33, %s34, %s35
      %p39 = pneg %p33
      %p40 = scmp.eq.s32.totalorder %s24, 1
      %p41 = por %p39, %p40
      %p42 = scmp.ne.s32.totalorder %s34, %s37
      %p43 = scmp.eq.s32.totalorder %s24, 0
      %p44 = por %p42, %p43
      %p45 = scmp.ne.s32.totalorder %s34, %s37
      %p46 = scmp.eq.s32.totalorder %s29, 1
      %p47 = por %p45, %p46
      %p48 = scmp.ne.s32.totalorder %s37, %s38
      %p49 = scmp.eq.s32.totalorder %s29, 0
      %p50 = por %p48, %p49
      %p51 = scmp.ne.s32.totalorder %s37, %s38
      %p52 = scmp.eq.s32.totalorder %s30, 1
      %p53 = por %p51, %p52
      %p55 = scmp.ne.s32.totalorder %s38, %s54
      %p56 = scmp.eq.s32.totalorder %s30, 0
      %p57 = por %p55, %p56
      %s58 = ssub.s32 %s24, %s31
      %p59 = scmp.eq.s32.totalorder %s58, 0
      %s61 = sadd.s32 %s60, 1
      %s62 = scalar_select %p59, %s60, %s61
      %p65 = pneg %p59
      %p66 = scmp.eq.s32.totalorder %s24, 1
      %p67 = por %p65, %p66
      %p68 = scmp.ne.s32.totalorder %s60, %s63
      %p69 = scmp.eq.s32.totalorder %s24, 0
      %p70 = por %p68, %p69
      %p71 = scmp.ne.s32.totalorder %s60, %s63
      %p72 = scmp.eq.s32.totalorder %s29, 1
      %p73 = por %p71, %p72
      %p74 = scmp.ne.s32.totalorder %s63, %s64
      %p75 = scmp.eq.s32.totalorder %s29, 0
      %p76 = por %p74, %p75
      %p77 = scmp.ne.s32.totalorder %s63, %s64
      %p78 = scmp.eq.s32.totalorder %s30, 1
      %p79 = por %p77, %p78
      %p81 = scmp.ne.s32.totalorder %s64, %s80
      %p82 = scmp.eq.s32.totalorder %s30, 0
      %p83 = por %p81, %p82
      %s84 = ssub.s32 %s24, %s31
      %p85 = scmp.eq.s32.totalorder %s84, 0
      %s87 = sadd.s32 %s86, 1
      %s88 = scalar_select %p85, %s86, %s87
      %p91 = pneg %p85
      %p92 = scmp.eq.s32.totalorder %s24, 1
      %p93 = por %p91, %p92
      %p94 = scmp.ne.s32.totalorder %s86, %s89
      %p95 = scmp.eq.s32.totalorder %s24, 0
      %p96 = por %p94, %p95
      %p97 = scmp.ne.s32.totalorder %s86, %s89
      %p98 = scmp.eq.s32.totalorder %s29, 1
      %p99 = por %p97, %p98
      %p100 = scmp.ne.s32.totalorder %s89, %s90
      %p101 = scmp.eq.s32.totalorder %s29, 0
      %p102 = por %p100, %p101
      %p103 = scmp.ne.s32.totalorder %s89, %s90
      %p104 = scmp.eq.s32.totalorder %s30, 1
      %p105 = por %p103, %p104
      %p107 = scmp.ne.s32.totalorder %s90, %s106
      %p108 = scmp.eq.s32.totalorder %s30, 0
      %p109 = por %p107, %p108
      %s110 = ssub.s32 %s24, %s31
      %p111 = scmp.eq.s32.totalorder %s110, 0
      %s113 = sadd.s32 %s112, 1
      %s114 = scalar_select %p111, %s112, %s113
      %p117 = pneg %p111
      %p118 = scmp.eq.s32.totalorder %s24, 1
      %p119 = por %p117, %p118
      %p120 = scmp.ne.s32.totalorder %s112, %s115
      %p121 = scmp.eq.s32.totalorder %s24, 0
      %p122 = por %p120, %p121
      %p123 = scmp.ne.s32.totalorder %s112, %s115
      %p124 = scmp.eq.s32.totalorder %s29, 1
      %p125 = por %p123, %p124
      %p126 = scmp.ne.s32.totalorder %s115, %s116
      %p127 = scmp.eq.s32.totalorder %s29, 0
      %p128 = por %p126, %p127
      %p129 = scmp.ne.s32.totalorder %s115, %s116
      %p130 = scmp.eq.s32.totalorder %s30, 1
      %p131 = por %p129, %p130
      %p133 = scmp.ne.s32.totalorder %s116, %s132
      %p134 = scmp.eq.s32.totalorder %s30, 0
      %p135 = por %p133, %p134
      %s136 = ssub.s32 %s24, %s31
      %p137 = scmp.eq.s32.totalorder %s136, 0
      %s139 = sadd.s32 %s138, 1
      %s140 = scalar_select %p137, %s138, %s139
      %p143 = pneg %p137
      %p144 = scmp.eq.s32.totalorder %s24, 1
      %p145 = por %p143, %p144
      %p146 = scmp.ne.s32.totalorder %s138, %s141
      %p147 = scmp.eq.s32.totalorder %s24, 0
      %p148 = por %p146, %p147
      %p149 = scmp.ne.s32.totalorder %s138, %s141
      %p150 = scmp.eq.s32.totalorder %s29, 1
      %p151 = por %p149, %p150
      %p152 = scmp.ne.s32.totalorder %s141, %s142
      %p153 = scmp.eq.s32.totalorder %s29, 0
      %p154 = por %p152, %p153
      %p155 = scmp.ne.s32.totalorder %s141, %s142
      %p156 = scmp.eq.s32.totalorder %s30, 1
      %p157 = por %p155, %p156
      %p159 = scmp.ne.s32.totalorder %s142, %s158
      %p160 = scmp.eq.s32.totalorder %s30, 0
      %p161 = por %p159, %p160
      %s162 = ssub.s32 %s24, %s31
      %p163 = scmp.eq.s32.totalorder %s162, 0
      %s165 = sadd.s32 %s164, 1
      %s166 = scalar_select %p163, %s164, %s165
      %p169 = pneg %p163
      %p170 = scmp.eq.s32.totalorder %s24, 1
      %p171 = por %p169, %p170
      %p172 = scmp.ne.s32.totalorder %s164, %s167
      %p173 = scmp.eq.s32.totalorder %s24, 0
      %p174 = por %p172, %p173
      %p175 = scmp.ne.s32.totalorder %s164, %s167
      %p176 = scmp.eq.s32.totalorder %s29, 1
      %p177 = por %p175, %p176
      %p178 = scmp.ne.s32.totalorder %s167, %s168
      %p179 = scmp.eq.s32.totalorder %s29, 0
      %p180 = por %p178, %p179
      %p181 = scmp.ne.s32.totalorder %s167, %s168
      %p182 = scmp.eq.s32.totalorder %s30, 1
      %p183 = por %p181, %p182
      %p185 = scmp.ne.s32.totalorder %s168, %s184
      %p186 = scmp.eq.s32.totalorder %s30, 0
      %p187 = por %p185, %p186
      %p188 = scmp.le.s32.totalorder 1, %s24
      %p189 = scmp.lt.s32.totalorder %s24, 3
      %p190 = pnand %p188, %p189
      %p191 = pneg %p190
      // Predicated region
      $region9: #{tpu_custom_call.1} parent=5 // pred_check
        _
      $region10: #{tpu_custom_call.1} parent=5 // pred_check_branch
        %193 = sbr.rel (%p190) target = $region12
      $region11: #{tpu_custom_call.1} parent=5 // pred_region
        %s194 = ssub.s32 %s24, 1
      $region12: #{tpu_custom_call.1} parent=5 // pred_fallthru
        _
      %p195 = scmp.lt.s32.totalorder %s24, 2
      // Predicated region
      $region13: #{tpu_custom_call.1} parent=5 // pred_check
        %p196 = pneg %p195
      $region14: #{tpu_custom_call.1} parent=5 // pred_check_branch
        %198 = sbr.rel (%p196) target = $region16
      $region15: #{tpu_custom_call.1} parent=5 // pred_region
        // Predicated region
        $region17: #{tpu_custom_call.1} parent=15 // pred_check
          %p199 = pneg %p44
        $region18: #{tpu_custom_call.1} parent=15 // pred_check_branch
          %201 = sbr.rel (%p199) target = $region20
        $region19: #{tpu_custom_call.1} parent=15 // pred_region
          %s202 = sand.u32 %s34, 1
          %s203 = scalar_lea.sflag [#allocation5], %s202
          %s204 = sand.u32 %s34, 1
          %s205 = smul.addr %s204, 64
          %s206 = scalar_lea.vmem [#allocation4], %s205
          %s207 = smul.u32 4, %s24
          %s209 = ssub.s32 1024, 1024
          %210 = vsyncadd %s203, %s209
          %s211 = smul.addr %s207, 2
          %s212 = smul.addr %s211, 128
          %s213 = scalar_lea.hbm %s0, %s212
          %s214 = sshll.u32 %s206, 4
          %s215 = int_to_ptr.vmem [resolvable:$true] %s214
          %220 = dma.hbm_to_vmem [thread:$0]  %s213, 1024, %s215, %s203, 128, 128, 8
        $region20: #{tpu_custom_call.1} parent=15 // pred_fallthru
          _
        // Predicated region
        $region21: #{tpu_custom_call.1} parent=15 // pred_check
          %p221 = pneg %p70
        $region22: #{tpu_custom_call.1} parent=15 // pred_check_branch
          %223 = sbr.rel (%p221) target = $region24
        $region23: #{tpu_custom_call.1} parent=15 // pred_region
          %s224 = sand.u32 %s24, 1
          %s225 = scalar_lea.sflag [#allocation8], %s224
          %s226 = sand.u32 %s60, 1
          %s227 = smul.addr %s226, 64
          %s228 = scalar_lea.vmem [#allocation7], %s227
          %s229 = smul.u32 4, %s24
          %s231 = ssub.s32 1024, 1024
          %232 = vsyncadd %s225, %s231
          %s233 = smul.addr %s229, 2
          %s234 = smul.addr %s233, 128
          %s235 = scalar_lea.hbm %s1, %s234
          %s236 = sshll.u32 %s228, 4
          %s237 = int_to_ptr.vmem [resolvable:$true] %s236
          %242 = dma.hbm_to_vmem [thread:$0]  %s235, 1024, %s237, %s225, 128, 128, 8
        $region24: #{tpu_custom_call.1} parent=15 // pred_fallthru
          _
        // Predicated region
        $region25: #{tpu_custom_call.1} parent=15 // pred_check
          %p243 = pneg %p96
        $region26: #{tpu_custom_call.1} parent=15 // pred_check_branch
          %245 = sbr.rel (%p243) target = $region28
        $region27: #{tpu_custom_call.1} parent=15 // pred_region
          %s246 = sand.u32 %s24, 1
          %s247 = scalar_lea.sflag [#allocation8], %s246
          %s248 = sand.u32 %s86, 1
          %s249 = smul.addr %s248, 64
          %s250 = scalar_lea.vmem [#allocation9], %s249
          %s251 = smul.u32 4, %s24
          %s253 = ssub.s32 1024, 1024
          %254 = vsyncadd %s247, %s253
          %s255 = smul.addr %s251, 2
          %s256 = smul.addr %s255, 128
          %s257 = scalar_lea.hbm %s2, %s256
          %s258 = sshll.u32 %s250, 4
          %s259 = int_to_ptr.vmem [resolvable:$true] %s258
          %264 = dma.hbm_to_vmem [thread:$0]  %s257, 1024, %s259, %s247, 128, 128, 8
        $region28: #{tpu_custom_call.1} parent=15 // pred_fallthru
          _
      $region16: #{tpu_custom_call.1} parent=5 // pred_fallthru
        _
      %p265 = scmp.le.s32.totalorder 1, %s24
      %p266 = scmp.lt.s32.totalorder %s24, 3
      %p267 = pnand %p265, %p266
      %p268 = pneg %p267
      // Predicated region
      $region29: #{tpu_custom_call.1} parent=5 // pred_check
        _
      $region30: #{tpu_custom_call.1} parent=5 // pred_check_branch
        %270 = sbr.rel (%p267) target = $region32
      $region31: #{tpu_custom_call.1} parent=5 // pred_region
        %s271 = ssub.s32 %s24, 1
        %s272 = sand.u32 %s37, 1
        %s273 = scalar_lea.sflag [#allocation5], %s272
        %s274 = sand.u32 %s37, 1
        %s275 = smul.addr %s274, 64
        %s276 = scalar_lea.vmem [#allocation4], %s275
        // Predicated region
        $region33: #{tpu_custom_call.1} parent=31 // pred_check
          %p277 = pneg %p50
        $region34: #{tpu_custom_call.1} parent=31 // pred_check_branch
          %279 = sbr.rel (%p277) target = $region36
        $region35: #{tpu_custom_call.1} parent=31 // pred_region
          %280 = dma.done %s273, 1024
        $region36: #{tpu_custom_call.1} parent=31 // pred_fallthru
          _
        %s281 = sand.u32 %s29, 1
        %s282 = scalar_lea.sflag [#allocation8], %s281
        %s283 = sand.u32 %s63, 1
        %s284 = smul.addr %s283, 64
        %s285 = scalar_lea.vmem [#allocation7], %s284
        // Predicated region
        $region37: #{tpu_custom_call.1} parent=31 // pred_check
          %p286 = pneg %p76
        $region38: #{tpu_custom_call.1} parent=31 // pred_check_branch
          %288 = sbr.rel (%p286) target = $region40
        $region39: #{tpu_custom_call.1} parent=31 // pred_region
          %289 = dma.done %s282, 1024
        $region40: #{tpu_custom_call.1} parent=31 // pred_fallthru
          _
        %s290 = sand.u32 %s29, 1
        %s291 = scalar_lea.sflag [#allocation8], %s290
        %s292 = sand.u32 %s89, 1
        %s293 = smul.addr %s292, 64
        %s294 = scalar_lea.vmem [#allocation9], %s293
        // Predicated region
        $region41: #{tpu_custom_call.1} parent=31 // pred_check
          %p295 = pneg %p102
        $region42: #{tpu_custom_call.1} parent=31 // pred_check_branch
          %297 = sbr.rel (%p295) target = $region44
        $region43: #{tpu_custom_call.1} parent=31 // pred_region
          %298 = dma.done %s291, 1024
        $region44: #{tpu_custom_call.1} parent=31 // pred_fallthru
          _
        %s299 = sand.u32 %s37, 1
        %s300 = scalar_lea.sflag [#allocation5], %s299
        %s301 = sand.u32 %s37, 1
        %s302 = smul.addr %s301, 64
        %s303 = scalar_lea.vmem [#allocation4], %s302
        %p304 = pneg %p50
        %p305 = pneg %p47
        %s306 = sand.u32 %s29, 1
        %s307 = scalar_lea.sflag [#allocation8], %s306
        %s308 = sand.u32 %s63, 1
        %s309 = smul.addr %s308, 64
        %s310 = scalar_lea.vmem [#allocation7], %s309
        %p311 = pneg %p76
        %p312 = pneg %p73
        %s313 = sand.u32 %s29, 1
        %s314 = scalar_lea.sflag [#allocation8], %s313
        %s315 = sand.u32 %s89, 1
        %s316 = smul.addr %s315, 64
        %s317 = scalar_lea.vmem [#allocation9], %s316
        %p318 = pneg %p102
        %p319 = pneg %p99
        %p320 = pneg %p128
        %p321 = pneg %p125
        %s322 = sand.u32 %s115, 1
        %s323 = scalar_lea.sflag [#allocation6], %s322
        %s324 = sand.u32 %s115, 1
        %s325 = smul.addr %s324, 32
        %s326 = scalar_lea.vmem [#allocation10], %s325
        %p327 = pneg %p154
        %p328 = pneg %p151
        %s329 = sand.u32 %s29, 1
        %s330 = scalar_lea.sflag [#allocation12], %s329
        %s331 = sand.u32 %s141, 1
        %s332 = smul.addr %s331, 32
        %s333 = scalar_lea.vmem [#allocation11], %s332
        %p334 = pneg %p180
        %p335 = pneg %p177
        %s336 = sand.u32 %s29, 1
        %s337 = scalar_lea.sflag [#allocation12], %s336
        %s338 = sand.u32 %s167, 1
        %s339 = smul.addr %s338, 32
        %s340 = scalar_lea.vmem [#allocation13], %s339
        %s341 = smul.u32 4, %s29
        %s342 = smul.u32 4, %s29
        %s343 = smul.u32 4, %s29
        %s344 = smul.u32 4, %s29
        %s345 = smul.u32 4, %s29
        %s346 = smul.u32 4, %s29
        %vm347 = vcmask 139264
        %348 = vst.msk [vmem:[#allocation2] sm:$0x1] %vm347, 0.0
        %349 = vst.msk [vmem:[#allocation2 + $0x18] sm:$0x1] %vm347, 0.0
        %350 = vst.msk [vmem:[#allocation2 + $0x30] sm:$0x1] %vm347, 0.0
        %351 = vst.msk [vmem:[#allocation2 + $0x48] sm:$0x1] %vm347, 0.0
        %352 = vst.msk [vmem:[#allocation2 + $0x11] sm:$0x1] %vm347, 0.0
        %353 = vst.msk [vmem:[#allocation2 + $0x29] sm:$0x1] %vm347, 0.0
        %354 = vst.msk [vmem:[#allocation2 + $0x41] sm:$0x1] %vm347, 0.0
        %355 = vst.msk [vmem:[#allocation2 + $0x59] sm:$0x1] %vm347, 0.0
        %vm356 = vcmask 7168
        %357 = vst.msk [vmem:[#allocation2 + $0x1] sm:$0xff] %vm356, 0.0
        %358 = vst.msk [vmem:[#allocation2 + $0x9] sm:$0xff] %vm356, 0.0
        %359 = vst.msk [vmem:[#allocation2 + $0x19] sm:$0xff] %vm356, 0.0
        %360 = vst.msk [vmem:[#allocation2 + $0x21] sm:$0xff] %vm356, 0.0
        %361 = vst.msk [vmem:[#allocation2 + $0x31] sm:$0xff] %vm356, 0.0
        %362 = vst.msk [vmem:[#allocation2 + $0x39] sm:$0xff] %vm356, 0.0
        %363 = vst.msk [vmem:[#allocation2 + $0x49] sm:$0xff] %vm356, 0.0
        %364 = vst.msk [vmem:[#allocation2 + $0x51] sm:$0xff] %vm356, 0.0
        %vm365 = vcmask 146568
        %366 = vst.msk [vmem:[#allocation2 + $0x1] sm:$0xff] %vm365, 0.0
        %367 = vst.msk [vmem:[#allocation2 + $0x9] sm:$0xff] %vm365, 0.0
        %368 = vst.msk [vmem:[#allocation2 + $0x19] sm:$0xff] %vm365, 0.0
        %369 = vst.msk [vmem:[#allocation2 + $0x21] sm:$0xff] %vm365, 0.0
        %370 = vst.msk [vmem:[#allocation2 + $0x31] sm:$0xff] %vm365, 0.0
        %371 = vst.msk [vmem:[#allocation2 + $0x39] sm:$0xff] %vm365, 0.0
        %372 = vst.msk [vmem:[#allocation2 + $0x49] sm:$0xff] %vm365, 0.0
        %373 = vst.msk [vmem:[#allocation2 + $0x51] sm:$0xff] %vm365, 0.0
        %v374 = vld [vmem:[%s276] sm:$0xff]
        %v375 = vld [vmem:[%s276 + $0x8] sm:$0xff]
        %v376 = vld [vmem:[%s276 + $0x10] sm:$0xff]
        %v377 = vld [vmem:[%s276 + $0x18] sm:$0xff]
        %v378 = vld [vmem:[%s276 + $0x20] sm:$0xff]
        %v379 = vld [vmem:[%s276 + $0x28] sm:$0xff]
        %v380 = vld [vmem:[%s276 + $0x30] sm:$0xff]
        %v381 = vld [vmem:[%s276 + $0x38] sm:$0xff]
        %390 = vrot.lane.b32.xlu0 %v374, 1
        %v391 = vpop.permute.xlu0 %390
        %392 = vrot.lane.b32.xlu0 %v375, 1
        %v393 = vpop.permute.xlu0 %392
        %394 = vrot.lane.b32.xlu0 %v376, 1
        %v395 = vpop.permute.xlu0 %394
        %396 = vrot.lane.b32.xlu0 %v377, 1
        %v397 = vpop.permute.xlu0 %396
        %398 = vrot.lane.b32.xlu0 %v378, 1
        %v399 = vpop.permute.xlu0 %398
        %400 = vrot.lane.b32.xlu0 %v379, 1
        %v401 = vpop.permute.xlu0 %400
        %402 = vrot.lane.b32.xlu0 %v380, 1
        %v403 = vpop.permute.xlu0 %402
        %404 = vrot.lane.b32.xlu0 %v381, 1
        %v405 = vpop.permute.xlu0 %404
        %vm414 = vcmask 138248
        %415 = vst.msk [vmem:[#allocation2 + $0x1] sm:$0xff] %vm414, %v391
        %416 = vst.msk [vmem:[#allocation2 + $0x9] sm:$0xff] %vm414, %v393
        %417 = vst.msk [vmem:[#allocation2 + $0x19] sm:$0xff] %vm414, %v395
        %418 = vst.msk [vmem:[#allocation2 + $0x21] sm:$0xff] %vm414, %v397
        %419 = vst.msk [vmem:[#allocation2 + $0x31] sm:$0xff] %vm414, %v399
        %420 = vst.msk [vmem:[#allocation2 + $0x39] sm:$0xff] %vm414, %v401
        %421 = vst.msk [vmem:[#allocation2 + $0x49] sm:$0xff] %vm414, %v403
        %422 = vst.msk [vmem:[#allocation2 + $0x51] sm:$0xff] %vm414, %v405
        %v423 = vld [vmem:[#allocation2] sm:$0xff]
        %v424 = vld [vmem:[#allocation2 + $0x8] sm:$0xff]
        %v425 = vld [vmem:[#allocation2 + $0x10] sm:$0x3]
        %v426 = vld [vmem:[#allocation2 + $0x18] sm:$0xff]
        %v427 = vld [vmem:[#allocation2 + $0x20] sm:$0xff]
        %v428 = vld [vmem:[#allocation2 + $0x28] sm:$0x3]
        %v429 = vld [vmem:[#allocation2 + $0x30] sm:$0xff]
        %v430 = vld [vmem:[#allocation2 + $0x38] sm:$0xff]
        %v431 = vld [vmem:[#allocation2 + $0x40] sm:$0x3]
        %v432 = vld [vmem:[#allocation2 + $0x48] sm:$0xff]
        %v433 = vld [vmem:[#allocation2 + $0x50] sm:$0xff]
        %v434 = vld [vmem:[#allocation2 + $0x58] sm:$0x3]
        %447 = vrot.lane.b32.xlu0 %v423, 127
        %v448 = vpop.permute.xlu0 %447
        %449 = vrot.lane.b32.xlu0 %v424, 127
        %v450 = vpop.permute.xlu0 %449
        %451 = vrot.lane.b32.xlu0 %v425, 127
        %v452 = vpop.permute.xlu0 %451
        %453 = vrot.lane.b32.xlu0 %v426, 127
        %v454 = vpop.permute.xlu0 %453
        %455 = vrot.lane.b32.xlu0 %v427, 127
        %v456 = vpop.permute.xlu0 %455
        %457 = vrot.lane.b32.xlu0 %v428, 127
        %v458 = vpop.permute.xlu0 %457
        %459 = vrot.lane.b32.xlu0 %v429, 127
        %v460 = vpop.permute.xlu0 %459
        %461 = vrot.lane.b32.xlu0 %v430, 127
        %v462 = vpop.permute.xlu0 %461
        %463 = vrot.lane.b32.xlu0 %v431, 127
        %v464 = vpop.permute.xlu0 %463
        %465 = vrot.lane.b32.xlu0 %v432, 127
        %v466 = vpop.permute.xlu0 %465
        %467 = vrot.lane.b32.xlu0 %v433, 127
        %v468 = vpop.permute.xlu0 %467
        %469 = vrot.lane.b32.xlu0 %v434, 127
        %v470 = vpop.permute.xlu0 %469
        %v483 = vmax.f32 %v423, %v448
        %v484 = vmax.f32 %v424, %v450
        %v485 = vmax.f32 %v425, %v452
        %v486 = vmax.f32 %v426, %v454
        %v487 = vmax.f32 %v427, %v456
        %v488 = vmax.f32 %v428, %v458
        %v489 = vmax.f32 %v429, %v460
        %v490 = vmax.f32 %v430, %v462
        %v491 = vmax.f32 %v431, %v464
        %v492 = vmax.f32 %v432, %v466
        %v493 = vmax.f32 %v433, %v468
        %v494 = vmax.f32 %v434, %v470
        %495 = vrot.lane.b32.xlu0 %v423, 126
        %v496 = vpop.permute.xlu0 %495
        %497 = vrot.lane.b32.xlu0 %v424, 126
        %v498 = vpop.permute.xlu0 %497
        %499 = vrot.lane.b32.xlu0 %v425, 126
        %v500 = vpop.permute.xlu0 %499
        %501 = vrot.lane.b32.xlu0 %v426, 126
        %v502 = vpop.permute.xlu0 %501
        %503 = vrot.lane.b32.xlu0 %v427, 126
        %v504 = vpop.permute.xlu0 %503
        %505 = vrot.lane.b32.xlu0 %v428, 126
        %v506 = vpop.permute.xlu0 %505
        %507 = vrot.lane.b32.xlu0 %v429, 126
        %v508 = vpop.permute.xlu0 %507
        %509 = vrot.lane.b32.xlu0 %v430, 126
        %v510 = vpop.permute.xlu0 %509
        %511 = vrot.lane.b32.xlu0 %v431, 126
        %v512 = vpop.permute.xlu0 %511
        %513 = vrot.lane.b32.xlu0 %v432, 126
        %v514 = vpop.permute.xlu0 %513
        %515 = vrot.lane.b32.xlu0 %v433, 126
        %v516 = vpop.permute.xlu0 %515
        %517 = vrot.lane.b32.xlu0 %v434, 126
        %v518 = vpop.permute.xlu0 %517
        %v531 = vmax.f32 %v483, %v496
        %v532 = vmax.f32 %v484, %v498
        %v533 = vmax.f32 %v485, %v500
        %v534 = vmax.f32 %v486, %v502
        %v535 = vmax.f32 %v487, %v504
        %v536 = vmax.f32 %v488, %v506
        %v537 = vmax.f32 %v489, %v508
        %v538 = vmax.f32 %v490, %v510
        %v539 = vmax.f32 %v491, %v512
        %v540 = vmax.f32 %v492, %v514
        %v541 = vmax.f32 %v493, %v516
        %v542 = vmax.f32 %v494, %v518
        %543 = vst.msk [vmem:[#allocation3] sm:$0xff] %vm356, %v531
        %544 = vst.msk [vmem:[#allocation3 + $0x8] sm:$0xff] %vm356, %v532
        %vm545 = vcmask 1024
        %546 = vst.msk [vmem:[#allocation3 + $0x10] sm:$0x3] %vm545, %v533
        %547 = vst.msk [vmem:[#allocation3 + $0x18] sm:$0xff] %vm356, %v534
        %548 = vst.msk [vmem:[#allocation3 + $0x20] sm:$0xff] %vm356, %v535
        %549 = vst.msk [vmem:[#allocation3 + $0x28] sm:$0x3] %vm545, %v536
        %550 = vst.msk [vmem:[#allocation3 + $0x30] sm:$0xff] %vm356, %v537
        %551 = vst.msk [vmem:[#allocation3 + $0x38] sm:$0xff] %vm356, %v538
        %552 = vst.msk [vmem:[#allocation3 + $0x40] sm:$0x3] %vm545, %v539
        %553 = vst.msk [vmem:[#allocation3 + $0x48] sm:$0xff] %vm356, %v540
        %554 = vst.msk [vmem:[#allocation3 + $0x50] sm:$0xff] %vm356, %v541
        %555 = vst.msk [vmem:[#allocation3 + $0x58] sm:$0x3] %vm545, %v542
        %568 = vrot.lane.b32.xlu0 %v531, 127
        %v569 = vpop.permute.xlu0 %568
        %570 = vrot.lane.b32.xlu0 %v532, 127
        %v571 = vpop.permute.xlu0 %570
        %572 = vrot.lane.b32.xlu0 %v533, 127
        %v573 = vpop.permute.xlu0 %572
        %574 = vrot.lane.b32.xlu0 %v534, 127
        %v575 = vpop.permute.xlu0 %574
        %576 = vrot.lane.b32.xlu0 %v535, 127
        %v577 = vpop.permute.xlu0 %576
        %578 = vrot.lane.b32.xlu0 %v536, 127
        %v579 = vpop.permute.xlu0 %578
        %580 = vrot.lane.b32.xlu0 %v537, 127
        %v581 = vpop.permute.xlu0 %580
        %582 = vrot.lane.b32.xlu0 %v538, 127
        %v583 = vpop.permute.xlu0 %582
        %584 = vrot.lane.b32.xlu0 %v539, 127
        %v585 = vpop.permute.xlu0 %584
        %586 = vrot.lane.b32.xlu0 %v540, 127
        %v587 = vpop.permute.xlu0 %586
        %588 = vrot.lane.b32.xlu0 %v541, 127
        %v589 = vpop.permute.xlu0 %588
        %590 = vrot.lane.b32.xlu0 %v542, 127
        %v591 = vpop.permute.xlu0 %590
        %vm604 = vcmask 15368
        %605 = vst.msk [vmem:[#allocation3] sm:$0xff] %vm604, %v569
        %606 = vst.msk [vmem:[#allocation3 + $0x8] sm:$0xff] %vm604, %v571
        %vm607 = vcmask 9224
        %608 = vst.msk [vmem:[#allocation3 + $0x10] sm:$0x3] %vm607, %v573
        %609 = vst.msk [vmem:[#allocation3 + $0x18] sm:$0xff] %vm604, %v575
        %610 = vst.msk [vmem:[#allocation3 + $0x20] sm:$0xff] %vm604, %v577
        %611 = vst.msk [vmem:[#allocation3 + $0x28] sm:$0x3] %vm607, %v579
        %612 = vst.msk [vmem:[#allocation3 + $0x30] sm:$0xff] %vm604, %v581
        %613 = vst.msk [vmem:[#allocation3 + $0x38] sm:$0xff] %vm604, %v583
        %614 = vst.msk [vmem:[#allocation3 + $0x40] sm:$0x3] %vm607, %v585
        %615 = vst.msk [vmem:[#allocation3 + $0x48] sm:$0xff] %vm604, %v587
        %616 = vst.msk [vmem:[#allocation3 + $0x50] sm:$0xff] %vm604, %v589
        %617 = vst.msk [vmem:[#allocation3 + $0x58] sm:$0x3] %vm607, %v591
        %618 = vrot.lane.b32.xlu0 %v531, 126
        %v619 = vpop.permute.xlu0 %618
        %620 = vrot.lane.b32.xlu0 %v532, 126
        %v621 = vpop.permute.xlu0 %620
        %622 = vrot.lane.b32.xlu0 %v533, 126
        %v623 = vpop.permute.xlu0 %622
        %624 = vrot.lane.b32.xlu0 %v534, 126
        %v625 = vpop.permute.xlu0 %624
        %626 = vrot.lane.b32.xlu0 %v535, 126
        %v627 = vpop.permute.xlu0 %626
        %628 = vrot.lane.b32.xlu0 %v536, 126
        %v629 = vpop.permute.xlu0 %628
        %630 = vrot.lane.b32.xlu0 %v537, 126
        %v631 = vpop.permute.xlu0 %630
        %632 = vrot.lane.b32.xlu0 %v538, 126
        %v633 = vpop.permute.xlu0 %632
        %634 = vrot.lane.b32.xlu0 %v539, 126
        %v635 = vpop.permute.xlu0 %634
        %636 = vrot.lane.b32.xlu0 %v540, 126
        %v637 = vpop.permute.xlu0 %636
        %638 = vrot.lane.b32.xlu0 %v541, 126
        %v639 = vpop.permute.xlu0 %638
        %640 = vrot.lane.b32.xlu0 %v542, 126
        %v641 = vpop.permute.xlu0 %640
        %vm654 = vcmask 23568
        %655 = vst.msk [vmem:[#allocation3] sm:$0xff] %vm654, %v619
        %656 = vst.msk [vmem:[#allocation3 + $0x8] sm:$0xff] %vm654, %v621
        %vm657 = vcmask 17424
        %658 = vst.msk [vmem:[#allocation3 + $0x10] sm:$0x3] %vm657, %v623
        %659 = vst.msk [vmem:[#allocation3 + $0x18] sm:$0xff] %vm654, %v625
        %660 = vst.msk [vmem:[#allocation3 + $0x20] sm:$0xff] %vm654, %v627
        %661 = vst.msk [vmem:[#allocation3 + $0x28] sm:$0x3] %vm657, %v629
        %662 = vst.msk [vmem:[#allocation3 + $0x30] sm:$0xff] %vm654, %v631
        %663 = vst.msk [vmem:[#allocation3 + $0x38] sm:$0xff] %vm654, %v633
        %664 = vst.msk [vmem:[#allocation3 + $0x40] sm:$0x3] %vm657, %v635
        %665 = vst.msk [vmem:[#allocation3 + $0x48] sm:$0xff] %vm654, %v637
        %666 = vst.msk [vmem:[#allocation3 + $0x50] sm:$0xff] %vm654, %v639
        %667 = vst.msk [vmem:[#allocation3 + $0x58] sm:$0x3] %vm657, %v641
        %668 = vrot.lane.b32.xlu0 %v531, 125
        %v669 = vpop.permute.xlu0 %668
        %670 = vrot.lane.b32.xlu0 %v532, 125
        %v671 = vpop.permute.xlu0 %670
        %672 = vrot.lane.b32.xlu0 %v533, 125
        %v673 = vpop.permute.xlu0 %672
        %674 = vrot.lane.b32.xlu0 %v534, 125
        %v675 = vpop.permute.xlu0 %674
        %676 = vrot.lane.b32.xlu0 %v535, 125
        %v677 = vpop.permute.xlu0 %676
        %678 = vrot.lane.b32.xlu0 %v536, 125
        %v679 = vpop.permute.xlu0 %678
        %680 = vrot.lane.b32.xlu0 %v537, 125
        %v681 = vpop.permute.xlu0 %680
        %682 = vrot.lane.b32.xlu0 %v538, 125
        %v683 = vpop.permute.xlu0 %682
        %684 = vrot.lane.b32.xlu0 %v539, 125
        %v685 = vpop.permute.xlu0 %684
        %686 = vrot.lane.b32.xlu0 %v540, 125
        %v687 = vpop.permute.xlu0 %686
        %688 = vrot.lane.b32.xlu0 %v541, 125
        %v689 = vpop.permute.xlu0 %688
        %690 = vrot.lane.b32.xlu0 %v542, 125
        %v691 = vpop.permute.xlu0 %690
        %vm704 = vcmask 31768
        %705 = vst.msk [vmem:[#allocation3] sm:$0xff] %vm704, %v669
        %706 = vst.msk [vmem:[#allocation3 + $0x8] sm:$0xff] %vm704, %v671
        %vm707 = vcmask 25624
        %708 = vst.msk [vmem:[#allocation3 + $0x10] sm:$0x3] %vm707, %v673
        %709 = vst.msk [vmem:[#allocation3 + $0x18] sm:$0xff] %vm704, %v675
        %710 = vst.msk [vmem:[#allocation3 + $0x20] sm:$0xff] %vm704, %v677
        %711 = vst.msk [vmem:[#allocation3 + $0x28] sm:$0x3] %vm707, %v679
        %712 = vst.msk [vmem:[#allocation3 + $0x30] sm:$0xff] %vm704, %v681
        %713 = vst.msk [vmem:[#allocation3 + $0x38] sm:$0xff] %vm704, %v683
        %714 = vst.msk [vmem:[#allocation3 + $0x40] sm:$0x3] %vm707, %v685
        %715 = vst.msk [vmem:[#allocation3 + $0x48] sm:$0xff] %vm704, %v687
        %716 = vst.msk [vmem:[#allocation3 + $0x50] sm:$0xff] %vm704, %v689
        %717 = vst.msk [vmem:[#allocation3 + $0x58] sm:$0x3] %vm707, %v691
        %718 = vrot.lane.b32.xlu0 %v531, 124
        %v719 = vpop.permute.xlu0 %718
        %720 = vrot.lane.b32.xlu0 %v532, 124
        %v721 = vpop.permute.xlu0 %720
        %722 = vrot.lane.b32.xlu0 %v533, 124
        %v723 = vpop.permute.xlu0 %722
        %724 = vrot.lane.b32.xlu0 %v534, 124
        %v725 = vpop.permute.xlu0 %724
        %726 = vrot.lane.b32.xlu0 %v535, 124
        %v727 = vpop.permute.xlu0 %726
        %728 = vrot.lane.b32.xlu0 %v536, 124
        %v729 = vpop.permute.xlu0 %728
        %730 = vrot.lane.b32.xlu0 %v537, 124
        %v731 = vpop.permute.xlu0 %730
        %732 = vrot.lane.b32.xlu0 %v538, 124
        %v733 = vpop.permute.xlu0 %732
        %734 = vrot.lane.b32.xlu0 %v539, 124
        %v735 = vpop.permute.xlu0 %734
        %736 = vrot.lane.b32.xlu0 %v540, 124
        %v737 = vpop.permute.xlu0 %736
        %738 = vrot.lane.b32.xlu0 %v541, 124
        %v739 = vpop.permute.xlu0 %738
        %740 = vrot.lane.b32.xlu0 %v542, 124
        %v741 = vpop.permute.xlu0 %740
        %vm754 = vcmask 39968
        %755 = vst.msk [vmem:[#allocation3] sm:$0xff] %vm754, %v719
        %756 = vst.msk [vmem:[#allocation3 + $0x8] sm:$0xff] %vm754, %v721
        %vm757 = vcmask 33824
        %758 = vst.msk [vmem:[#allocation3 + $0x10] sm:$0x3] %vm757, %v723
        %759 = vst.msk [vmem:[#allocation3 + $0x18] sm:$0xff] %vm754, %v725
        %760 = vst.msk [vmem:[#allocation3 + $0x20] sm:$0xff] %vm754, %v727
        %761 = vst.msk [vmem:[#allocation3 + $0x28] sm:$0x3] %vm757, %v729
        %762 = vst.msk [vmem:[#allocation3 + $0x30] sm:$0xff] %vm754, %v731
        %763 = vst.msk [vmem:[#allocation3 + $0x38] sm:$0xff] %vm754, %v733
        %764 = vst.msk [vmem:[#allocation3 + $0x40] sm:$0x3] %vm757, %v735
        %765 = vst.msk [vmem:[#allocation3 + $0x48] sm:$0xff] %vm754, %v737
        %766 = vst.msk [vmem:[#allocation3 + $0x50] sm:$0xff] %vm754, %v739
        %767 = vst.msk [vmem:[#allocation3 + $0x58] sm:$0x3] %vm757, %v741
        %768 = vrot.lane.b32.xlu0 %v531, 123
        %v769 = vpop.permute.xlu0 %768
        %770 = vrot.lane.b32.xlu0 %v532, 123
        %v771 = vpop.permute.xlu0 %770
        %772 = vrot.lane.b32.xlu0 %v533, 123
        %v773 = vpop.permute.xlu0 %772
        %774 = vrot.lane.b32.xlu0 %v534, 123
        %v775 = vpop.permute.xlu0 %774
        %776 = vrot.lane.b32.xlu0 %v535, 123
        %v777 = vpop.permute.xlu0 %776
        %778 = vrot.lane.b32.xlu0 %v536, 123
        %v779 = vpop.permute.xlu0 %778
        %780 = vrot.lane.b32.xlu0 %v537, 123
        %v781 = vpop.permute.xlu0 %780
        %782 = vrot.lane.b32.xlu0 %v538, 123
        %v783 = vpop.permute.xlu0 %782
        %784 = vrot.lane.b32.xlu0 %v539, 123
        %v785 = vpop.permute.xlu0 %784
        %786 = vrot.lane.b32.xlu0 %v540, 123
        %v787 = vpop.permute.xlu0 %786
        %788 = vrot.lane.b32.xlu0 %v541, 123
        %v789 = vpop.permute.xlu0 %788
        %790 = vrot.lane.b32.xlu0 %v542, 123
        %v791 = vpop.permute.xlu0 %790
        %vm804 = vcmask 48168
        %805 = vst.msk [vmem:[#allocation3] sm:$0xff] %vm804, %v769
        %806 = vst.msk [vmem:[#allocation3 + $0x8] sm:$0xff] %vm804, %v771
        %vm807 = vcmask 42024
        %808 = vst.msk [vmem:[#allocation3 + $0x10] sm:$0x3] %vm807, %v773
        %809 = vst.msk [vmem:[#allocation3 + $0x18] sm:$0xff] %vm804, %v775
        %810 = vst.msk [vmem:[#allocation3 + $0x20] sm:$0xff] %vm804, %v777
        %811 = vst.msk [vmem:[#allocation3 + $0x28] sm:$0x3] %vm807, %v779
        %812 = vst.msk [vmem:[#allocation3 + $0x30] sm:$0xff] %vm804, %v781
        %813 = vst.msk [vmem:[#allocation3 + $0x38] sm:$0xff] %vm804, %v783
        %814 = vst.msk [vmem:[#allocation3 + $0x40] sm:$0x3] %vm807, %v785
        %815 = vst.msk [vmem:[#allocation3 + $0x48] sm:$0xff] %vm804, %v787
        %816 = vst.msk [vmem:[#allocation3 + $0x50] sm:$0xff] %vm804, %v789
        %817 = vst.msk [vmem:[#allocation3 + $0x58] sm:$0x3] %vm807, %v791
        %818 = vrot.lane.b32.xlu0 %v531, 122
        %v819 = vpop.permute.xlu0 %818
        %820 = vrot.lane.b32.xlu0 %v532, 122
        %v821 = vpop.permute.xlu0 %820
        %822 = vrot.lane.b32.xlu0 %v533, 122
        %v823 = vpop.permute.xlu0 %822
        %824 = vrot.lane.b32.xlu0 %v534, 122
        %v825 = vpop.permute.xlu0 %824
        %826 = vrot.lane.b32.xlu0 %v535, 122
        %v827 = vpop.permute.xlu0 %826
        %828 = vrot.lane.b32.xlu0 %v536, 122
        %v829 = vpop.permute.xlu0 %828
        %830 = vrot.lane.b32.xlu0 %v537, 122
        %v831 = vpop.permute.xlu0 %830
        %832 = vrot.lane.b32.xlu0 %v538, 122
        %v833 = vpop.permute.xlu0 %832
        %834 = vrot.lane.b32.xlu0 %v539, 122
        %v835 = vpop.permute.xlu0 %834
        %836 = vrot.lane.b32.xlu0 %v540, 122
        %v837 = vpop.permute.xlu0 %836
        %838 = vrot.lane.b32.xlu0 %v541, 122
        %v839 = vpop.permute.xlu0 %838
        %840 = vrot.lane.b32.xlu0 %v542, 122
        %v841 = vpop.permute.xlu0 %840
        %vm854 = vcmask 56368
        %855 = vst.msk [vmem:[#allocation3] sm:$0xff] %vm854, %v819
        %856 = vst.msk [vmem:[#allocation3 + $0x8] sm:$0xff] %vm854, %v821
        %vm857 = vcmask 50224
        %858 = vst.msk [vmem:[#allocation3 + $0x10] sm:$0x3] %vm857, %v823
        %859 = vst.msk [vmem:[#allocation3 + $0x18] sm:$0xff] %vm854, %v825
        %860 = vst.msk [vmem:[#allocation3 + $0x20] sm:$0xff] %vm854, %v827
        %861 = vst.msk [vmem:[#allocation3 + $0x28] sm:$0x3] %vm857, %v829
        %862 = vst.msk [vmem:[#allocation3 + $0x30] sm:$0xff] %vm854, %v831
        %863 = vst.msk [vmem:[#allocation3 + $0x38] sm:$0xff] %vm854, %v833
        %864 = vst.msk [vmem:[#allocation3 + $0x40] sm:$0x3] %vm857, %v835
        %865 = vst.msk [vmem:[#allocation3 + $0x48] sm:$0xff] %vm854, %v837
        %866 = vst.msk [vmem:[#allocation3 + $0x50] sm:$0xff] %vm854, %v839
        %867 = vst.msk [vmem:[#allocation3 + $0x58] sm:$0x3] %vm857, %v841
        %868 = vrot.lane.b32.xlu0 %v531, 121
        %v869 = vpop.permute.xlu0 %868
        %870 = vrot.lane.b32.xlu0 %v532, 121
        %v871 = vpop.permute.xlu0 %870
        %872 = vrot.lane.b32.xlu0 %v533, 121
        %v873 = vpop.permute.xlu0 %872
        %874 = vrot.lane.b32.xlu0 %v534, 121
        %v875 = vpop.permute.xlu0 %874
        %876 = vrot.lane.b32.xlu0 %v535, 121
        %v877 = vpop.permute.xlu0 %876
        %878 = vrot.lane.b32.xlu0 %v536, 121
        %v879 = vpop.permute.xlu0 %878
        %880 = vrot.lane.b32.xlu0 %v537, 121
        %v881 = vpop.permute.xlu0 %880
        %882 = vrot.lane.b32.xlu0 %v538, 121
        %v883 = vpop.permute.xlu0 %882
        %884 = vrot.lane.b32.xlu0 %v539, 121
        %v885 = vpop.permute.xlu0 %884
        %886 = vrot.lane.b32.xlu0 %v540, 121
        %v887 = vpop.permute.xlu0 %886
        %888 = vrot.lane.b32.xlu0 %v541, 121
        %v889 = vpop.permute.xlu0 %888
        %890 = vrot.lane.b32.xlu0 %v542, 121
        %v891 = vpop.permute.xlu0 %890
        %vm904 = vcmask 64568
        %905 = vst.msk [vmem:[#allocation3] sm:$0xff] %vm904, %v869
        %906 = vst.msk [vmem:[#allocation3 + $0x8] sm:$0xff] %vm904, %v871
        %vm907 = vcmask 58424
        %908 = vst.msk [vmem:[#allocation3 + $0x10] sm:$0x3] %vm907, %v873
        %909 = vst.msk [vmem:[#allocation3 + $0x18] sm:$0xff] %vm904, %v875
        %910 = vst.msk [vmem:[#allocation3 + $0x20] sm:$0xff] %vm904, %v877
        %911 = vst.msk [vmem:[#allocation3 + $0x28] sm:$0x3] %vm907, %v879
        %912 = vst.msk [vmem:[#allocation3 + $0x30] sm:$0xff] %vm904, %v881
        %913 = vst.msk [vmem:[#allocation3 + $0x38] sm:$0xff] %vm904, %v883
        %914 = vst.msk [vmem:[#allocation3 + $0x40] sm:$0x3] %vm907, %v885
        %915 = vst.msk [vmem:[#allocation3 + $0x48] sm:$0xff] %vm904, %v887
        %916 = vst.msk [vmem:[#allocation3 + $0x50] sm:$0xff] %vm904, %v889
        %917 = vst.msk [vmem:[#allocation3 + $0x58] sm:$0x3] %vm907, %v891
        %v918 = vld [vmem:[#allocation3] sm:$0xff]
        %v919 = vld [vmem:[#allocation3 + $0x8] sm:$0xff]
        %v920 = vld [vmem:[#allocation3 + $0x10] sm:$0x3]
        %v921 = vld [vmem:[#allocation3 + $0x18] sm:$0xff]
        %v922 = vld [vmem:[#allocation3 + $0x20] sm:$0xff]
        %v923 = vld [vmem:[#allocation3 + $0x28] sm:$0x3]
        %v924 = vld [vmem:[#allocation3 + $0x30] sm:$0xff]
        %v925 = vld [vmem:[#allocation3 + $0x38] sm:$0xff]
        %v926 = vld [vmem:[#allocation3 + $0x40] sm:$0x3]
        %v927 = vld [vmem:[#allocation3 + $0x48] sm:$0xff]
        %v928 = vld [vmem:[#allocation3 + $0x50] sm:$0xff]
        %v929 = vld [vmem:[#allocation3 + $0x58] sm:$0x3]
        %v934 = vrot.slane %v918, 1
        %v935 = vrot.slane %v921, 1
        %v936 = vrot.slane %v924, 1
        %v937 = vrot.slane %v927, 1
        %v942 = vmax.f32 %v918, %v934
        %v943 = vmax.f32 %v921, %v935
        %v944 = vmax.f32 %v924, %v936
        %v945 = vmax.f32 %v927, %v937
        %v946 = vrot.slane %v918, 2
        %v947 = vrot.slane %v921, 2
        %v948 = vrot.slane %v924, 2
        %v949 = vrot.slane %v927, 2
        %v954 = vmax.f32 %v942, %v946
        %v955 = vmax.f32 %v943, %v947
        %v956 = vmax.f32 %v944, %v948
        %v957 = vmax.f32 %v945, %v949
        %vm958 = vcmask 57344
        %959 = vst.msk [vmem:[%s326] sm:$0x1] %vm958, %v954
        %960 = vst.msk [vmem:[%s326 + $0x8] sm:$0x1] %vm958, %v955
        %961 = vst.msk [vmem:[%s326 + $0x10] sm:$0x1] %vm958, %v956
        %962 = vst.msk [vmem:[%s326 + $0x18] sm:$0x1] %vm958, %v957
        %vm963 = vcmask 59394
        %964 = vst.msk [vmem:[%s326 - $0x1] sm:$0x4] %vm963, %v954
        %965 = vst.msk [vmem:[%s326 + $0x7] sm:$0x4] %vm963, %v955
        %966 = vst.msk [vmem:[%s326 + $0xf] sm:$0x4] %vm963, %v956
        %967 = vst.msk [vmem:[%s326 + $0x17] sm:$0x4] %vm963, %v957
        %vm968 = vcmask 61444
        %969 = vst.msk [vmem:[%s326 - $0x2] sm:$0x10] %vm968, %v954
        %970 = vst.msk [vmem:[%s326 + $0x6] sm:$0x10] %vm968, %v955
        %971 = vst.msk [vmem:[%s326 + $0xe] sm:$0x10] %vm968, %v956
        %972 = vst.msk [vmem:[%s326 + $0x16] sm:$0x10] %vm968, %v957
        %v977 = vrot.slane %v919, 2
        %v978 = vrot.slane %v922, 2
        %v979 = vrot.slane %v925, 2
        %v980 = vrot.slane %v928, 2
        %v985 = vmax.f32 %v942, %v977
        %v986 = vmax.f32 %v943, %v978
        %v987 = vmax.f32 %v944, %v979
        %v988 = vmax.f32 %v945, %v980
        %vm989 = vcmask 63494
        %990 = vst.msk [vmem:[%s326 - $0x3] sm:$0x40] %vm989, %v985
        %991 = vst.msk [vmem:[%s326 + $0x5] sm:$0x40] %vm989, %v986
        %992 = vst.msk [vmem:[%s326 + $0xd] sm:$0x40] %vm989, %v987
        %993 = vst.msk [vmem:[%s326 + $0x15] sm:$0x40] %vm989, %v988
        %v994 = vrot.slane %v919, 1
        %v995 = vrot.slane %v922, 1
        %v996 = vrot.slane %v925, 1
        %v997 = vrot.slane %v928, 1
        %v1002 = vmax.f32 %v919, %v994
        %v1003 = vmax.f32 %v922, %v995
        %v1004 = vmax.f32 %v925, %v996
        %v1005 = vmax.f32 %v928, %v997
        %v1006 = vmax.f32 %v1002, %v977
        %v1007 = vmax.f32 %v1003, %v978
        %v1008 = vmax.f32 %v1004, %v979
        %v1009 = vmax.f32 %v1005, %v980
        %1010 = vst.msk [vmem:[%s326 + $0x4] sm:$0x1] %vm958, %v1006
        %1011 = vst.msk [vmem:[%s326 + $0xc] sm:$0x1] %vm958, %v1007
        %1012 = vst.msk [vmem:[%s326 + $0x14] sm:$0x1] %vm958, %v1008
        %1013 = vst.msk [vmem:[%s326 + $0x1c] sm:$0x1] %vm958, %v1009
        %1014 = vst.msk [vmem:[%s326 + $0x3] sm:$0x4] %vm963, %v1006
        %1015 = vst.msk [vmem:[%s326 + $0xb] sm:$0x4] %vm963, %v1007
        %1016 = vst.msk [vmem:[%s326 + $0x13] sm:$0x4] %vm963, %v1008
        %1017 = vst.msk [vmem:[%s326 + $0x1b] sm:$0x4] %vm963, %v1009
        %1018 = vst.msk [vmem:[%s326 + $0x2] sm:$0x10] %vm968, %v1006
        %1019 = vst.msk [vmem:[%s326 + $0xa] sm:$0x10] %vm968, %v1007
        %1020 = vst.msk [vmem:[%s326 + $0x12] sm:$0x10] %vm968, %v1008
        %1021 = vst.msk [vmem:[%s326 + $0x1a] sm:$0x10] %vm968, %v1009
        %v1026 = vrot.slane %v920, 2
        %v1027 = vrot.slane %v923, 2
        %v1028 = vrot.slane %v926, 2
        %v1029 = vrot.slane %v929, 2
        %v1034 = vmax.f32 %v1002, %v1026
        %v1035 = vmax.f32 %v1003, %v1027
        %v1036 = vmax.f32 %v1004, %v1028
        %v1037 = vmax.f32 %v1005, %v1029
        %1038 = vst.msk [vmem:[%s326 + $0x1] sm:$0x40] %vm989, %v1034
        %1039 = vst.msk [vmem:[%s326 + $0x9] sm:$0x40] %vm989, %v1035
        %1040 = vst.msk [vmem:[%s326 + $0x11] sm:$0x40] %vm989, %v1036
        %1041 = vst.msk [vmem:[%s326 + $0x19] sm:$0x40] %vm989, %v1037
        %v1042 = vld [vmem:[%s285] sm:$0xff]
        %v1043 = vld [vmem:[%s285 + $0x8] sm:$0xff]
        %v1044 = vld [vmem:[%s285 + $0x10] sm:$0xff]
        %v1045 = vld [vmem:[%s285 + $0x18] sm:$0xff]
        %v1046 = vld [vmem:[%s285 + $0x20] sm:$0xff]
        %v1047 = vld [vmem:[%s285 + $0x28] sm:$0xff]
        %v1048 = vld [vmem:[%s285 + $0x30] sm:$0xff]
        %v1049 = vld [vmem:[%s285 + $0x38] sm:$0xff]
        %1058 = vrot.lane.b32.xlu0 %v1042, 1
        %v1059 = vpop.permute.xlu0 %1058
        %1060 = vrot.lane.b32.xlu0 %v1043, 1
        %v1061 = vpop.permute.xlu0 %1060
        %1062 = vrot.lane.b32.xlu0 %v1044, 1
        %v1063 = vpop.permute.xlu0 %1062
        %1064 = vrot.lane.b32.xlu0 %v1045, 1
        %v1065 = vpop.permute.xlu0 %1064
        %1066 = vrot.lane.b32.xlu0 %v1046, 1
        %v1067 = vpop.permute.xlu0 %1066
        %1068 = vrot.lane.b32.xlu0 %v1047, 1
        %v1069 = vpop.permute.xlu0 %1068
        %1070 = vrot.lane.b32.xlu0 %v1048, 1
        %v1071 = vpop.permute.xlu0 %1070
        %1072 = vrot.lane.b32.xlu0 %v1049, 1
        %v1073 = vpop.permute.xlu0 %1072
        %1082 = vst.msk [vmem:[#allocation2 + $0x1] sm:$0xff] %vm414, %v1059
        %1083 = vst.msk [vmem:[#allocation2 + $0x9] sm:$0xff] %vm414, %v1061
        %1084 = vst.msk [vmem:[#allocation2 + $0x19] sm:$0xff] %vm414, %v1063
        %1085 = vst.msk [vmem:[#allocation2 + $0x21] sm:$0xff] %vm414, %v1065
        %1086 = vst.msk [vmem:[#allocation2 + $0x31] sm:$0xff] %vm414, %v1067
        %1087 = vst.msk [vmem:[#allocation2 + $0x39] sm:$0xff] %vm414, %v1069
        %1088 = vst.msk [vmem:[#allocation2 + $0x49] sm:$0xff] %vm414, %v1071
        %1089 = vst.msk [vmem:[#allocation2 + $0x51] sm:$0xff] %vm414, %v1073
        %v1090 = vld [vmem:[#allocation2] sm:$0xff]
        %v1091 = vld [vmem:[#allocation2 + $0x8] sm:$0xff]
        %v1092 = vld [vmem:[#allocation2 + $0x10] sm:$0x3]
        %v1093 = vld [vmem:[#allocation2 + $0x18] sm:$0xff]
        %v1094 = vld [vmem:[#allocation2 + $0x20] sm:$0xff]
        %v1095 = vld [vmem:[#allocation2 + $0x28] sm:$0x3]
        %v1096 = vld [vmem:[#allocation2 + $0x30] sm:$0xff]
        %v1097 = vld [vmem:[#allocation2 + $0x38] sm:$0xff]
        %v1098 = vld [vmem:[#allocation2 + $0x40] sm:$0x3]
        %v1099 = vld [vmem:[#allocation2 + $0x48] sm:$0xff]
        %v1100 = vld [vmem:[#allocation2 + $0x50] sm:$0xff]
        %v1101 = vld [vmem:[#allocation2 + $0x58] sm:$0x3]
        %1114 = vrot.lane.b32.xlu0 %v1090, 127
        %v1115 = vpop.permute.xlu0 %1114
        %1116 = vrot.lane.b32.xlu0 %v1091, 127
        %v1117 = vpop.permute.xlu0 %1116
        %1118 = vrot.lane.b32.xlu0 %v1092, 127
        %v1119 = vpop.permute.xlu0 %1118
        %1120 = vrot.lane.b32.xlu0 %v1093, 127
        %v1121 = vpop.permute.xlu0 %1120
        %1122 = vrot.lane.b32.xlu0 %v1094, 127
        %v1123 = vpop.permute.xlu0 %1122
        %1124 = vrot.lane.b32.xlu0 %v1095, 127
        %v1125 = vpop.permute.xlu0 %1124
        %1126 = vrot.lane.b32.xlu0 %v1096, 127
        %v1127 = vpop.permute.xlu0 %1126
        %1128 = vrot.lane.b32.xlu0 %v1097, 127
        %v1129 = vpop.permute.xlu0 %1128
        %1130 = vrot.lane.b32.xlu0 %v1098, 127
        %v1131 = vpop.permute.xlu0 %1130
        %1132 = vrot.lane.b32.xlu0 %v1099, 127
        %v1133 = vpop.permute.xlu0 %1132
        %1134 = vrot.lane.b32.xlu0 %v1100, 127
        %v1135 = vpop.permute.xlu0 %1134
        %1136 = vrot.lane.b32.xlu0 %v1101, 127
        %v1137 = vpop.permute.xlu0 %1136
        %v1150 = vmax.f32 %v1090, %v1115
        %v1151 = vmax.f32 %v1091, %v1117
        %v1152 = vmax.f32 %v1092, %v1119
        %v1153 = vmax.f32 %v1093, %v1121
        %v1154 = vmax.f32 %v1094, %v1123
        %v1155 = vmax.f32 %v1095, %v1125
        %v1156 = vmax.f32 %v1096, %v1127
        %v1157 = vmax.f32 %v1097, %v1129
        %v1158 = vmax.f32 %v1098, %v1131
        %v1159 = vmax.f32 %v1099, %v1133
        %v1160 = vmax.f32 %v1100, %v1135
        %v1161 = vmax.f32 %v1101, %v1137
        %1162 = vrot.lane.b32.xlu0 %v1090, 126
        %v1163 = vpop.permute.xlu0 %1162
        %1164 = vrot.lane.b32.xlu0 %v1091, 126
        %v1165 = vpop.permute.xlu0 %1164
        %1166 = vrot.lane.b32.xlu0 %v1092, 126
        %v1167 = vpop.permute.xlu0 %1166
        %1168 = vrot.lane.b32.xlu0 %v1093, 126
        %v1169 = vpop.permute.xlu0 %1168
        %1170 = vrot.lane.b32.xlu0 %v1094, 126
        %v1171 = vpop.permute.xlu0 %1170
        %1172 = vrot.lane.b32.xlu0 %v1095, 126
        %v1173 = vpop.permute.xlu0 %1172
        %1174 = vrot.lane.b32.xlu0 %v1096, 126
        %v1175 = vpop.permute.xlu0 %1174
        %1176 = vrot.lane.b32.xlu0 %v1097, 126
        %v1177 = vpop.permute.xlu0 %1176
        %1178 = vrot.lane.b32.xlu0 %v1098, 126
        %v1179 = vpop.permute.xlu0 %1178
        %1180 = vrot.lane.b32.xlu0 %v1099, 126
        %v1181 = vpop.permute.xlu0 %1180
        %1182 = vrot.lane.b32.xlu0 %v1100, 126
        %v1183 = vpop.permute.xlu0 %1182
        %1184 = vrot.lane.b32.xlu0 %v1101, 126
        %v1185 = vpop.permute.xlu0 %1184
        %v1198 = vmax.f32 %v1150, %v1163
        %v1199 = vmax.f32 %v1151, %v1165
        %v1200 = vmax.f32 %v1152, %v1167
        %v1201 = vmax.f32 %v1153, %v1169
        %v1202 = vmax.f32 %v1154, %v1171
        %v1203 = vmax.f32 %v1155, %v1173
        %v1204 = vmax.f32 %v1156, %v1175
        %v1205 = vmax.f32 %v1157, %v1177
        %v1206 = vmax.f32 %v1158, %v1179
        %v1207 = vmax.f32 %v1159, %v1181
        %v1208 = vmax.f32 %v1160, %v1183
        %v1209 = vmax.f32 %v1161, %v1185
        %1210 = vst.msk [vmem:[#allocation3] sm:$0xff] %vm356, %v1198
        %1211 = vst.msk [vmem:[#allocation3 + $0x8] sm:$0xff] %vm356, %v1199
        %1212 = vst.msk [vmem:[#allocation3 + $0x10] sm:$0x3] %vm545, %v1200
        %1213 = vst.msk [vmem:[#allocation3 + $0x18] sm:$0xff] %vm356, %v1201
        %1214 = vst.msk [vmem:[#allocation3 + $0x20] sm:$0xff] %vm356, %v1202
        %1215 = vst.msk [vmem:[#allocation3 + $0x28] sm:$0x3] %vm545, %v1203
        %1216 = vst.msk [vmem:[#allocation3 + $0x30] sm:$0xff] %vm356, %v1204
        %1217 = vst.msk [vmem:[#allocation3 + $0x38] sm:$0xff] %vm356, %v1205
        %1218 = vst.msk [vmem:[#allocation3 + $0x40] sm:$0x3] %vm545, %v1206
        %1219 = vst.msk [vmem:[#allocation3 + $0x48] sm:$0xff] %vm356, %v1207
        %1220 = vst.msk [vmem:[#allocation3 + $0x50] sm:$0xff] %vm356, %v1208
        %1221 = vst.msk [vmem:[#allocation3 + $0x58] sm:$0x3] %vm545, %v1209
        %1234 = vrot.lane.b32.xlu0 %v1198, 127
        %v1235 = vpop.permute.xlu0 %1234
        %1236 = vrot.lane.b32.xlu0 %v1199, 127
        %v1237 = vpop.permute.xlu0 %1236
        %1238 = vrot.lane.b32.xlu0 %v1200, 127
        %v1239 = vpop.permute.xlu0 %1238
        %1240 = vrot.lane.b32.xlu0 %v1201, 127
        %v1241 = vpop.permute.xlu0 %1240
        %1242 = vrot.lane.b32.xlu0 %v1202, 127
        %v1243 = vpop.permute.xlu0 %1242
        %1244 = vrot.lane.b32.xlu0 %v1203, 127
        %v1245 = vpop.permute.xlu0 %1244
        %1246 = vrot.lane.b32.xlu0 %v1204, 127
        %v1247 = vpop.permute.xlu0 %1246
        %1248 = vrot.lane.b32.xlu0 %v1205, 127
        %v1249 = vpop.permute.xlu0 %1248
        %1250 = vrot.lane.b32.xlu0 %v1206, 127
        %v1251 = vpop.permute.xlu0 %1250
        %1252 = vrot.lane.b32.xlu0 %v1207, 127
        %v1253 = vpop.permute.xlu0 %1252
        %1254 = vrot.lane.b32.xlu0 %v1208, 127
        %v1255 = vpop.permute.xlu0 %1254
        %1256 = vrot.lane.b32.xlu0 %v1209, 127
        %v1257 = vpop.permute.xlu0 %1256
        %1270 = vst.msk [vmem:[#allocation3] sm:$0xff] %vm604, %v1235
        %1271 = vst.msk [vmem:[#allocation3 + $0x8] sm:$0xff] %vm604, %v1237
        %1272 = vst.msk [vmem:[#allocation3 + $0x10] sm:$0x3] %vm607, %v1239
        %1273 = vst.msk [vmem:[#allocation3 + $0x18] sm:$0xff] %vm604, %v1241
        %1274 = vst.msk [vmem:[#allocation3 + $0x20] sm:$0xff] %vm604, %v1243
        %1275 = vst.msk [vmem:[#allocation3 + $0x28] sm:$0x3] %vm607, %v1245
        %1276 = vst.msk [vmem:[#allocation3 + $0x30] sm:$0xff] %vm604, %v1247
        %1277 = vst.msk [vmem:[#allocation3 + $0x38] sm:$0xff] %vm604, %v1249
        %1278 = vst.msk [vmem:[#allocation3 + $0x40] sm:$0x3] %vm607, %v1251
        %1279 = vst.msk [vmem:[#allocation3 + $0x48] sm:$0xff] %vm604, %v1253
        %1280 = vst.msk [vmem:[#allocation3 + $0x50] sm:$0xff] %vm604, %v1255
        %1281 = vst.msk [vmem:[#allocation3 + $0x58] sm:$0x3] %vm607, %v1257
        %1282 = vrot.lane.b32.xlu0 %v1198, 126
        %v1283 = vpop.permute.xlu0 %1282
        %1284 = vrot.lane.b32.xlu0 %v1199, 126
        %v1285 = vpop.permute.xlu0 %1284
        %1286 = vrot.lane.b32.xlu0 %v1200, 126
        %v1287 = vpop.permute.xlu0 %1286
        %1288 = vrot.lane.b32.xlu0 %v1201, 126
        %v1289 = vpop.permute.xlu0 %1288
        %1290 = vrot.lane.b32.xlu0 %v1202, 126
        %v1291 = vpop.permute.xlu0 %1290
        %1292 = vrot.lane.b32.xlu0 %v1203, 126
        %v1293 = vpop.permute.xlu0 %1292
        %1294 = vrot.lane.b32.xlu0 %v1204, 126
        %v1295 = vpop.permute.xlu0 %1294
        %1296 = vrot.lane.b32.xlu0 %v1205, 126
        %v1297 = vpop.permute.xlu0 %1296
        %1298 = vrot.lane.b32.xlu0 %v1206, 126
        %v1299 = vpop.permute.xlu0 %1298
        %1300 = vrot.lane.b32.xlu0 %v1207, 126
        %v1301 = vpop.permute.xlu0 %1300
        %1302 = vrot.lane.b32.xlu0 %v1208, 126
        %v1303 = vpop.permute.xlu0 %1302
        %1304 = vrot.lane.b32.xlu0 %v1209, 126
        %v1305 = vpop.permute.xlu0 %1304
        %1318 = vst.msk [vmem:[#allocation3] sm:$0xff] %vm654, %v1283
        %1319 = vst.msk [vmem:[#allocation3 + $0x8] sm:$0xff] %vm654, %v1285
        %1320 = vst.msk [vmem:[#allocation3 + $0x10] sm:$0x3] %vm657, %v1287
        %1321 = vst.msk [vmem:[#allocation3 + $0x18] sm:$0xff] %vm654, %v1289
        %1322 = vst.msk [vmem:[#allocation3 + $0x20] sm:$0xff] %vm654, %v1291
        %1323 = vst.msk [vmem:[#allocation3 + $0x28] sm:$0x3] %vm657, %v1293
        %1324 = vst.msk [vmem:[#allocation3 + $0x30] sm:$0xff] %vm654, %v1295
        %1325 = vst.msk [vmem:[#allocation3 + $0x38] sm:$0xff] %vm654, %v1297
        %1326 = vst.msk [vmem:[#allocation3 + $0x40] sm:$0x3] %vm657, %v1299
        %1327 = vst.msk [vmem:[#allocation3 + $0x48] sm:$0xff] %vm654, %v1301
        %1328 = vst.msk [vmem:[#allocation3 + $0x50] sm:$0xff] %vm654, %v1303
        %1329 = vst.msk [vmem:[#allocation3 + $0x58] sm:$0x3] %vm657, %v1305
        %1330 = vrot.lane.b32.xlu0 %v1198, 125
        %v1331 = vpop.permute.xlu0 %1330
        %1332 = vrot.lane.b32.xlu0 %v1199, 125
        %v1333 = vpop.permute.xlu0 %1332
        %1334 = vrot.lane.b32.xlu0 %v1200, 125
        %v1335 = vpop.permute.xlu0 %1334
        %1336 = vrot.lane.b32.xlu0 %v1201, 125
        %v1337 = vpop.permute.xlu0 %1336
        %1338 = vrot.lane.b32.xlu0 %v1202, 125
        %v1339 = vpop.permute.xlu0 %1338
        %1340 = vrot.lane.b32.xlu0 %v1203, 125
        %v1341 = vpop.permute.xlu0 %1340
        %1342 = vrot.lane.b32.xlu0 %v1204, 125
        %v1343 = vpop.permute.xlu0 %1342
        %1344 = vrot.lane.b32.xlu0 %v1205, 125
        %v1345 = vpop.permute.xlu0 %1344
        %1346 = vrot.lane.b32.xlu0 %v1206, 125
        %v1347 = vpop.permute.xlu0 %1346
        %1348 = vrot.lane.b32.xlu0 %v1207, 125
        %v1349 = vpop.permute.xlu0 %1348
        %1350 = vrot.lane.b32.xlu0 %v1208, 125
        %v1351 = vpop.permute.xlu0 %1350
        %1352 = vrot.lane.b32.xlu0 %v1209, 125
        %v1353 = vpop.permute.xlu0 %1352
        %1366 = vst.msk [vmem:[#allocation3] sm:$0xff] %vm704, %v1331
        %1367 = vst.msk [vmem:[#allocation3 + $0x8] sm:$0xff] %vm704, %v1333
        %1368 = vst.msk [vmem:[#allocation3 + $0x10] sm:$0x3] %vm707, %v1335
        %1369 = vst.msk [vmem:[#allocation3 + $0x18] sm:$0xff] %vm704, %v1337
        %1370 = vst.msk [vmem:[#allocation3 + $0x20] sm:$0xff] %vm704, %v1339
        %1371 = vst.msk [vmem:[#allocation3 + $0x28] sm:$0x3] %vm707, %v1341
        %1372 = vst.msk [vmem:[#allocation3 + $0x30] sm:$0xff] %vm704, %v1343
        %1373 = vst.msk [vmem:[#allocation3 + $0x38] sm:$0xff] %vm704, %v1345
        %1374 = vst.msk [vmem:[#allocation3 + $0x40] sm:$0x3] %vm707, %v1347
        %1375 = vst.msk [vmem:[#allocation3 + $0x48] sm:$0xff] %vm704, %v1349
        %1376 = vst.msk [vmem:[#allocation3 + $0x50] sm:$0xff] %vm704, %v1351
        %1377 = vst.msk [vmem:[#allocation3 + $0x58] sm:$0x3] %vm707, %v1353
        %1378 = vrot.lane.b32.xlu0 %v1198, 124
        %v1379 = vpop.permute.xlu0 %1378
        %1380 = vrot.lane.b32.xlu0 %v1199, 124
        %v1381 = vpop.permute.xlu0 %1380
        %1382 = vrot.lane.b32.xlu0 %v1200, 124
        %v1383 = vpop.permute.xlu0 %1382
        %1384 = vrot.lane.b32.xlu0 %v1201, 124
        %v1385 = vpop.permute.xlu0 %1384
        %1386 = vrot.lane.b32.xlu0 %v1202, 124
        %v1387 = vpop.permute.xlu0 %1386
        %1388 = vrot.lane.b32.xlu0 %v1203, 124
        %v1389 = vpop.permute.xlu0 %1388
        %1390 = vrot.lane.b32.xlu0 %v1204, 124
        %v1391 = vpop.permute.xlu0 %1390
        %1392 = vrot.lane.b32.xlu0 %v1205, 124
        %v1393 = vpop.permute.xlu0 %1392
        %1394 = vrot.lane.b32.xlu0 %v1206, 124
        %v1395 = vpop.permute.xlu0 %1394
        %1396 = vrot.lane.b32.xlu0 %v1207, 124
        %v1397 = vpop.permute.xlu0 %1396
        %1398 = vrot.lane.b32.xlu0 %v1208, 124
        %v1399 = vpop.permute.xlu0 %1398
        %1400 = vrot.lane.b32.xlu0 %v1209, 124
        %v1401 = vpop.permute.xlu0 %1400
        %1414 = vst.msk [vmem:[#allocation3] sm:$0xff] %vm754, %v1379
        %1415 = vst.msk [vmem:[#allocation3 + $0x8] sm:$0xff] %vm754, %v1381
        %1416 = vst.msk [vmem:[#allocation3 + $0x10] sm:$0x3] %vm757, %v1383
        %1417 = vst.msk [vmem:[#allocation3 + $0x18] sm:$0xff] %vm754, %v1385
        %1418 = vst.msk [vmem:[#allocation3 + $0x20] sm:$0xff] %vm754, %v1387
        %1419 = vst.msk [vmem:[#allocation3 + $0x28] sm:$0x3] %vm757, %v1389
        %1420 = vst.msk [vmem:[#allocation3 + $0x30] sm:$0xff] %vm754, %v1391
        %1421 = vst.msk [vmem:[#allocation3 + $0x38] sm:$0xff] %vm754, %v1393
        %1422 = vst.msk [vmem:[#allocation3 + $0x40] sm:$0x3] %vm757, %v1395
        %1423 = vst.msk [vmem:[#allocation3 + $0x48] sm:$0xff] %vm754, %v1397
        %1424 = vst.msk [vmem:[#allocation3 + $0x50] sm:$0xff] %vm754, %v1399
        %1425 = vst.msk [vmem:[#allocation3 + $0x58] sm:$0x3] %vm757, %v1401
        %1426 = vrot.lane.b32.xlu0 %v1198, 123
        %v1427 = vpop.permute.xlu0 %1426
        %1428 = vrot.lane.b32.xlu0 %v1199, 123
        %v1429 = vpop.permute.xlu0 %1428
        %1430 = vrot.lane.b32.xlu0 %v1200, 123
        %v1431 = vpop.permute.xlu0 %1430
        %1432 = vrot.lane.b32.xlu0 %v1201, 123
        %v1433 = vpop.permute.xlu0 %1432
        %1434 = vrot.lane.b32.xlu0 %v1202, 123
        %v1435 = vpop.permute.xlu0 %1434
        %1436 = vrot.lane.b32.xlu0 %v1203, 123
        %v1437 = vpop.permute.xlu0 %1436
        %1438 = vrot.lane.b32.xlu0 %v1204, 123
        %v1439 = vpop.permute.xlu0 %1438
        %1440 = vrot.lane.b32.xlu0 %v1205, 123
        %v1441 = vpop.permute.xlu0 %1440
        %1442 = vrot.lane.b32.xlu0 %v1206, 123
        %v1443 = vpop.permute.xlu0 %1442
        %1444 = vrot.lane.b32.xlu0 %v1207, 123
        %v1445 = vpop.permute.xlu0 %1444
        %1446 = vrot.lane.b32.xlu0 %v1208, 123
        %v1447 = vpop.permute.xlu0 %1446
        %1448 = vrot.lane.b32.xlu0 %v1209, 123
        %v1449 = vpop.permute.xlu0 %1448
        %1462 = vst.msk [vmem:[#allocation3] sm:$0xff] %vm804, %v1427
        %1463 = vst.msk [vmem:[#allocation3 + $0x8] sm:$0xff] %vm804, %v1429
        %1464 = vst.msk [vmem:[#allocation3 + $0x10] sm:$0x3] %vm807, %v1431
        %1465 = vst.msk [vmem:[#allocation3 + $0x18] sm:$0xff] %vm804, %v1433
        %1466 = vst.msk [vmem:[#allocation3 + $0x20] sm:$0xff] %vm804, %v1435
        %1467 = vst.msk [vmem:[#allocation3 + $0x28] sm:$0x3] %vm807, %v1437
        %1468 = vst.msk [vmem:[#allocation3 + $0x30] sm:$0xff] %vm804, %v1439
        %1469 = vst.msk [vmem:[#allocation3 + $0x38] sm:$0xff] %vm804, %v1441
        %1470 = vst.msk [vmem:[#allocation3 + $0x40] sm:$0x3] %vm807, %v1443
        %1471 = vst.msk [vmem:[#allocation3 + $0x48] sm:$0xff] %vm804, %v1445
        %1472 = vst.msk [vmem:[#allocation3 + $0x50] sm:$0xff] %vm804, %v1447
        %1473 = vst.msk [vmem:[#allocation3 + $0x58] sm:$0x3] %vm807, %v1449
        %1474 = vrot.lane.b32.xlu0 %v1198, 122
        %v1475 = vpop.permute.xlu0 %1474
        %1476 = vrot.lane.b32.xlu0 %v1199, 122
        %v1477 = vpop.permute.xlu0 %1476
        %1478 = vrot.lane.b32.xlu0 %v1200, 122
        %v1479 = vpop.permute.xlu0 %1478
        %1480 = vrot.lane.b32.xlu0 %v1201, 122
        %v1481 = vpop.permute.xlu0 %1480
        %1482 = vrot.lane.b32.xlu0 %v1202, 122
        %v1483 = vpop.permute.xlu0 %1482
        %1484 = vrot.lane.b32.xlu0 %v1203, 122
        %v1485 = vpop.permute.xlu0 %1484
        %1486 = vrot.lane.b32.xlu0 %v1204, 122
        %v1487 = vpop.permute.xlu0 %1486
        %1488 = vrot.lane.b32.xlu0 %v1205, 122
        %v1489 = vpop.permute.xlu0 %1488
        %1490 = vrot.lane.b32.xlu0 %v1206, 122
        %v1491 = vpop.permute.xlu0 %1490
        %1492 = vrot.lane.b32.xlu0 %v1207, 122
        %v1493 = vpop.permute.xlu0 %1492
        %1494 = vrot.lane.b32.xlu0 %v1208, 122
        %v1495 = vpop.permute.xlu0 %1494
        %1496 = vrot.lane.b32.xlu0 %v1209, 122
        %v1497 = vpop.permute.xlu0 %1496
        %1510 = vst.msk [vmem:[#allocation3] sm:$0xff] %vm854, %v1475
        %1511 = vst.msk [vmem:[#allocation3 + $0x8] sm:$0xff] %vm854, %v1477
        %1512 = vst.msk [vmem:[#allocation3 + $0x10] sm:$0x3] %vm857, %v1479
        %1513 = vst.msk [vmem:[#allocation3 + $0x18] sm:$0xff] %vm854, %v1481
        %1514 = vst.msk [vmem:[#allocation3 + $0x20] sm:$0xff] %vm854, %v1483
        %1515 = vst.msk [vmem:[#allocation3 + $0x28] sm:$0x3] %vm857, %v1485
        %1516 = vst.msk [vmem:[#allocation3 + $0x30] sm:$0xff] %vm854, %v1487
        %1517 = vst.msk [vmem:[#allocation3 + $0x38] sm:$0xff] %vm854, %v1489
        %1518 = vst.msk [vmem:[#allocation3 + $0x40] sm:$0x3] %vm857, %v1491
        %1519 = vst.msk [vmem:[#allocation3 + $0x48] sm:$0xff] %vm854, %v1493
        %1520 = vst.msk [vmem:[#allocation3 + $0x50] sm:$0xff] %vm854, %v1495
        %1521 = vst.msk [vmem:[#allocation3 + $0x58] sm:$0x3] %vm857, %v1497
        %1522 = vrot.lane.b32.xlu0 %v1198, 121
        %v1523 = vpop.permute.xlu0 %1522
        %1524 = vrot.lane.b32.xlu0 %v1199, 121
        %v1525 = vpop.permute.xlu0 %1524
        %1526 = vrot.lane.b32.xlu0 %v1200, 121
        %v1527 = vpop.permute.xlu0 %1526
        %1528 = vrot.lane.b32.xlu0 %v1201, 121
        %v1529 = vpop.permute.xlu0 %1528
        %1530 = vrot.lane.b32.xlu0 %v1202, 121
        %v1531 = vpop.permute.xlu0 %1530
        %1532 = vrot.lane.b32.xlu0 %v1203, 121
        %v1533 = vpop.permute.xlu0 %1532
        %1534 = vrot.lane.b32.xlu0 %v1204, 121
        %v1535 = vpop.permute.xlu0 %1534
        %1536 = vrot.lane.b32.xlu0 %v1205, 121
        %v1537 = vpop.permute.xlu0 %1536
        %1538 = vrot.lane.b32.xlu0 %v1206, 121
        %v1539 = vpop.permute.xlu0 %1538
        %1540 = vrot.lane.b32.xlu0 %v1207, 121
        %v1541 = vpop.permute.xlu0 %1540
        %1542 = vrot.lane.b32.xlu0 %v1208, 121
        %v1543 = vpop.permute.xlu0 %1542
        %1544 = vrot.lane.b32.xlu0 %v1209, 121
        %v1545 = vpop.permute.xlu0 %1544
        %1558 = vst.msk [vmem:[#allocation3] sm:$0xff] %vm904, %v1523
        %1559 = vst.msk [vmem:[#allocation3 + $0x8] sm:$0xff] %vm904, %v1525
        %1560 = vst.msk [vmem:[#allocation3 + $0x10] sm:$0x3] %vm907, %v1527
        %1561 = vst.msk [vmem:[#allocation3 + $0x18] sm:$0xff] %vm904, %v1529
        %1562 = vst.msk [vmem:[#allocation3 + $0x20] sm:$0xff] %vm904, %v1531
        %1563 = vst.msk [vmem:[#allocation3 + $0x28] sm:$0x3] %vm907, %v1533
        %1564 = vst.msk [vmem:[#allocation3 + $0x30] sm:$0xff] %vm904, %v1535
        %1565 = vst.msk [vmem:[#allocation3 + $0x38] sm:$0xff] %vm904, %v1537
        %1566 = vst.msk [vmem:[#allocation3 + $0x40] sm:$0x3] %vm907, %v1539
        %1567 = vst.msk [vmem:[#allocation3 + $0x48] sm:$0xff] %vm904, %v1541
        %1568 = vst.msk [vmem:[#allocation3 + $0x50] sm:$0xff] %vm904, %v1543
        %1569 = vst.msk [vmem:[#allocation3 + $0x58] sm:$0x3] %vm907, %v1545
        %v1570 = vld [vmem:[#allocation3] sm:$0xff]
        %v1571 = vld [vmem:[#allocation3 + $0x8] sm:$0xff]
        %v1572 = vld [vmem:[#allocation3 + $0x10] sm:$0x3]
        %v1573 = vld [vmem:[#allocation3 + $0x18] sm:$0xff]
        %v1574 = vld [vmem:[#allocation3 + $0x20] sm:$0xff]
        %v1575 = vld [vmem:[#allocation3 + $0x28] sm:$0x3]
        %v1576 = vld [vmem:[#allocation3 + $0x30] sm:$0xff]
        %v1577 = vld [vmem:[#allocation3 + $0x38] sm:$0xff]
        %v1578 = vld [vmem:[#allocation3 + $0x40] sm:$0x3]
        %v1579 = vld [vmem:[#allocation3 + $0x48] sm:$0xff]
        %v1580 = vld [vmem:[#allocation3 + $0x50] sm:$0xff]
        %v1581 = vld [vmem:[#allocation3 + $0x58] sm:$0x3]
        %v1586 = vrot.slane %v1570, 1
        %v1587 = vrot.slane %v1573, 1
        %v1588 = vrot.slane %v1576, 1
        %v1589 = vrot.slane %v1579, 1
        %v1594 = vmax.f32 %v1570, %v1586
        %v1595 = vmax.f32 %v1573, %v1587
        %v1596 = vmax.f32 %v1576, %v1588
        %v1597 = vmax.f32 %v1579, %v1589
        %v1598 = vrot.slane %v1570, 2
        %v1599 = vrot.slane %v1573, 2
        %v1600 = vrot.slane %v1576, 2
        %v1601 = vrot.slane %v1579, 2
        %v1606 = vmax.f32 %v1594, %v1598
        %v1607 = vmax.f32 %v1595, %v1599
        %v1608 = vmax.f32 %v1596, %v1600
        %v1609 = vmax.f32 %v1597, %v1601
        %1610 = vst.msk [vmem:[%s333] sm:$0x1] %vm958, %v1606
        %1611 = vst.msk [vmem:[%s333 + $0x8] sm:$0x1] %vm958, %v1607
        %1612 = vst.msk [vmem:[%s333 + $0x10] sm:$0x1] %vm958, %v1608
        %1613 = vst.msk [vmem:[%s333 + $0x18] sm:$0x1] %vm958, %v1609
        %1614 = vst.msk [vmem:[%s333 - $0x1] sm:$0x4] %vm963, %v1606
        %1615 = vst.msk [vmem:[%s333 + $0x7] sm:$0x4] %vm963, %v1607
        %1616 = vst.msk [vmem:[%s333 + $0xf] sm:$0x4] %vm963, %v1608
        %1617 = vst.msk [vmem:[%s333 + $0x17] sm:$0x4] %vm963, %v1609
        %1618 = vst.msk [vmem:[%s333 - $0x2] sm:$0x10] %vm968, %v1606
        %1619 = vst.msk [vmem:[%s333 + $0x6] sm:$0x10] %vm968, %v1607
        %1620 = vst.msk [vmem:[%s333 + $0xe] sm:$0x10] %vm968, %v1608
        %1621 = vst.msk [vmem:[%s333 + $0x16] sm:$0x10] %vm968, %v1609
        %v1626 = vrot.slane %v1571, 2
        %v1627 = vrot.slane %v1574, 2
        %v1628 = vrot.slane %v1577, 2
        %v1629 = vrot.slane %v1580, 2
        %v1634 = vmax.f32 %v1594, %v1626
        %v1635 = vmax.f32 %v1595, %v1627
        %v1636 = vmax.f32 %v1596, %v1628
        %v1637 = vmax.f32 %v1597, %v1629
        %1638 = vst.msk [vmem:[%s333 - $0x3] sm:$0x40] %vm989, %v1634
        %1639 = vst.msk [vmem:[%s333 + $0x5] sm:$0x40] %vm989, %v1635
        %1640 = vst.msk [vmem:[%s333 + $0xd] sm:$0x40] %vm989, %v1636
        %1641 = vst.msk [vmem:[%s333 + $0x15] sm:$0x40] %vm989, %v1637
        %v1642 = vrot.slane %v1571, 1
        %v1643 = vrot.slane %v1574, 1
        %v1644 = vrot.slane %v1577, 1
        %v1645 = vrot.slane %v1580, 1
        %v1650 = vmax.f32 %v1571, %v1642
        %v1651 = vmax.f32 %v1574, %v1643
        %v1652 = vmax.f32 %v1577, %v1644
        %v1653 = vmax.f32 %v1580, %v1645
        %v1654 = vmax.f32 %v1650, %v1626
        %v1655 = vmax.f32 %v1651, %v1627
        %v1656 = vmax.f32 %v1652, %v1628
        %v1657 = vmax.f32 %v1653, %v1629
        %1658 = vst.msk [vmem:[%s333 + $0x4] sm:$0x1] %vm958, %v1654
        %1659 = vst.msk [vmem:[%s333 + $0xc] sm:$0x1] %vm958, %v1655
        %1660 = vst.msk [vmem:[%s333 + $0x14] sm:$0x1] %vm958, %v1656
        %1661 = vst.msk [vmem:[%s333 + $0x1c] sm:$0x1] %vm958, %v1657
        %1662 = vst.msk [vmem:[%s333 + $0x3] sm:$0x4] %vm963, %v1654
        %1663 = vst.msk [vmem:[%s333 + $0xb] sm:$0x4] %vm963, %v1655
        %1664 = vst.msk [vmem:[%s333 + $0x13] sm:$0x4] %vm963, %v1656
        %1665 = vst.msk [vmem:[%s333 + $0x1b] sm:$0x4] %vm963, %v1657
        %1666 = vst.msk [vmem:[%s333 + $0x2] sm:$0x10] %vm968, %v1654
        %1667 = vst.msk [vmem:[%s333 + $0xa] sm:$0x10] %vm968, %v1655
        %1668 = vst.msk [vmem:[%s333 + $0x12] sm:$0x10] %vm968, %v1656
        %1669 = vst.msk [vmem:[%s333 + $0x1a] sm:$0x10] %vm968, %v1657
        %v1674 = vrot.slane %v1572, 2
        %v1675 = vrot.slane %v1575, 2
        %v1676 = vrot.slane %v1578, 2
        %v1677 = vrot.slane %v1581, 2
        %v1682 = vmax.f32 %v1650, %v1674
        %v1683 = vmax.f32 %v1651, %v1675
        %v1684 = vmax.f32 %v1652, %v1676
        %v1685 = vmax.f32 %v1653, %v1677
        %1686 = vst.msk [vmem:[%s333 + $0x1] sm:$0x40] %vm989, %v1682
        %1687 = vst.msk [vmem:[%s333 + $0x9] sm:$0x40] %vm989, %v1683
        %1688 = vst.msk [vmem:[%s333 + $0x11] sm:$0x40] %vm989, %v1684
        %1689 = vst.msk [vmem:[%s333 + $0x19] sm:$0x40] %vm989, %v1685
        %v1690 = vld [vmem:[%s294] sm:$0xff]
        %v1691 = vld [vmem:[%s294 + $0x8] sm:$0xff]
        %v1692 = vld [vmem:[%s294 + $0x10] sm:$0xff]
        %v1693 = vld [vmem:[%s294 + $0x18] sm:$0xff]
        %v1694 = vld [vmem:[%s294 + $0x20] sm:$0xff]
        %v1695 = vld [vmem:[%s294 + $0x28] sm:$0xff]
        %v1696 = vld [vmem:[%s294 + $0x30] sm:$0xff]
        %v1697 = vld [vmem:[%s294 + $0x38] sm:$0xff]
        %1706 = vrot.lane.b32.xlu0 %v1690, 1
        %v1707 = vpop.permute.xlu0 %1706
        %1708 = vrot.lane.b32.xlu0 %v1691, 1
        %v1709 = vpop.permute.xlu0 %1708
        %1710 = vrot.lane.b32.xlu0 %v1692, 1
        %v1711 = vpop.permute.xlu0 %1710
        %1712 = vrot.lane.b32.xlu0 %v1693, 1
        %v1713 = vpop.permute.xlu0 %1712
        %1714 = vrot.lane.b32.xlu0 %v1694, 1
        %v1715 = vpop.permute.xlu0 %1714
        %1716 = vrot.lane.b32.xlu0 %v1695, 1
        %v1717 = vpop.permute.xlu0 %1716
        %1718 = vrot.lane.b32.xlu0 %v1696, 1
        %v1719 = vpop.permute.xlu0 %1718
        %1720 = vrot.lane.b32.xlu0 %v1697, 1
        %v1721 = vpop.permute.xlu0 %1720
        %1730 = vst.msk [vmem:[#allocation2 + $0x1] sm:$0xff] %vm414, %v1707
        %1731 = vst.msk [vmem:[#allocation2 + $0x9] sm:$0xff] %vm414, %v1709
        %1732 = vst.msk [vmem:[#allocation2 + $0x19] sm:$0xff] %vm414, %v1711
        %1733 = vst.msk [vmem:[#allocation2 + $0x21] sm:$0xff] %vm414, %v1713
        %1734 = vst.msk [vmem:[#allocation2 + $0x31] sm:$0xff] %vm414, %v1715
        %1735 = vst.msk [vmem:[#allocation2 + $0x39] sm:$0xff] %vm414, %v1717
        %1736 = vst.msk [vmem:[#allocation2 + $0x49] sm:$0xff] %vm414, %v1719
        %1737 = vst.msk [vmem:[#allocation2 + $0x51] sm:$0xff] %vm414, %v1721
        %v1738 = vld [vmem:[#allocation2] sm:$0xff]
        %v1739 = vld [vmem:[#allocation2 + $0x8] sm:$0xff]
        %v1740 = vld [vmem:[#allocation2 + $0x10] sm:$0x3]
        %v1741 = vld [vmem:[#allocation2 + $0x18] sm:$0xff]
        %v1742 = vld [vmem:[#allocation2 + $0x20] sm:$0xff]
        %v1743 = vld [vmem:[#allocation2 + $0x28] sm:$0x3]
        %v1744 = vld [vmem:[#allocation2 + $0x30] sm:$0xff]
        %v1745 = vld [vmem:[#allocation2 + $0x38] sm:$0xff]
        %v1746 = vld [vmem:[#allocation2 + $0x40] sm:$0x3]
        %v1747 = vld [vmem:[#allocation2 + $0x48] sm:$0xff]
        %v1748 = vld [vmem:[#allocation2 + $0x50] sm:$0xff]
        %v1749 = vld [vmem:[#allocation2 + $0x58] sm:$0x3]
        %1762 = vrot.lane.b32.xlu0 %v1738, 127
        %v1763 = vpop.permute.xlu0 %1762
        %1764 = vrot.lane.b32.xlu0 %v1739, 127
        %v1765 = vpop.permute.xlu0 %1764
        %1766 = vrot.lane.b32.xlu0 %v1740, 127
        %v1767 = vpop.permute.xlu0 %1766
        %1768 = vrot.lane.b32.xlu0 %v1741, 127
        %v1769 = vpop.permute.xlu0 %1768
        %1770 = vrot.lane.b32.xlu0 %v1742, 127
        %v1771 = vpop.permute.xlu0 %1770
        %1772 = vrot.lane.b32.xlu0 %v1743, 127
        %v1773 = vpop.permute.xlu0 %1772
        %1774 = vrot.lane.b32.xlu0 %v1744, 127
        %v1775 = vpop.permute.xlu0 %1774
        %1776 = vrot.lane.b32.xlu0 %v1745, 127
        %v1777 = vpop.permute.xlu0 %1776
        %1778 = vrot.lane.b32.xlu0 %v1746, 127
        %v1779 = vpop.permute.xlu0 %1778
        %1780 = vrot.lane.b32.xlu0 %v1747, 127
        %v1781 = vpop.permute.xlu0 %1780
        %1782 = vrot.lane.b32.xlu0 %v1748, 127
        %v1783 = vpop.permute.xlu0 %1782
        %1784 = vrot.lane.b32.xlu0 %v1749, 127
        %v1785 = vpop.permute.xlu0 %1784
        %v1798 = vmax.f32 %v1738, %v1763
        %v1799 = vmax.f32 %v1739, %v1765
        %v1800 = vmax.f32 %v1740, %v1767
        %v1801 = vmax.f32 %v1741, %v1769
        %v1802 = vmax.f32 %v1742, %v1771
        %v1803 = vmax.f32 %v1743, %v1773
        %v1804 = vmax.f32 %v1744, %v1775
        %v1805 = vmax.f32 %v1745, %v1777
        %v1806 = vmax.f32 %v1746, %v1779
        %v1807 = vmax.f32 %v1747, %v1781
        %v1808 = vmax.f32 %v1748, %v1783
        %v1809 = vmax.f32 %v1749, %v1785
        %1810 = vrot.lane.b32.xlu0 %v1738, 126
        %v1811 = vpop.permute.xlu0 %1810
        %1812 = vrot.lane.b32.xlu0 %v1739, 126
        %v1813 = vpop.permute.xlu0 %1812
        %1814 = vrot.lane.b32.xlu0 %v1740, 126
        %v1815 = vpop.permute.xlu0 %1814
        %1816 = vrot.lane.b32.xlu0 %v1741, 126
        %v1817 = vpop.permute.xlu0 %1816
        %1818 = vrot.lane.b32.xlu0 %v1742, 126
        %v1819 = vpop.permute.xlu0 %1818
        %1820 = vrot.lane.b32.xlu0 %v1743, 126
        %v1821 = vpop.permute.xlu0 %1820
        %1822 = vrot.lane.b32.xlu0 %v1744, 126
        %v1823 = vpop.permute.xlu0 %1822
        %1824 = vrot.lane.b32.xlu0 %v1745, 126
        %v1825 = vpop.permute.xlu0 %1824
        %1826 = vrot.lane.b32.xlu0 %v1746, 126
        %v1827 = vpop.permute.xlu0 %1826
        %1828 = vrot.lane.b32.xlu0 %v1747, 126
        %v1829 = vpop.permute.xlu0 %1828
        %1830 = vrot.lane.b32.xlu0 %v1748, 126
        %v1831 = vpop.permute.xlu0 %1830
        %1832 = vrot.lane.b32.xlu0 %v1749, 126
        %v1833 = vpop.permute.xlu0 %1832
        %v1846 = vmax.f32 %v1798, %v1811
        %v1847 = vmax.f32 %v1799, %v1813
        %v1848 = vmax.f32 %v1800, %v1815
        %v1849 = vmax.f32 %v1801, %v1817
        %v1850 = vmax.f32 %v1802, %v1819
        %v1851 = vmax.f32 %v1803, %v1821
        %v1852 = vmax.f32 %v1804, %v1823
        %v1853 = vmax.f32 %v1805, %v1825
        %v1854 = vmax.f32 %v1806, %v1827
        %v1855 = vmax.f32 %v1807, %v1829
        %v1856 = vmax.f32 %v1808, %v1831
        %v1857 = vmax.f32 %v1809, %v1833
        %1858 = vst.msk [vmem:[#allocation3] sm:$0xff] %vm356, %v1846
        %1859 = vst.msk [vmem:[#allocation3 + $0x8] sm:$0xff] %vm356, %v1847
        %1860 = vst.msk [vmem:[#allocation3 + $0x10] sm:$0x3] %vm545, %v1848
        %1861 = vst.msk [vmem:[#allocation3 + $0x18] sm:$0xff] %vm356, %v1849
        %1862 = vst.msk [vmem:[#allocation3 + $0x20] sm:$0xff] %vm356, %v1850
        %1863 = vst.msk [vmem:[#allocation3 + $0x28] sm:$0x3] %vm545, %v1851
        %1864 = vst.msk [vmem:[#allocation3 + $0x30] sm:$0xff] %vm356, %v1852
        %1865 = vst.msk [vmem:[#allocation3 + $0x38] sm:$0xff] %vm356, %v1853
        %1866 = vst.msk [vmem:[#allocation3 + $0x40] sm:$0x3] %vm545, %v1854
        %1867 = vst.msk [vmem:[#allocation3 + $0x48] sm:$0xff] %vm356, %v1855
        %1868 = vst.msk [vmem:[#allocation3 + $0x50] sm:$0xff] %vm356, %v1856
        %1869 = vst.msk [vmem:[#allocation3 + $0x58] sm:$0x3] %vm545, %v1857
        %1882 = vrot.lane.b32.xlu0 %v1846, 127
        %v1883 = vpop.permute.xlu0 %1882
        %1884 = vrot.lane.b32.xlu0 %v1847, 127
        %v1885 = vpop.permute.xlu0 %1884
        %1886 = vrot.lane.b32.xlu0 %v1848, 127
        %v1887 = vpop.permute.xlu0 %1886
        %1888 = vrot.lane.b32.xlu0 %v1849, 127
        %v1889 = vpop.permute.xlu0 %1888
        %1890 = vrot.lane.b32.xlu0 %v1850, 127
        %v1891 = vpop.permute.xlu0 %1890
        %1892 = vrot.lane.b32.xlu0 %v1851, 127
        %v1893 = vpop.permute.xlu0 %1892
        %1894 = vrot.lane.b32.xlu0 %v1852, 127
        %v1895 = vpop.permute.xlu0 %1894
        %1896 = vrot.lane.b32.xlu0 %v1853, 127
        %v1897 = vpop.permute.xlu0 %1896
        %1898 = vrot.lane.b32.xlu0 %v1854, 127
        %v1899 = vpop.permute.xlu0 %1898
        %1900 = vrot.lane.b32.xlu0 %v1855, 127
        %v1901 = vpop.permute.xlu0 %1900
        %1902 = vrot.lane.b32.xlu0 %v1856, 127
        %v1903 = vpop.permute.xlu0 %1902
        %1904 = vrot.lane.b32.xlu0 %v1857, 127
        %v1905 = vpop.permute.xlu0 %1904
        %1918 = vst.msk [vmem:[#allocation3] sm:$0xff] %vm604, %v1883
        %1919 = vst.msk [vmem:[#allocation3 + $0x8] sm:$0xff] %vm604, %v1885
        %1920 = vst.msk [vmem:[#allocation3 + $0x10] sm:$0x3] %vm607, %v1887
        %1921 = vst.msk [vmem:[#allocation3 + $0x18] sm:$0xff] %vm604, %v1889
        %1922 = vst.msk [vmem:[#allocation3 + $0x20] sm:$0xff] %vm604, %v1891
        %1923 = vst.msk [vmem:[#allocation3 + $0x28] sm:$0x3] %vm607, %v1893
        %1924 = vst.msk [vmem:[#allocation3 + $0x30] sm:$0xff] %vm604, %v1895
        %1925 = vst.msk [vmem:[#allocation3 + $0x38] sm:$0xff] %vm604, %v1897
        %1926 = vst.msk [vmem:[#allocation3 + $0x40] sm:$0x3] %vm607, %v1899
        %1927 = vst.msk [vmem:[#allocation3 + $0x48] sm:$0xff] %vm604, %v1901
        %1928 = vst.msk [vmem:[#allocation3 + $0x50] sm:$0xff] %vm604, %v1903
        %1929 = vst.msk [vmem:[#allocation3 + $0x58] sm:$0x3] %vm607, %v1905
        %1930 = vrot.lane.b32.xlu0 %v1846, 126
        %v1931 = vpop.permute.xlu0 %1930
        %1932 = vrot.lane.b32.xlu0 %v1847, 126
        %v1933 = vpop.permute.xlu0 %1932
        %1934 = vrot.lane.b32.xlu0 %v1848, 126
        %v1935 = vpop.permute.xlu0 %1934
        %1936 = vrot.lane.b32.xlu0 %v1849, 126
        %v1937 = vpop.permute.xlu0 %1936
        %1938 = vrot.lane.b32.xlu0 %v1850, 126
        %v1939 = vpop.permute.xlu0 %1938
        %1940 = vrot.lane.b32.xlu0 %v1851, 126
        %v1941 = vpop.permute.xlu0 %1940
        %1942 = vrot.lane.b32.xlu0 %v1852, 126
        %v1943 = vpop.permute.xlu0 %1942
        %1944 = vrot.lane.b32.xlu0 %v1853, 126
        %v1945 = vpop.permute.xlu0 %1944
        %1946 = vrot.lane.b32.xlu0 %v1854, 126
        %v1947 = vpop.permute.xlu0 %1946
        %1948 = vrot.lane.b32.xlu0 %v1855, 126
        %v1949 = vpop.permute.xlu0 %1948
        %1950 = vrot.lane.b32.xlu0 %v1856, 126
        %v1951 = vpop.permute.xlu0 %1950
        %1952 = vrot.lane.b32.xlu0 %v1857, 126
        %v1953 = vpop.permute.xlu0 %1952
        %1966 = vst.msk [vmem:[#allocation3] sm:$0xff] %vm654, %v1931
        %1967 = vst.msk [vmem:[#allocation3 + $0x8] sm:$0xff] %vm654, %v1933
        %1968 = vst.msk [vmem:[#allocation3 + $0x10] sm:$0x3] %vm657, %v1935
        %1969 = vst.msk [vmem:[#allocation3 + $0x18] sm:$0xff] %vm654, %v1937
        %1970 = vst.msk [vmem:[#allocation3 + $0x20] sm:$0xff] %vm654, %v1939
        %1971 = vst.msk [vmem:[#allocation3 + $0x28] sm:$0x3] %vm657, %v1941
        %1972 = vst.msk [vmem:[#allocation3 + $0x30] sm:$0xff] %vm654, %v1943
        %1973 = vst.msk [vmem:[#allocation3 + $0x38] sm:$0xff] %vm654, %v1945
        %1974 = vst.msk [vmem:[#allocation3 + $0x40] sm:$0x3] %vm657, %v1947
        %1975 = vst.msk [vmem:[#allocation3 + $0x48] sm:$0xff] %vm654, %v1949
        %1976 = vst.msk [vmem:[#allocation3 + $0x50] sm:$0xff] %vm654, %v1951
        %1977 = vst.msk [vmem:[#allocation3 + $0x58] sm:$0x3] %vm657, %v1953
        %1978 = vrot.lane.b32.xlu0 %v1846, 125
        %v1979 = vpop.permute.xlu0 %1978
        %1980 = vrot.lane.b32.xlu0 %v1847, 125
        %v1981 = vpop.permute.xlu0 %1980
        %1982 = vrot.lane.b32.xlu0 %v1848, 125
        %v1983 = vpop.permute.xlu0 %1982
        %1984 = vrot.lane.b32.xlu0 %v1849, 125
        %v1985 = vpop.permute.xlu0 %1984
        %1986 = vrot.lane.b32.xlu0 %v1850, 125
        %v1987 = vpop.permute.xlu0 %1986
        %1988 = vrot.lane.b32.xlu0 %v1851, 125
        %v1989 = vpop.permute.xlu0 %1988
        %1990 = vrot.lane.b32.xlu0 %v1852, 125
        %v1991 = vpop.permute.xlu0 %1990
        %1992 = vrot.lane.b32.xlu0 %v1853, 125
        %v1993 = vpop.permute.xlu0 %1992
        %1994 = vrot.lane.b32.xlu0 %v1854, 125
        %v1995 = vpop.permute.xlu0 %1994
        %1996 = vrot.lane.b32.xlu0 %v1855, 125
        %v1997 = vpop.permute.xlu0 %1996
        %1998 = vrot.lane.b32.xlu0 %v1856, 125
        %v1999 = vpop.permute.xlu0 %1998
        %2000 = vrot.lane.b32.xlu0 %v1857, 125
        %v2001 = vpop.permute.xlu0 %2000
        %2014 = vst.msk [vmem:[#allocation3] sm:$0xff] %vm704, %v1979
        %2015 = vst.msk [vmem:[#allocation3 + $0x8] sm:$0xff] %vm704, %v1981
        %2016 = vst.msk [vmem:[#allocation3 + $0x10] sm:$0x3] %vm707, %v1983
        %2017 = vst.msk [vmem:[#allocation3 + $0x18] sm:$0xff] %vm704, %v1985
        %2018 = vst.msk [vmem:[#allocation3 + $0x20] sm:$0xff] %vm704, %v1987
        %2019 = vst.msk [vmem:[#allocation3 + $0x28] sm:$0x3] %vm707, %v1989
        %2020 = vst.msk [vmem:[#allocation3 + $0x30] sm:$0xff] %vm704, %v1991
        %2021 = vst.msk [vmem:[#allocation3 + $0x38] sm:$0xff] %vm704, %v1993
        %2022 = vst.msk [vmem:[#allocation3 + $0x40] sm:$0x3] %vm707, %v1995
        %2023 = vst.msk [vmem:[#allocation3 + $0x48] sm:$0xff] %vm704, %v1997
        %2024 = vst.msk [vmem:[#allocation3 + $0x50] sm:$0xff] %vm704, %v1999
        %2025 = vst.msk [vmem:[#allocation3 + $0x58] sm:$0x3] %vm707, %v2001
        %2026 = vrot.lane.b32.xlu0 %v1846, 124
        %v2027 = vpop.permute.xlu0 %2026
        %2028 = vrot.lane.b32.xlu0 %v1847, 124
        %v2029 = vpop.permute.xlu0 %2028
        %2030 = vrot.lane.b32.xlu0 %v1848, 124
        %v2031 = vpop.permute.xlu0 %2030
        %2032 = vrot.lane.b32.xlu0 %v1849, 124
        %v2033 = vpop.permute.xlu0 %2032
        %2034 = vrot.lane.b32.xlu0 %v1850, 124
        %v2035 = vpop.permute.xlu0 %2034
        %2036 = vrot.lane.b32.xlu0 %v1851, 124
        %v2037 = vpop.permute.xlu0 %2036
        %2038 = vrot.lane.b32.xlu0 %v1852, 124
        %v2039 = vpop.permute.xlu0 %2038
        %2040 = vrot.lane.b32.xlu0 %v1853, 124
        %v2041 = vpop.permute.xlu0 %2040
        %2042 = vrot.lane.b32.xlu0 %v1854, 124
        %v2043 = vpop.permute.xlu0 %2042
        %2044 = vrot.lane.b32.xlu0 %v1855, 124
        %v2045 = vpop.permute.xlu0 %2044
        %2046 = vrot.lane.b32.xlu0 %v1856, 124
        %v2047 = vpop.permute.xlu0 %2046
        %2048 = vrot.lane.b32.xlu0 %v1857, 124
        %v2049 = vpop.permute.xlu0 %2048
        %2062 = vst.msk [vmem:[#allocation3] sm:$0xff] %vm754, %v2027
        %2063 = vst.msk [vmem:[#allocation3 + $0x8] sm:$0xff] %vm754, %v2029
        %2064 = vst.msk [vmem:[#allocation3 + $0x10] sm:$0x3] %vm757, %v2031
        %2065 = vst.msk [vmem:[#allocation3 + $0x18] sm:$0xff] %vm754, %v2033
        %2066 = vst.msk [vmem:[#allocation3 + $0x20] sm:$0xff] %vm754, %v2035
        %2067 = vst.msk [vmem:[#allocation3 + $0x28] sm:$0x3] %vm757, %v2037
        %2068 = vst.msk [vmem:[#allocation3 + $0x30] sm:$0xff] %vm754, %v2039
        %2069 = vst.msk [vmem:[#allocation3 + $0x38] sm:$0xff] %vm754, %v2041
        %2070 = vst.msk [vmem:[#allocation3 + $0x40] sm:$0x3] %vm757, %v2043
        %2071 = vst.msk [vmem:[#allocation3 + $0x48] sm:$0xff] %vm754, %v2045
        %2072 = vst.msk [vmem:[#allocation3 + $0x50] sm:$0xff] %vm754, %v2047
        %2073 = vst.msk [vmem:[#allocation3 + $0x58] sm:$0x3] %vm757, %v2049
        %2074 = vrot.lane.b32.xlu0 %v1846, 123
        %v2075 = vpop.permute.xlu0 %2074
        %2076 = vrot.lane.b32.xlu0 %v1847, 123
        %v2077 = vpop.permute.xlu0 %2076
        %2078 = vrot.lane.b32.xlu0 %v1848, 123
        %v2079 = vpop.permute.xlu0 %2078
        %2080 = vrot.lane.b32.xlu0 %v1849, 123
        %v2081 = vpop.permute.xlu0 %2080
        %2082 = vrot.lane.b32.xlu0 %v1850, 123
        %v2083 = vpop.permute.xlu0 %2082
        %2084 = vrot.lane.b32.xlu0 %v1851, 123
        %v2085 = vpop.permute.xlu0 %2084
        %2086 = vrot.lane.b32.xlu0 %v1852, 123
        %v2087 = vpop.permute.xlu0 %2086
        %2088 = vrot.lane.b32.xlu0 %v1853, 123
        %v2089 = vpop.permute.xlu0 %2088
        %2090 = vrot.lane.b32.xlu0 %v1854, 123
        %v2091 = vpop.permute.xlu0 %2090
        %2092 = vrot.lane.b32.xlu0 %v1855, 123
        %v2093 = vpop.permute.xlu0 %2092
        %2094 = vrot.lane.b32.xlu0 %v1856, 123
        %v2095 = vpop.permute.xlu0 %2094
        %2096 = vrot.lane.b32.xlu0 %v1857, 123
        %v2097 = vpop.permute.xlu0 %2096
        %2110 = vst.msk [vmem:[#allocation3] sm:$0xff] %vm804, %v2075
        %2111 = vst.msk [vmem:[#allocation3 + $0x8] sm:$0xff] %vm804, %v2077
        %2112 = vst.msk [vmem:[#allocation3 + $0x10] sm:$0x3] %vm807, %v2079
        %2113 = vst.msk [vmem:[#allocation3 + $0x18] sm:$0xff] %vm804, %v2081
        %2114 = vst.msk [vmem:[#allocation3 + $0x20] sm:$0xff] %vm804, %v2083
        %2115 = vst.msk [vmem:[#allocation3 + $0x28] sm:$0x3] %vm807, %v2085
        %2116 = vst.msk [vmem:[#allocation3 + $0x30] sm:$0xff] %vm804, %v2087
        %2117 = vst.msk [vmem:[#allocation3 + $0x38] sm:$0xff] %vm804, %v2089
        %2118 = vst.msk [vmem:[#allocation3 + $0x40] sm:$0x3] %vm807, %v2091
        %2119 = vst.msk [vmem:[#allocation3 + $0x48] sm:$0xff] %vm804, %v2093
        %2120 = vst.msk [vmem:[#allocation3 + $0x50] sm:$0xff] %vm804, %v2095
        %2121 = vst.msk [vmem:[#allocation3 + $0x58] sm:$0x3] %vm807, %v2097
        %2122 = vrot.lane.b32.xlu0 %v1846, 122
        %v2123 = vpop.permute.xlu0 %2122
        %2124 = vrot.lane.b32.xlu0 %v1847, 122
        %v2125 = vpop.permute.xlu0 %2124
        %2126 = vrot.lane.b32.xlu0 %v1848, 122
        %v2127 = vpop.permute.xlu0 %2126
        %2128 = vrot.lane.b32.xlu0 %v1849, 122
        %v2129 = vpop.permute.xlu0 %2128
        %2130 = vrot.lane.b32.xlu0 %v1850, 122
        %v2131 = vpop.permute.xlu0 %2130
        %2132 = vrot.lane.b32.xlu0 %v1851, 122
        %v2133 = vpop.permute.xlu0 %2132
        %2134 = vrot.lane.b32.xlu0 %v1852, 122
        %v2135 = vpop.permute.xlu0 %2134
        %2136 = vrot.lane.b32.xlu0 %v1853, 122
        %v2137 = vpop.permute.xlu0 %2136
        %2138 = vrot.lane.b32.xlu0 %v1854, 122
        %v2139 = vpop.permute.xlu0 %2138
        %2140 = vrot.lane.b32.xlu0 %v1855, 122
        %v2141 = vpop.permute.xlu0 %2140
        %2142 = vrot.lane.b32.xlu0 %v1856, 122
        %v2143 = vpop.permute.xlu0 %2142
        %2144 = vrot.lane.b32.xlu0 %v1857, 122
        %v2145 = vpop.permute.xlu0 %2144
        %2158 = vst.msk [vmem:[#allocation3] sm:$0xff] %vm854, %v2123
        %2159 = vst.msk [vmem:[#allocation3 + $0x8] sm:$0xff] %vm854, %v2125
        %2160 = vst.msk [vmem:[#allocation3 + $0x10] sm:$0x3] %vm857, %v2127
        %2161 = vst.msk [vmem:[#allocation3 + $0x18] sm:$0xff] %vm854, %v2129
        %2162 = vst.msk [vmem:[#allocation3 + $0x20] sm:$0xff] %vm854, %v2131
        %2163 = vst.msk [vmem:[#allocation3 + $0x28] sm:$0x3] %vm857, %v2133
        %2164 = vst.msk [vmem:[#allocation3 + $0x30] sm:$0xff] %vm854, %v2135
        %2165 = vst.msk [vmem:[#allocation3 + $0x38] sm:$0xff] %vm854, %v2137
        %2166 = vst.msk [vmem:[#allocation3 + $0x40] sm:$0x3] %vm857, %v2139
        %2167 = vst.msk [vmem:[#allocation3 + $0x48] sm:$0xff] %vm854, %v2141
        %2168 = vst.msk [vmem:[#allocation3 + $0x50] sm:$0xff] %vm854, %v2143
        %2169 = vst.msk [vmem:[#allocation3 + $0x58] sm:$0x3] %vm857, %v2145
        %2170 = vrot.lane.b32.xlu0 %v1846, 121
        %v2171 = vpop.permute.xlu0 %2170
        %2172 = vrot.lane.b32.xlu0 %v1847, 121
        %v2173 = vpop.permute.xlu0 %2172
        %2174 = vrot.lane.b32.xlu0 %v1848, 121
        %v2175 = vpop.permute.xlu0 %2174
        %2176 = vrot.lane.b32.xlu0 %v1849, 121
        %v2177 = vpop.permute.xlu0 %2176
        %2178 = vrot.lane.b32.xlu0 %v1850, 121
        %v2179 = vpop.permute.xlu0 %2178
        %2180 = vrot.lane.b32.xlu0 %v1851, 121
        %v2181 = vpop.permute.xlu0 %2180
        %2182 = vrot.lane.b32.xlu0 %v1852, 121
        %v2183 = vpop.permute.xlu0 %2182
        %2184 = vrot.lane.b32.xlu0 %v1853, 121
        %v2185 = vpop.permute.xlu0 %2184
        %2186 = vrot.lane.b32.xlu0 %v1854, 121
        %v2187 = vpop.permute.xlu0 %2186
        %2188 = vrot.lane.b32.xlu0 %v1855, 121
        %v2189 = vpop.permute.xlu0 %2188
        %2190 = vrot.lane.b32.xlu0 %v1856, 121
        %v2191 = vpop.permute.xlu0 %2190
        %2192 = vrot.lane.b32.xlu0 %v1857, 121
        %v2193 = vpop.permute.xlu0 %2192
        %2206 = vst.msk [vmem:[#allocation3] sm:$0xff] %vm904, %v2171
        %2207 = vst.msk [vmem:[#allocation3 + $0x8] sm:$0xff] %vm904, %v2173
        %2208 = vst.msk [vmem:[#allocation3 + $0x10] sm:$0x3] %vm907, %v2175
        %2209 = vst.msk [vmem:[#allocation3 + $0x18] sm:$0xff] %vm904, %v2177
        %2210 = vst.msk [vmem:[#allocation3 + $0x20] sm:$0xff] %vm904, %v2179
        %2211 = vst.msk [vmem:[#allocation3 + $0x28] sm:$0x3] %vm907, %v2181
        %2212 = vst.msk [vmem:[#allocation3 + $0x30] sm:$0xff] %vm904, %v2183
        %2213 = vst.msk [vmem:[#allocation3 + $0x38] sm:$0xff] %vm904, %v2185
        %2214 = vst.msk [vmem:[#allocation3 + $0x40] sm:$0x3] %vm907, %v2187
        %2215 = vst.msk [vmem:[#allocation3 + $0x48] sm:$0xff] %vm904, %v2189
        %2216 = vst.msk [vmem:[#allocation3 + $0x50] sm:$0xff] %vm904, %v2191
        %2217 = vst.msk [vmem:[#allocation3 + $0x58] sm:$0x3] %vm907, %v2193
        %v2218 = vld [vmem:[#allocation3] sm:$0xff]
        %v2219 = vld [vmem:[#allocation3 + $0x8] sm:$0xff]
        %v2220 = vld [vmem:[#allocation3 + $0x10] sm:$0x3]
        %v2221 = vld [vmem:[#allocation3 + $0x18] sm:$0xff]
        %v2222 = vld [vmem:[#allocation3 + $0x20] sm:$0xff]
        %v2223 = vld [vmem:[#allocation3 + $0x28] sm:$0x3]
        %v2224 = vld [vmem:[#allocation3 + $0x30] sm:$0xff]
        %v2225 = vld [vmem:[#allocation3 + $0x38] sm:$0xff]
        %v2226 = vld [vmem:[#allocation3 + $0x40] sm:$0x3]
        %v2227 = vld [vmem:[#allocation3 + $0x48] sm:$0xff]
        %v2228 = vld [vmem:[#allocation3 + $0x50] sm:$0xff]
        %v2229 = vld [vmem:[#allocation3 + $0x58] sm:$0x3]
        %v2234 = vrot.slane %v2218, 1
        %v2235 = vrot.slane %v2221, 1
        %v2236 = vrot.slane %v2224, 1
        %v2237 = vrot.slane %v2227, 1
        %v2242 = vmax.f32 %v2218, %v2234
        %v2243 = vmax.f32 %v2221, %v2235
        %v2244 = vmax.f32 %v2224, %v2236
        %v2245 = vmax.f32 %v2227, %v2237
        %v2246 = vrot.slane %v2218, 2
        %v2247 = vrot.slane %v2221, 2
        %v2248 = vrot.slane %v2224, 2
        %v2249 = vrot.slane %v2227, 2
        %v2254 = vmax.f32 %v2242, %v2246
        %v2255 = vmax.f32 %v2243, %v2247
        %v2256 = vmax.f32 %v2244, %v2248
        %v2257 = vmax.f32 %v2245, %v2249
        %2258 = vst.msk [vmem:[%s340] sm:$0x1] %vm958, %v2254
        %2259 = vst.msk [vmem:[%s340 + $0x8] sm:$0x1] %vm958, %v2255
        %2260 = vst.msk [vmem:[%s340 + $0x10] sm:$0x1] %vm958, %v2256
        %2261 = vst.msk [vmem:[%s340 + $0x18] sm:$0x1] %vm958, %v2257
        %2262 = vst.msk [vmem:[%s340 - $0x1] sm:$0x4] %vm963, %v2254
        %2263 = vst.msk [vmem:[%s340 + $0x7] sm:$0x4] %vm963, %v2255
        %2264 = vst.msk [vmem:[%s340 + $0xf] sm:$0x4] %vm963, %v2256
        %2265 = vst.msk [vmem:[%s340 + $0x17] sm:$0x4] %vm963, %v2257
        %2266 = vst.msk [vmem:[%s340 - $0x2] sm:$0x10] %vm968, %v2254
        %2267 = vst.msk [vmem:[%s340 + $0x6] sm:$0x10] %vm968, %v2255
        %2268 = vst.msk [vmem:[%s340 + $0xe] sm:$0x10] %vm968, %v2256
        %2269 = vst.msk [vmem:[%s340 + $0x16] sm:$0x10] %vm968, %v2257
        %v2274 = vrot.slane %v2219, 2
        %v2275 = vrot.slane %v2222, 2
        %v2276 = vrot.slane %v2225, 2
        %v2277 = vrot.slane %v2228, 2
        %v2282 = vmax.f32 %v2242, %v2274
        %v2283 = vmax.f32 %v2243, %v2275
        %v2284 = vmax.f32 %v2244, %v2276
        %v2285 = vmax.f32 %v2245, %v2277
        %2286 = vst.msk [vmem:[%s340 - $0x3] sm:$0x40] %vm989, %v2282
        %2287 = vst.msk [vmem:[%s340 + $0x5] sm:$0x40] %vm989, %v2283
        %2288 = vst.msk [vmem:[%s340 + $0xd] sm:$0x40] %vm989, %v2284
        %2289 = vst.msk [vmem:[%s340 + $0x15] sm:$0x40] %vm989, %v2285
        %v2290 = vrot.slane %v2219, 1
        %v2291 = vrot.slane %v2222, 1
        %v2292 = vrot.slane %v2225, 1
        %v2293 = vrot.slane %v2228, 1
        %v2298 = vmax.f32 %v2219, %v2290
        %v2299 = vmax.f32 %v2222, %v2291
        %v2300 = vmax.f32 %v2225, %v2292
        %v2301 = vmax.f32 %v2228, %v2293
        %v2302 = vmax.f32 %v2298, %v2274
        %v2303 = vmax.f32 %v2299, %v2275
        %v2304 = vmax.f32 %v2300, %v2276
        %v2305 = vmax.f32 %v2301, %v2277
        %2306 = vst.msk [vmem:[%s340 + $0x4] sm:$0x1] %vm958, %v2302
        %2307 = vst.msk [vmem:[%s340 + $0xc] sm:$0x1] %vm958, %v2303
        %2308 = vst.msk [vmem:[%s340 + $0x14] sm:$0x1] %vm958, %v2304
        %2309 = vst.msk [vmem:[%s340 + $0x1c] sm:$0x1] %vm958, %v2305
        %2310 = vst.msk [vmem:[%s340 + $0x3] sm:$0x4] %vm963, %v2302
        %2311 = vst.msk [vmem:[%s340 + $0xb] sm:$0x4] %vm963, %v2303
        %2312 = vst.msk [vmem:[%s340 + $0x13] sm:$0x4] %vm963, %v2304
        %2313 = vst.msk [vmem:[%s340 + $0x1b] sm:$0x4] %vm963, %v2305
        %2314 = vst.msk [vmem:[%s340 + $0x2] sm:$0x10] %vm968, %v2302
        %2315 = vst.msk [vmem:[%s340 + $0xa] sm:$0x10] %vm968, %v2303
        %2316 = vst.msk [vmem:[%s340 + $0x12] sm:$0x10] %vm968, %v2304
        %2317 = vst.msk [vmem:[%s340 + $0x1a] sm:$0x10] %vm968, %v2305
        %v2322 = vrot.slane %v2220, 2
        %v2323 = vrot.slane %v2223, 2
        %v2324 = vrot.slane %v2226, 2
        %v2325 = vrot.slane %v2229, 2
        %v2330 = vmax.f32 %v2298, %v2322
        %v2331 = vmax.f32 %v2299, %v2323
        %v2332 = vmax.f32 %v2300, %v2324
        %v2333 = vmax.f32 %v2301, %v2325
        %2334 = vst.msk [vmem:[%s340 + $0x1] sm:$0x40] %vm989, %v2330
        %2335 = vst.msk [vmem:[%s340 + $0x9] sm:$0x40] %vm989, %v2331
        %2336 = vst.msk [vmem:[%s340 + $0x11] sm:$0x40] %vm989, %v2332
        %2337 = vst.msk [vmem:[%s340 + $0x19] sm:$0x40] %vm989, %v2333
        %s2338 = sand.u32 %s115, 1
        %s2339 = scalar_lea.sflag [#allocation6], %s2338
        %s2340 = sand.u32 %s115, 1
        %s2341 = smul.addr %s2340, 32
        %s2342 = scalar_lea.vmem [#allocation10], %s2341
        %s2343 = sand.u32 %s29, 1
        %s2344 = scalar_lea.sflag [#allocation12], %s2343
        %s2345 = sand.u32 %s141, 1
        %s2346 = smul.addr %s2345, 32
        %s2347 = scalar_lea.vmem [#allocation11], %s2346
        %s2348 = sand.u32 %s29, 1
        %s2349 = scalar_lea.sflag [#allocation12], %s2348
        %s2350 = sand.u32 %s167, 1
        %s2351 = smul.addr %s2350, 32
        %s2352 = scalar_lea.vmem [#allocation13], %s2351
        // Predicated region
        $region45: #{tpu_custom_call.1} parent=31 // pred_check
          %p2353 = pneg %p125
        $region46: #{tpu_custom_call.1} parent=31 // pred_check_branch
          %2355 = sbr.rel (%p2353) target = $region48
        $region47: #{tpu_custom_call.1} parent=31 // pred_region
          %s2356 = smul.u32 4, %s29
          %s2358 = ssub.s32 512, 512
          %2359 = vsyncadd %s2339, %s2358
          %s2360 = smul.addr %s2356, 128
          %s2361 = scalar_lea.hbm %s3, %s2360
          %s2362 = sshll.u32 %s2342, 4
          %s2363 = int_to_ptr.vmem [resolvable:$true] %s2362
          %2368 = dma.vmem_to_hbm [thread:$0]  %s2363, 512, %s2361, %s2339, 128, 128, 8
        $region48: #{tpu_custom_call.1} parent=31 // pred_fallthru
          _
        // Predicated region
        $region49: #{tpu_custom_call.1} parent=31 // pred_check
          %p2369 = pneg %p151
        $region50: #{tpu_custom_call.1} parent=31 // pred_check_branch
          %2371 = sbr.rel (%p2369) target = $region52
        $region51: #{tpu_custom_call.1} parent=31 // pred_region
          %s2372 = smul.u32 4, %s29
          %s2374 = ssub.s32 512, 512
          %2375 = vsyncadd %s2344, %s2374
          %s2376 = smul.addr %s2372, 128
          %s2377 = scalar_lea.hbm %s4, %s2376
          %s2378 = sshll.u32 %s2347, 4
          %s2379 = int_to_ptr.vmem [resolvable:$true] %s2378
          %2384 = dma.vmem_to_hbm [thread:$0]  %s2379, 512, %s2377, %s2344, 128, 128, 8
        $region52: #{tpu_custom_call.1} parent=31 // pred_fallthru
          _
        // Predicated region
        $region53: #{tpu_custom_call.1} parent=31 // pred_check
          %p2385 = pneg %p177
        $region54: #{tpu_custom_call.1} parent=31 // pred_check_branch
          %2387 = sbr.rel (%p2385) target = $region56
        $region55: #{tpu_custom_call.1} parent=31 // pred_region
          %s2388 = smul.u32 4, %s29
          %s2390 = ssub.s32 512, 512
          %2391 = vsyncadd %s2349, %s2390
          %s2392 = smul.addr %s2388, 128
          %s2393 = scalar_lea.hbm %s5, %s2392
          %s2394 = sshll.u32 %s2352, 4
          %s2395 = int_to_ptr.vmem [resolvable:$true] %s2394
          %2400 = dma.vmem_to_hbm [thread:$0]  %s2395, 512, %s2393, %s2349, 128, 128, 8
        $region56: #{tpu_custom_call.1} parent=31 // pred_fallthru
          _
      $region32: #{tpu_custom_call.1} parent=5 // pred_fallthru
        _
      %p2401 = scmp.le.s32.totalorder 2, %s24
      // Predicated region
      $region57: #{tpu_custom_call.1} parent=5 // pred_check
        %p2402 = pneg %p2401
      $region58: #{tpu_custom_call.1} parent=5 // pred_check_branch
        %2404 = sbr.rel (%p2402) target = $region60
      $region59: #{tpu_custom_call.1} parent=5 // pred_region
        %s2405 = ssub.s32 %s24, 2
        // Predicated region
        $region61: #{tpu_custom_call.1} parent=59 // pred_check
          %p2406 = pneg %p131
        $region62: #{tpu_custom_call.1} parent=59 // pred_check_branch
          %2408 = sbr.rel (%p2406) target = $region64
        $region63: #{tpu_custom_call.1} parent=59 // pred_region
          %s2409 = sand.u32 %s116, 1
          %s2410 = scalar_lea.sflag [#allocation6], %s2409
          %s2411 = sand.u32 %s116, 1
          %s2412 = smul.addr %s2411, 32
          %s2413 = scalar_lea.vmem [#allocation10], %s2412
          %2414 = dma.done %s2410, 512
        $region64: #{tpu_custom_call.1} parent=59 // pred_fallthru
          _
        // Predicated region
        $region65: #{tpu_custom_call.1} parent=59 // pred_check
          %p2415 = pneg %p157
        $region66: #{tpu_custom_call.1} parent=59 // pred_check_branch
          %2417 = sbr.rel (%p2415) target = $region68
        $region67: #{tpu_custom_call.1} parent=59 // pred_region
          %s2418 = sand.u32 %s30, 1
          %s2419 = scalar_lea.sflag [#allocation12], %s2418
          %s2420 = sand.u32 %s142, 1
          %s2421 = smul.addr %s2420, 32
          %s2422 = scalar_lea.vmem [#allocation11], %s2421
          %2423 = dma.done %s2419, 512
        $region68: #{tpu_custom_call.1} parent=59 // pred_fallthru
          _
        // Predicated region
        $region69: #{tpu_custom_call.1} parent=59 // pred_check
          %p2424 = pneg %p183
        $region70: #{tpu_custom_call.1} parent=59 // pred_check_branch
          %2426 = sbr.rel (%p2424) target = $region72
        $region71: #{tpu_custom_call.1} parent=59 // pred_region
          %s2427 = sand.u32 %s30, 1
          %s2428 = scalar_lea.sflag [#allocation12], %s2427
          %s2429 = sand.u32 %s168, 1
          %s2430 = smul.addr %s2429, 32
          %s2431 = scalar_lea.vmem [#allocation13], %s2430
          %2432 = dma.done %s2428, 512
        $region72: #{tpu_custom_call.1} parent=59 // pred_fallthru
          _
      $region60: #{tpu_custom_call.1} parent=5 // pred_fallthru
        _
    $region6: #{tpu_custom_call.1} parent=1 // loop_footer
      %s28 = sadd.s32 1, %s24
    $region7: #{tpu_custom_call.1} parent=1 // loop_footer_branch
      %23 = sbr.rel target = $region3
    $region8: #{tpu_custom_call.1} parent=1 // loop_exit
      _
    %2433 = vsyncpa [#allocation5], 1
    %s2434 = scalar_lea.sflag [#allocation5], 1
    %2435 = vsyncpa %s2434, 1
    %2436 = vsyncpa [#allocation8], 1
    %s2437 = scalar_lea.sflag [#allocation8], 1
    %2438 = vsyncpa %s2437, 1
    %2439 = vsyncpa [#allocation6], 1
    %s2440 = scalar_lea.sflag [#allocation6], 1
    %2441 = vsyncpa %s2440, 1
    %2442 = vsyncpa [#allocation12], 1
    %s2443 = scalar_lea.sflag [#allocation12], 1
    %2444 = vsyncpa %s2443, 1

</llo_original>
